<compile_context>
chip_gen: v7x
topology: tpu7x:2x2x1
jax: 0.10.0
libtpu: 0.0.40
codegen_flags: <defaults>
</compile_context>

<pallas_src>
import math

import jax
import jax.numpy as jnp
from jax.experimental import pallas as pl
from jax.experimental.pallas import tpu as pltpu

STATE_DIM = 16
HIDDEN_DIM = 64          # must equal the hardcoded d_model=64 of the encoder layer
ACTION_DIM = 4
NUM_HEADS = 4
FF_DIM = 64
NUM_LAYERS = 2
LN_EPS = 1e-5

assert FF_DIM == HIDDEN_DIM, "wmats slab stacking assumes dim_feedforward == d_model"

# vecs slab row layout:
#   rows [0, T)            : pe + fc1 bias (per time step)
#   per layer l, base = T + 7*l:
#     +0 bo   +1 ln1g  +2 ln1b  +3 ln2g  +4 ln2b  +5 bf1  +6 bf2
_ROWS_PER_LAYER = 7


def _layer_norm(x, gamma, beta, eps=LN_EPS):
    mu = jnp.mean(x, axis=-1, keepdims=True)
    xc = x - mu
    var = jnp.mean(xc * xc, axis=-1, keepdims=True)
    return xc * jax.lax.rsqrt(var + eps) * gamma + beta


def actor_transformer_kernel(
    s_ref,       # (N, S)            N = B*T, rows are (batch, time)-major
    w1_ref,      # (S, H)            fc1 weight (compute layout: y = x @ W)
    wqkv_ref,    # (L, H, 3H)        fused q|k|v projection weights
    bqkv_ref,    # (L, 3H)           fused q|k|v biases
    wmats_ref,   # (3L, H, H)        [wo_l, wf1_l, wf2_l] per layer
    w2b_ref,     # (H+1, A)          fc2 weight with bias as last row
    vecs_ref,    # (T + 7L, H)       pe+b1, per-layer biases / LN params
    logit_ref,   # out: (N, A)
):
    n = s_ref.shape[0]
    hidden = w1_ref.shape[1]
    seq = vecs_ref.shape[0] - _ROWS_PER_LAYER * NUM_LAYERS
    batch = n // seq
    head_dim = hidden // NUM_HEADS
    scale = 1.0 / math.sqrt(head_dim)

    def vrow(r):                       # (1, H) row of the vector slab (static index)
        return vecs_ref[r:r + 1, :]

    # fc1 over all B*T rows at once, then (positional encoding + fc1 bias),
    # tiled per batch block (rows are (b, t)-major).
    peb = vecs_ref[0:seq, :]                                       # (T, H)
    x = jnp.dot(s_ref[...], w1_ref[...], preferred_element_type=jnp.float32)
    x = x + jnp.concatenate([peb] * batch, axis=0)
    # TODO(synk): dropout (p=0.1) in PositionalEncoding / encoder layers is identity
    # in eval mode; training-mode dropout is not implemented.

    # Causal additive mask built in-register (0 on/below diagonal, -inf above).
    rix = jax.lax.broadcasted_iota(jnp.int32, (seq, seq), 0)
    cix = jax.lax.broadcasted_iota(jnp.int32, (seq, seq), 1)
    mask = jnp.where(cix > rix, -jnp.inf, 0.0).astype(jnp.float32)

    for l in range(NUM_LAYERS):        # static, fully unrolled (L=2)
        base = seq + _ROWS_PER_LAYER * l
        wo_l = wmats_ref[3 * l + 0]
        wf1_l = wmats_ref[3 * l + 1]
        wf2_l = wmats_ref[3 * l + 2]

        # ---- causal multi-head self-attention (post-LN, PyTorch defaults) ----
        # Single fused QKV matmul (192-wide RHS), then lane-slice q/k/v.
        qkv = jnp.dot(x, wqkv_ref[l], preferred_element_type=jnp.float32) \
            + bqkv_ref[l:l + 1, :]
        q = qkv[:, 0:hidden] * scale          # scale applied once per layer
        k = qkv[:, hidden:2 * hidden]
        v = qkv[:, 2 * hidden:3 * hidden]

        attn_blocks = []
        for b in range(batch):                # static, fully unrolled (B=2)
            r0 = b * seq
            acc_b = None
            for h in range(NUM_HEADS):        # static, fully unrolled (4 heads)
                c0 = h * head_dim
                q_bh = q[r0:r0 + seq, c0:c0 + head_dim]
                k_bh = k[r0:r0 + seq, c0:c0 + head_dim]
                v_bh = v[r0:r0 + seq, c0:c0 + head_dim]
                sc = jax.lax.dot_general(
                    q_bh, k_bh, (((1,), (1,)), ((), ())),
                    preferred_element_type=jnp.float32) + mask
                sc = sc - jnp.max(sc, axis=-1, keepdims=True)
                p = jnp.exp(sc)
                p = p * pl.reciprocal(jnp.sum(p, axis=-1, keepdims=True), approx=True)
                o_bh = jnp.dot(p, v_bh, preferred_element_type=jnp.float32)  # (T, hd)
                # Reassociate head output through its slice of the out-projection:
                # equivalent to concat(heads) @ wo, but stays in registers.
                part = jnp.dot(o_bh, wo_l[c0:c0 + head_dim, :],
                               preferred_element_type=jnp.float32)           # (T, H)
                acc_b = part if acc_b is None else acc_b + part
            attn_blocks.append(acc_b)
        attn = jnp.concatenate(attn_blocks, axis=0) + vrow(base + 0)         # + bo
        x = _layer_norm(x + attn, vrow(base + 1), vrow(base + 2))            # ln1

        # ---- feed-forward (ReLU) ----
        ff = jnp.maximum(
            jnp.dot(x, wf1_l, preferred_element_type=jnp.float32) + vrow(base + 5),
            0.0)
        ff = jnp.dot(ff, wf2_l, preferred_element_type=jnp.float32) + vrow(base + 6)
        x = _layer_norm(x + ff, vrow(base + 3), vrow(base + 4))              # ln2

    # fc2 -> logits (single store at the very end).
    logit_ref[...] = (
        jnp.dot(x, w2b_ref[0:hidden, :], preferred_element_type=jnp.float32)
        + w2b_ref[hidden:hidden + 1, :]
    )


def pack_params(p):
    """One-time host-side repack of logical params into the kernel's packed layout."""
    L, H = NUM_LAYERS, HIDDEN_DIM

    # (T + 7L, H) vector slab: pe + fc1 bias, then per-layer bias / LN rows.
    rows = [p["pe"] + p["b1"]]
    for l in range(L):
        rows.append(jnp.concatenate(
            [p["bo"][l], p["ln1g"][l], p["ln1b"][l],
             p["ln2g"][l], p["ln2b"][l], p["bf1"][l], p["bf2"][l]], axis=0))
    vecs = jnp.concatenate(rows, axis=0)

    # Fused q|k|v weights (L, H, 3H) and biases (L, 3H).
    wqkv = jnp.stack(
        [jnp.concatenate([p["wqkv"][3 * l + 0], p["wqkv"][3 * l + 1],
                          p["wqkv"][3 * l + 2]], axis=1) for l in range(L)], axis=0)
    bqkv = jnp.stack(
        [jnp.concatenate([p["bqkv"][3 * l + 0], p["bqkv"][3 * l + 1],
                          p["bqkv"][3 * l + 2]], axis=1)[0] for l in range(L)], axis=0)

    # Square-matrix slab (3L, H, H): wo, wf1, wf2 per layer.
    mats = []
    for l in range(L):
        mats += [p["wo"][l], p["wf1"][l], p["wf2"][l]]
    wmats = jnp.stack(mats, axis=0)

    # fc2 weight with its bias folded in as the last row: (H+1, A).
    w2b = jnp.concatenate([p["w2"], p["b2"]], axis=0)

    return {"w1": p["w1"], "wqkv": wqkv, "bqkv": bqkv,
            "wmats": wmats, "w2b": w2b, "vecs": vecs}


def actor_transformer_forward(s, packed):
    """s: (B, T, state_dim) batch-first (PyTorch). Returns logits (B, T, action_dim)."""
    B, T, S = s.shape
    A = packed["w2b"].shape[1]
    N = B * T

    s2d = s.reshape(N, S)   # contiguous (b, t)-major rows — free reshape

    n_inputs = 7
    logit2d = pl.pallas_call(
        actor_transformer_kernel,
        out_shape=jax.ShapeDtypeStruct((N, A), jnp.float32),
        in_specs=[pl.BlockSpec(memory_space=pltpu.MemorySpace.VMEM)] * n_inputs,
        out_specs=pl.BlockSpec(memory_space=pltpu.MemorySpace.VMEM),
    )(
        s2d, packed["w1"], packed["wqkv"], packed["bqkv"],
        packed["wmats"], packed["w2b"], packed["vecs"],
    )
    return logit2d.reshape(B, T, A)


def actor_transformer_reference(s, params):
    """Pure-JAX reference of the same forward pass (for correctness check)."""
    B, T, _ = s.shape
    H = params["w1"].shape[1]
    hd = H // NUM_HEADS

    x = jnp.einsum("bts,sh->bth", s, params["w1"]) + params["b1"]
    x = x + params["pe"][None]
    mask = params["mask"]

    for l in range(NUM_LAYERS):
        q = jnp.einsum("bth,hk->btk", x, params["wqkv"][3 * l + 0]) + params["bqkv"][3 * l + 0]
        k = jnp.einsum("bth,hk->btk", x, params["wqkv"][3 * l + 1]) + params["bqkv"][3 * l + 1]
        v = jnp.einsum("bth,hk->btk", x, params["wqkv"][3 * l + 2]) + params["bqkv"][3 * l + 2]
        qh = q.reshape(B, T, NUM_HEADS, hd)
        kh = k.reshape(B, T, NUM_HEADS, hd)
        vh = v.reshape(B, T, NUM_HEADS, hd)
        sc = jnp.einsum("bqhd,bkhd->bhqk", qh, kh) / math.sqrt(hd) + mask
        attn = jax.nn.softmax(sc, axis=-1)
        out = jnp.einsum("bhqk,bkhd->bqhd", attn, vh).reshape(B, T, H)
        out = jnp.einsum("bth,hk->btk", out, params["wo"][l]) + params["bo"][l]
        x = _layer_norm(x + out, params["ln1g"][l], params["ln1b"][l])

        ff = jax.nn.relu(jnp.einsum("bth,hf->btf", x, params["wf1"][l]) + params["bf1"][l])
        ff = jnp.einsum("btf,fh->bth", ff, params["wf2"][l]) + params["bf2"][l]
        x = _layer_norm(x + ff, params["ln2g"][l], params["ln2b"][l])

    return jnp.einsum("bth,ha->bta", x, params["w2"]) + params["b2"]


def _positional_encoding(seq_len, d_model):
    position = jnp.arange(seq_len, dtype=jnp.float32)[:, None]
    div_term = jnp.exp(
        jnp.arange(0, d_model, 2, dtype=jnp.float32) * (-math.log(10000.0) / d_model))
    ang = position * div_term
    pe = jnp.zeros((seq_len, d_model), jnp.float32)
    pe = pe.at[:, 0::2].set(jnp.sin(ang))
    pe = pe.at[:, 1::2].set(jnp.cos(ang))
    return pe


def _causal_mask(seq_len):
    idx = jnp.arange(seq_len)
    return jnp.where(idx[None, :] > idx[:, None], -jnp.inf, 0.0).astype(jnp.float32)


def init_params(key, state_dim, hidden_dim, action_dim, num_layers, ff_dim, seq_len):
    """Deterministic synthetic init. fc1/fc2 orthogonal-ish (QR) per use_orthogonal_init;
    transformer weights small random, LayerNorm gamma=1 / beta=0 (PyTorch defaults).
    Weights are stored in compute layout: y = x @ W + b."""
    def ortho(k, shape, gain):
        m = jax.random.normal(k, shape, jnp.float32)
        q, _ = jnp.linalg.qr(m if shape[0] >= shape[1] else m.T)
        q = q if shape[0] >= shape[1] else q.T
        return gain * q[: shape[0], : shape[1]]

    def rnd(k, shape, scale):
        return (scale * jax.random.normal(k, shape)).astype(jnp.float32)

    ks = jax.random.split(key, 10)
    return {
        "w1": ortho(ks[0], (state_dim, hidden_dim), math.sqrt(2.0)),
        "b1": jnp.zeros((1, hidden_dim), jnp.float32),
        "wqkv": rnd(ks[2], (3 * num_layers, hidden_dim, hidden_dim), 0.1),
        "bqkv": rnd(ks[3], (3 * num_layers, 1, hidden_dim), 0.05),
        "wo": rnd(ks[4], (num_layers, hidden_dim, hidden_dim), 0.1),
        "bo": rnd(ks[5], (num_layers, 1, hidden_dim), 0.05),
        "ln1g": jnp.ones((num_layers, 1, hidden_dim), jnp.float32),
        "ln1b": jnp.zeros((num_layers, 1, hidden_dim), jnp.float32),
        "ln2g": jnp.ones((num_layers, 1, hidden_dim), jnp.float32),
        "ln2b": jnp.zeros((num_layers, 1, hidden_dim), jnp.float32),
        "wf1": rnd(ks[6], (num_layers, hidden_dim, ff_dim), 0.1),
        "bf1": rnd(ks[7], (num_layers, 1, ff_dim), 0.05),
        "wf2": rnd(ks[8], (num_layers, ff_dim, hidden_dim), 0.1),
        "bf2": rnd(ks[9], (num_layers, 1, hidden_dim), 0.05),
        "w2": ortho(ks[1], (hidden_dim, action_dim), 0.01),
        "b2": jnp.zeros((1, action_dim), jnp.float32),
        "pe": _positional_encoding(seq_len, hidden_dim),
        "mask": _causal_mask(seq_len),
    }


if __name__ == "__main__":
    key = jax.random.PRNGKey(0)
    k_param, k_data = jax.random.split(key)

    B, T = 2, 8
    params = init_params(k_param, STATE_DIM, HIDDEN_DIM, ACTION_DIM,
                         NUM_LAYERS, FF_DIM, T)
    packed = pack_params(params)     # one-time repack (not per forward call)
    s = jax.random.normal(k_data, (B, T, STATE_DIM), jnp.float32)

    fwd = jax.jit(actor_transformer_forward)
    logit = jax.block_until_ready(fwd(s, packed))
    logit_ref = actor_transformer_reference(s, params)

    assert logit.shape == (B, T, ACTION_DIM)
    # tolerance slightly relaxed vs 1e-4 because of the approx (EUP) reciprocal
    # in the softmax denominator.
    err = float(jnp.max(jnp.abs(logit - logit_ref)))
    assert jnp.allclose(logit, logit_ref, atol=1e-3, rtol=1e-3), err

    print("KERNEL_OK")
</pallas_src>

<mosaic_0001>
module attributes {stable_mosaic.version = 11 : i64} {
  func.func @actor_transformer_kernel(%arg0: memref<16x16xf32, #tpu.memory_space<vmem>>, %arg1: memref<16x64xf32, #tpu.memory_space<vmem>>, %arg2: memref<2x64x192xf32, #tpu.memory_space<vmem>>, %arg3: memref<2x192xf32, #tpu.memory_space<vmem>>, %arg4: memref<6x64x64xf32, #tpu.memory_space<vmem>>, %arg5: memref<65x4xf32, #tpu.memory_space<vmem>>, %arg6: memref<22x64xf32, #tpu.memory_space<vmem>>, %arg7: memref<16x4xf32, #tpu.memory_space<vmem>>) attributes {dimension_semantics = [], scalar_prefetch = 0 : i64, scratch_operands = 0 : i64, tpu.core_type = #tpu.core_type<tc>} {
    %c0 = arith.constant 0 : index
    %c0_0 = arith.constant 0 : index
    %0 = vector.load %arg6[%c0, %c0_0] : memref<22x64xf32, #tpu.memory_space<vmem>>, vector<8x64xf32>
    %c0_1 = arith.constant 0 : index
    %c0_2 = arith.constant 0 : index
    %1 = vector.load %arg0[%c0_1, %c0_2] : memref<16x16xf32, #tpu.memory_space<vmem>>, vector<16x16xf32>
    %c0_3 = arith.constant 0 : index
    %c0_4 = arith.constant 0 : index
    %2 = vector.load %arg1[%c0_3, %c0_4] : memref<16x64xf32, #tpu.memory_space<vmem>>, vector<16x64xf32>
    %cst = arith.constant dense<0.000000e+00> : vector<16x64xf32>
    %3 = tpu.matmul %1, %2, %cst {dimension_numbers = #tpu.dot_dimension_numbers<[1], [0], [0], [1], [0, 0, 1, 1], [], []>} : vector<16x16xf32>, vector<16x64xf32>, vector<16x64xf32> -> vector<16x64xf32>
    %4 = tpu.concatenate %0, %0 in 0 : vector<8x64xf32>, vector<8x64xf32> -> vector<16x64xf32>
    %5 = arith.addf %3, %4 : vector<16x64xf32>
    %6 = tpu.iota {dimensions = array<i32: 0>} : vector<8x8xi32>
    %7 = tpu.iota {dimensions = array<i32: 1>} : vector<8x8xi32>
    %8 = arith.cmpi sgt, %7, %6 : vector<8x8xi32>
    %cst_5 = arith.constant 0xFF800000 : f32
    %cst_6 = arith.constant 0.000000e+00 : f32
    %9 = vector.broadcast %cst_5 : f32 to vector<8x8xf32>
    %10 = vector.broadcast %cst_6 : f32 to vector<8x8xf32>
    %11 = arith.select %8, %9, %10 : vector<8x8xi1>, vector<8x8xf32>
    %c0_7 = arith.constant 0 : index
    %c0_8 = arith.constant 0 : index
    %c0_9 = arith.constant 0 : index
    %12 = vector.load %arg4[%c0_7, %c0_8, %c0_9] : memref<6x64x64xf32, #tpu.memory_space<vmem>>, vector<1x64x64xf32>
    %13 = vector.shape_cast %12 : vector<1x64x64xf32> to vector<64x64xf32>
    %c1 = arith.constant 1 : index
    %c0_10 = arith.constant 0 : index
    %c0_11 = arith.constant 0 : index
    %14 = vector.load %arg4[%c1, %c0_10, %c0_11] : memref<6x64x64xf32, #tpu.memory_space<vmem>>, vector<1x64x64xf32>
    %15 = vector.shape_cast %14 : vector<1x64x64xf32> to vector<64x64xf32>
    %c2 = arith.constant 2 : index
    %c0_12 = arith.constant 0 : index
    %c0_13 = arith.constant 0 : index
    %16 = vector.load %arg4[%c2, %c0_12, %c0_13] : memref<6x64x64xf32, #tpu.memory_space<vmem>>, vector<1x64x64xf32>
    %17 = vector.shape_cast %16 : vector<1x64x64xf32> to vector<64x64xf32>
    %c0_14 = arith.constant 0 : index
    %c0_15 = arith.constant 0 : index
    %c0_16 = arith.constant 0 : index
    %18 = vector.load %arg2[%c0_14, %c0_15, %c0_16] : memref<2x64x192xf32, #tpu.memory_space<vmem>>, vector<1x64x192xf32>
    %19 = vector.shape_cast %18 : vector<1x64x192xf32> to vector<64x192xf32>
    %cst_17 = arith.constant dense<0.000000e+00> : vector<16x192xf32>
    %20 = tpu.matmul %5, %19, %cst_17 {dimension_numbers = #tpu.dot_dimension_numbers<[1], [0], [0], [1], [0, 0, 1, 1], [], []>} : vector<16x64xf32>, vector<64x192xf32>, vector<16x192xf32> -> vector<16x192xf32>
    %c0_18 = arith.constant 0 : index
    %c0_19 = arith.constant 0 : index
    %21 = vector.load %arg3[%c0_18, %c0_19] : memref<2x192xf32, #tpu.memory_space<vmem>>, vector<1x192xf32>
    %22 = vector.broadcast %21 : vector<1x192xf32> to vector<16x192xf32>
    %23 = arith.addf %20, %22 : vector<16x192xf32>
    %24 = vector.extract_strided_slice %23 {offsets = [0, 0], sizes = [16, 64], strides = [1, 1]} : vector<16x192xf32> to vector<16x64xf32>
    %cst_20 = arith.constant 2.500000e-01 : f32
    %25 = vector.broadcast %cst_20 : f32 to vector<16x64xf32>
    %26 = arith.mulf %24, %25 : vector<16x64xf32>
    %27 = vector.extract_strided_slice %23 {offsets = [0, 64], sizes = [16, 64], strides = [1, 1]} : vector<16x192xf32> to vector<16x64xf32>
    %28 = vector.extract_strided_slice %23 {offsets = [0, 128], sizes = [16, 64], strides = [1, 1]} : vector<16x192xf32> to vector<16x64xf32>
    %29 = vector.extract_strided_slice %26 {offsets = [0, 0], sizes = [8, 16], strides = [1, 1]} : vector<16x64xf32> to vector<8x16xf32>
    %30 = vector.extract_strided_slice %27 {offsets = [0, 0], sizes = [8, 16], strides = [1, 1]} : vector<16x64xf32> to vector<8x16xf32>
    %31 = vector.extract_strided_slice %28 {offsets = [0, 0], sizes = [8, 16], strides = [1, 1]} : vector<16x64xf32> to vector<8x16xf32>
    %cst_21 = arith.constant dense<0.000000e+00> : vector<8x8xf32>
    %32 = tpu.matmul %29, %30, %cst_21 {dimension_numbers = #tpu.dot_dimension_numbers<[1], [1], [0], [0], [0, 0, 1, 0], [], []>} : vector<8x16xf32>, vector<8x16xf32>, vector<8x8xf32> -> vector<8x8xf32>
    %33 = arith.addf %32, %11 : vector<8x8xf32>
    %cst_22 = arith.constant dense<0xFF800000> : vector<8xf32>
    %34 = vector.multi_reduction <maximumf>, %33, %cst_22 [1] : vector<8x8xf32> to vector<8xf32>
    %35 = vector.shape_cast %34 : vector<8xf32> to vector<8x1xf32>
    %36 = vector.broadcast %35 : vector<8x1xf32> to vector<8x8xf32>
    %37 = arith.subf %33, %36 : vector<8x8xf32>
    %38 = math.exp %37 : vector<8x8xf32>
    %cst_23 = arith.constant dense<0.000000e+00> : vector<8xf32>
    %39 = vector.multi_reduction <add>, %38, %cst_23 [1] : vector<8x8xf32> to vector<8xf32>
    %40 = vector.shape_cast %39 : vector<8xf32> to vector<8x1xf32>
    %41 = tpu.reciprocal %40 {approx = true} : vector<8x1xf32> -> vector<8x1xf32>
    %42 = vector.broadcast %41 : vector<8x1xf32> to vector<8x8xf32>
    %43 = arith.mulf %38, %42 : vector<8x8xf32>
    %cst_24 = arith.constant dense<0.000000e+00> : vector<8x16xf32>
    %44 = tpu.matmul %43, %31, %cst_24 {dimension_numbers = #tpu.dot_dimension_numbers<[1], [0], [0], [1], [0, 0, 1, 1], [], []>} : vector<8x8xf32>, vector<8x16xf32>, vector<8x16xf32> -> vector<8x16xf32>
    %45 = vector.extract_strided_slice %13 {offsets = [0, 0], sizes = [16, 64], strides = [1, 1]} : vector<64x64xf32> to vector<16x64xf32>
    %cst_25 = arith.constant dense<0.000000e+00> : vector<8x64xf32>
    %46 = tpu.matmul %44, %45, %cst_25 {dimension_numbers = #tpu.dot_dimension_numbers<[1], [0], [0], [1], [0, 0, 1, 1], [], []>} : vector<8x16xf32>, vector<16x64xf32>, vector<8x64xf32> -> vector<8x64xf32>
    %47 = vector.extract_strided_slice %26 {offsets = [0, 16], sizes = [8, 16], strides = [1, 1]} : vector<16x64xf32> to vector<8x16xf32>
    %48 = vector.extract_strided_slice %27 {offsets = [0, 16], sizes = [8, 16], strides = [1, 1]} : vector<16x64xf32> to vector<8x16xf32>
    %49 = vector.extract_strided_slice %28 {offsets = [0, 16], sizes = [8, 16], strides = [1, 1]} : vector<16x64xf32> to vector<8x16xf32>
    %cst_26 = arith.constant dense<0.000000e+00> : vector<8x8xf32>
    %50 = tpu.matmul %47, %48, %cst_26 {dimension_numbers = #tpu.dot_dimension_numbers<[1], [1], [0], [0], [0, 0, 1, 0], [], []>} : vector<8x16xf32>, vector<8x16xf32>, vector<8x8xf32> -> vector<8x8xf32>
    %51 = arith.addf %50, %11 : vector<8x8xf32>
    %cst_27 = arith.constant dense<0xFF800000> : vector<8xf32>
    %52 = vector.multi_reduction <maximumf>, %51, %cst_27 [1] : vector<8x8xf32> to vector<8xf32>
    %53 = vector.shape_cast %52 : vector<8xf32> to vector<8x1xf32>
    %54 = vector.broadcast %53 : vector<8x1xf32> to vector<8x8xf32>
    %55 = arith.subf %51, %54 : vector<8x8xf32>
    %56 = math.exp %55 : vector<8x8xf32>
    %cst_28 = arith.constant dense<0.000000e+00> : vector<8xf32>
    %57 = vector.multi_reduction <add>, %56, %cst_28 [1] : vector<8x8xf32> to vector<8xf32>
    %58 = vector.shape_cast %57 : vector<8xf32> to vector<8x1xf32>
    %59 = tpu.reciprocal %58 {approx = true} : vector<8x1xf32> -> vector<8x1xf32>
    %60 = vector.broadcast %59 : vector<8x1xf32> to vector<8x8xf32>
    %61 = arith.mulf %56, %60 : vector<8x8xf32>
    %cst_29 = arith.constant dense<0.000000e+00> : vector<8x16xf32>
    %62 = tpu.matmul %61, %49, %cst_29 {dimension_numbers = #tpu.dot_dimension_numbers<[1], [0], [0], [1], [0, 0, 1, 1], [], []>} : vector<8x8xf32>, vector<8x16xf32>, vector<8x16xf32> -> vector<8x16xf32>
    %63 = vector.extract_strided_slice %13 {offsets = [16, 0], sizes = [16, 64], strides = [1, 1]} : vector<64x64xf32> to vector<16x64xf32>
    %cst_30 = arith.constant dense<0.000000e+00> : vector<8x64xf32>
    %64 = tpu.matmul %62, %63, %cst_30 {dimension_numbers = #tpu.dot_dimension_numbers<[1], [0], [0], [1], [0, 0, 1, 1], [], []>} : vector<8x16xf32>, vector<16x64xf32>, vector<8x64xf32> -> vector<8x64xf32>
    %65 = arith.addf %46, %64 : vector<8x64xf32>
    %66 = vector.extract_strided_slice %26 {offsets = [0, 32], sizes = [8, 16], strides = [1, 1]} : vector<16x64xf32> to vector<8x16xf32>
    %67 = vector.extract_strided_slice %27 {offsets = [0, 32], sizes = [8, 16], strides = [1, 1]} : vector<16x64xf32> to vector<8x16xf32>
    %68 = vector.extract_strided_slice %28 {offsets = [0, 32], sizes = [8, 16], strides = [1, 1]} : vector<16x64xf32> to vector<8x16xf32>
    %cst_31 = arith.constant dense<0.000000e+00> : vector<8x8xf32>
    %69 = tpu.matmul %66, %67, %cst_31 {dimension_numbers = #tpu.dot_dimension_numbers<[1], [1], [0], [0], [0, 0, 1, 0], [], []>} : vector<8x16xf32>, vector<8x16xf32>, vector<8x8xf32> -> vector<8x8xf32>
    %70 = arith.addf %69, %11 : vector<8x8xf32>
    %cst_32 = arith.constant dense<0xFF800000> : vector<8xf32>
    %71 = vector.multi_reduction <maximumf>, %70, %cst_32 [1] : vector<8x8xf32> to vector<8xf32>
    %72 = vector.shape_cast %71 : vector<8xf32> to vector<8x1xf32>
    %73 = vector.broadcast %72 : vector<8x1xf32> to vector<8x8xf32>
    %74 = arith.subf %70, %73 : vector<8x8xf32>
    %75 = math.exp %74 : vector<8x8xf32>
    %cst_33 = arith.constant dense<0.000000e+00> : vector<8xf32>
    %76 = vector.multi_reduction <add>, %75, %cst_33 [1] : vector<8x8xf32> to vector<8xf32>
    %77 = vector.shape_cast %76 : vector<8xf32> to vector<8x1xf32>
    %78 = tpu.reciprocal %77 {approx = true} : vector<8x1xf32> -> vector<8x1xf32>
    %79 = vector.broadcast %78 : vector<8x1xf32> to vector<8x8xf32>
    %80 = arith.mulf %75, %79 : vector<8x8xf32>
    %cst_34 = arith.constant dense<0.000000e+00> : vector<8x16xf32>
    %81 = tpu.matmul %80, %68, %cst_34 {dimension_numbers = #tpu.dot_dimension_numbers<[1], [0], [0], [1], [0, 0, 1, 1], [], []>} : vector<8x8xf32>, vector<8x16xf32>, vector<8x16xf32> -> vector<8x16xf32>
    %82 = vector.extract_strided_slice %13 {offsets = [32, 0], sizes = [16, 64], strides = [1, 1]} : vector<64x64xf32> to vector<16x64xf32>
    %cst_35 = arith.constant dense<0.000000e+00> : vector<8x64xf32>
    %83 = tpu.matmul %81, %82, %cst_35 {dimension_numbers = #tpu.dot_dimension_numbers<[1], [0], [0], [1], [0, 0, 1, 1], [], []>} : vector<8x16xf32>, vector<16x64xf32>, vector<8x64xf32> -> vector<8x64xf32>
    %84 = arith.addf %65, %83 : vector<8x64xf32>
    %85 = vector.extract_strided_slice %26 {offsets = [0, 48], sizes = [8, 16], strides = [1, 1]} : vector<16x64xf32> to vector<8x16xf32>
    %86 = vector.extract_strided_slice %27 {offsets = [0, 48], sizes = [8, 16], strides = [1, 1]} : vector<16x64xf32> to vector<8x16xf32>
    %87 = vector.extract_strided_slice %28 {offsets = [0, 48], sizes = [8, 16], strides = [1, 1]} : vector<16x64xf32> to vector<8x16xf32>
    %cst_36 = arith.constant dense<0.000000e+00> : vector<8x8xf32>
    %88 = tpu.matmul %85, %86, %cst_36 {dimension_numbers = #tpu.dot_dimension_numbers<[1], [1], [0], [0], [0, 0, 1, 0], [], []>} : vector<8x16xf32>, vector<8x16xf32>, vector<8x8xf32> -> vector<8x8xf32>
    %89 = arith.addf %88, %11 : vector<8x8xf32>
    %cst_37 = arith.constant dense<0xFF800000> : vector<8xf32>
    %90 = vector.multi_reduction <maximumf>, %89, %cst_37 [1] : vector<8x8xf32> to vector<8xf32>
    %91 = vector.shape_cast %90 : vector<8xf32> to vector<8x1xf32>
    %92 = vector.broadcast %91 : vector<8x1xf32> to vector<8x8xf32>
    %93 = arith.subf %89, %92 : vector<8x8xf32>
    %94 = math.exp %93 : vector<8x8xf32>
    %cst_38 = arith.constant dense<0.000000e+00> : vector<8xf32>
    %95 = vector.multi_reduction <add>, %94, %cst_38 [1] : vector<8x8xf32> to vector<8xf32>
    %96 = vector.shape_cast %95 : vector<8xf32> to vector<8x1xf32>
    %97 = tpu.reciprocal %96 {approx = true} : vector<8x1xf32> -> vector<8x1xf32>
    %98 = vector.broadcast %97 : vector<8x1xf32> to vector<8x8xf32>
    %99 = arith.mulf %94, %98 : vector<8x8xf32>
    %cst_39 = arith.constant dense<0.000000e+00> : vector<8x16xf32>
    %100 = tpu.matmul %99, %87, %cst_39 {dimension_numbers = #tpu.dot_dimension_numbers<[1], [0], [0], [1], [0, 0, 1, 1], [], []>} : vector<8x8xf32>, vector<8x16xf32>, vector<8x16xf32> -> vector<8x16xf32>
    %101 = vector.extract_strided_slice %13 {offsets = [48, 0], sizes = [16, 64], strides = [1, 1]} : vector<64x64xf32> to vector<16x64xf32>
    %cst_40 = arith.constant dense<0.000000e+00> : vector<8x64xf32>
    %102 = tpu.matmul %100, %101, %cst_40 {dimension_numbers = #tpu.dot_dimension_numbers<[1], [0], [0], [1], [0, 0, 1, 1], [], []>} : vector<8x16xf32>, vector<16x64xf32>, vector<8x64xf32> -> vector<8x64xf32>
    %103 = arith.addf %84, %102 : vector<8x64xf32>
    %104 = vector.extract_strided_slice %26 {offsets = [8, 0], sizes = [8, 16], strides = [1, 1]} : vector<16x64xf32> to vector<8x16xf32>
    %105 = vector.extract_strided_slice %27 {offsets = [8, 0], sizes = [8, 16], strides = [1, 1]} : vector<16x64xf32> to vector<8x16xf32>
    %106 = vector.extract_strided_slice %28 {offsets = [8, 0], sizes = [8, 16], strides = [1, 1]} : vector<16x64xf32> to vector<8x16xf32>
    %cst_41 = arith.constant dense<0.000000e+00> : vector<8x8xf32>
    %107 = tpu.matmul %104, %105, %cst_41 {dimension_numbers = #tpu.dot_dimension_numbers<[1], [1], [0], [0], [0, 0, 1, 0], [], []>} : vector<8x16xf32>, vector<8x16xf32>, vector<8x8xf32> -> vector<8x8xf32>
    %108 = arith.addf %107, %11 : vector<8x8xf32>
    %cst_42 = arith.constant dense<0xFF800000> : vector<8xf32>
    %109 = vector.multi_reduction <maximumf>, %108, %cst_42 [1] : vector<8x8xf32> to vector<8xf32>
    %110 = vector.shape_cast %109 : vector<8xf32> to vector<8x1xf32>
    %111 = vector.broadcast %110 : vector<8x1xf32> to vector<8x8xf32>
    %112 = arith.subf %108, %111 : vector<8x8xf32>
    %113 = math.exp %112 : vector<8x8xf32>
    %cst_43 = arith.constant dense<0.000000e+00> : vector<8xf32>
    %114 = vector.multi_reduction <add>, %113, %cst_43 [1] : vector<8x8xf32> to vector<8xf32>
    %115 = vector.shape_cast %114 : vector<8xf32> to vector<8x1xf32>
    %116 = tpu.reciprocal %115 {approx = true} : vector<8x1xf32> -> vector<8x1xf32>
    %117 = vector.broadcast %116 : vector<8x1xf32> to vector<8x8xf32>
    %118 = arith.mulf %113, %117 : vector<8x8xf32>
    %cst_44 = arith.constant dense<0.000000e+00> : vector<8x16xf32>
    %119 = tpu.matmul %118, %106, %cst_44 {dimension_numbers = #tpu.dot_dimension_numbers<[1], [0], [0], [1], [0, 0, 1, 1], [], []>} : vector<8x8xf32>, vector<8x16xf32>, vector<8x16xf32> -> vector<8x16xf32>
    %120 = vector.extract_strided_slice %13 {offsets = [0, 0], sizes = [16, 64], strides = [1, 1]} : vector<64x64xf32> to vector<16x64xf32>
    %cst_45 = arith.constant dense<0.000000e+00> : vector<8x64xf32>
    %121 = tpu.matmul %119, %120, %cst_45 {dimension_numbers = #tpu.dot_dimension_numbers<[1], [0], [0], [1], [0, 0, 1, 1], [], []>} : vector<8x16xf32>, vector<16x64xf32>, vector<8x64xf32> -> vector<8x64xf32>
    %122 = vector.extract_strided_slice %26 {offsets = [8, 16], sizes = [8, 16], strides = [1, 1]} : vector<16x64xf32> to vector<8x16xf32>
    %123 = vector.extract_strided_slice %27 {offsets = [8, 16], sizes = [8, 16], strides = [1, 1]} : vector<16x64xf32> to vector<8x16xf32>
    %124 = vector.extract_strided_slice %28 {offsets = [8, 16], sizes = [8, 16], strides = [1, 1]} : vector<16x64xf32> to vector<8x16xf32>
    %cst_46 = arith.constant dense<0.000000e+00> : vector<8x8xf32>
    %125 = tpu.matmul %122, %123, %cst_46 {dimension_numbers = #tpu.dot_dimension_numbers<[1], [1], [0], [0], [0, 0, 1, 0], [], []>} : vector<8x16xf32>, vector<8x16xf32>, vector<8x8xf32> -> vector<8x8xf32>
    %126 = arith.addf %125, %11 : vector<8x8xf32>
    %cst_47 = arith.constant dense<0xFF800000> : vector<8xf32>
    %127 = vector.multi_reduction <maximumf>, %126, %cst_47 [1] : vector<8x8xf32> to vector<8xf32>
    %128 = vector.shape_cast %127 : vector<8xf32> to vector<8x1xf32>
    %129 = vector.broadcast %128 : vector<8x1xf32> to vector<8x8xf32>
    %130 = arith.subf %126, %129 : vector<8x8xf32>
    %131 = math.exp %130 : vector<8x8xf32>
    %cst_48 = arith.constant dense<0.000000e+00> : vector<8xf32>
    %132 = vector.multi_reduction <add>, %131, %cst_48 [1] : vector<8x8xf32> to vector<8xf32>
    %133 = vector.shape_cast %132 : vector<8xf32> to vector<8x1xf32>
    %134 = tpu.reciprocal %133 {approx = true} : vector<8x1xf32> -> vector<8x1xf32>
    %135 = vector.broadcast %134 : vector<8x1xf32> to vector<8x8xf32>
    %136 = arith.mulf %131, %135 : vector<8x8xf32>
    %cst_49 = arith.constant dense<0.000000e+00> : vector<8x16xf32>
    %137 = tpu.matmul %136, %124, %cst_49 {dimension_numbers = #tpu.dot_dimension_numbers<[1], [0], [0], [1], [0, 0, 1, 1], [], []>} : vector<8x8xf32>, vector<8x16xf32>, vector<8x16xf32> -> vector<8x16xf32>
    %138 = vector.extract_strided_slice %13 {offsets = [16, 0], sizes = [16, 64], strides = [1, 1]} : vector<64x64xf32> to vector<16x64xf32>
    %cst_50 = arith.constant dense<0.000000e+00> : vector<8x64xf32>
    %139 = tpu.matmul %137, %138, %cst_50 {dimension_numbers = #tpu.dot_dimension_numbers<[1], [0], [0], [1], [0, 0, 1, 1], [], []>} : vector<8x16xf32>, vector<16x64xf32>, vector<8x64xf32> -> vector<8x64xf32>
    %140 = arith.addf %121, %139 : vector<8x64xf32>
    %141 = vector.extract_strided_slice %26 {offsets = [8, 32], sizes = [8, 16], strides = [1, 1]} : vector<16x64xf32> to vector<8x16xf32>
    %142 = vector.extract_strided_slice %27 {offsets = [8, 32], sizes = [8, 16], strides = [1, 1]} : vector<16x64xf32> to vector<8x16xf32>
    %143 = vector.extract_strided_slice %28 {offsets = [8, 32], sizes = [8, 16], strides = [1, 1]} : vector<16x64xf32> to vector<8x16xf32>
    %cst_51 = arith.constant dense<0.000000e+00> : vector<8x8xf32>
    %144 = tpu.matmul %141, %142, %cst_51 {dimension_numbers = #tpu.dot_dimension_numbers<[1], [1], [0], [0], [0, 0, 1, 0], [], []>} : vector<8x16xf32>, vector<8x16xf32>, vector<8x8xf32> -> vector<8x8xf32>
    %145 = arith.addf %144, %11 : vector<8x8xf32>
    %cst_52 = arith.constant dense<0xFF800000> : vector<8xf32>
    %146 = vector.multi_reduction <maximumf>, %145, %cst_52 [1] : vector<8x8xf32> to vector<8xf32>
    %147 = vector.shape_cast %146 : vector<8xf32> to vector<8x1xf32>
    %148 = vector.broadcast %147 : vector<8x1xf32> to vector<8x8xf32>
    %149 = arith.subf %145, %148 : vector<8x8xf32>
    %150 = math.exp %149 : vector<8x8xf32>
    %cst_53 = arith.constant dense<0.000000e+00> : vector<8xf32>
    %151 = vector.multi_reduction <add>, %150, %cst_53 [1] : vector<8x8xf32> to vector<8xf32>
    %152 = vector.shape_cast %151 : vector<8xf32> to vector<8x1xf32>
    %153 = tpu.reciprocal %152 {approx = true} : vector<8x1xf32> -> vector<8x1xf32>
    %154 = vector.broadcast %153 : vector<8x1xf32> to vector<8x8xf32>
    %155 = arith.mulf %150, %154 : vector<8x8xf32>
    %cst_54 = arith.constant dense<0.000000e+00> : vector<8x16xf32>
    %156 = tpu.matmul %155, %143, %cst_54 {dimension_numbers = #tpu.dot_dimension_numbers<[1], [0], [0], [1], [0, 0, 1, 1], [], []>} : vector<8x8xf32>, vector<8x16xf32>, vector<8x16xf32> -> vector<8x16xf32>
    %157 = vector.extract_strided_slice %13 {offsets = [32, 0], sizes = [16, 64], strides = [1, 1]} : vector<64x64xf32> to vector<16x64xf32>
    %cst_55 = arith.constant dense<0.000000e+00> : vector<8x64xf32>
    %158 = tpu.matmul %156, %157, %cst_55 {dimension_numbers = #tpu.dot_dimension_numbers<[1], [0], [0], [1], [0, 0, 1, 1], [], []>} : vector<8x16xf32>, vector<16x64xf32>, vector<8x64xf32> -> vector<8x64xf32>
    %159 = arith.addf %140, %158 : vector<8x64xf32>
    %160 = vector.extract_strided_slice %26 {offsets = [8, 48], sizes = [8, 16], strides = [1, 1]} : vector<16x64xf32> to vector<8x16xf32>
    %161 = vector.extract_strided_slice %27 {offsets = [8, 48], sizes = [8, 16], strides = [1, 1]} : vector<16x64xf32> to vector<8x16xf32>
    %162 = vector.extract_strided_slice %28 {offsets = [8, 48], sizes = [8, 16], strides = [1, 1]} : vector<16x64xf32> to vector<8x16xf32>
    %cst_56 = arith.constant dense<0.000000e+00> : vector<8x8xf32>
    %163 = tpu.matmul %160, %161, %cst_56 {dimension_numbers = #tpu.dot_dimension_numbers<[1], [1], [0], [0], [0, 0, 1, 0], [], []>} : vector<8x16xf32>, vector<8x16xf32>, vector<8x8xf32> -> vector<8x8xf32>
    %164 = arith.addf %163, %11 : vector<8x8xf32>
    %cst_57 = arith.constant dense<0xFF800000> : vector<8xf32>
    %165 = vector.multi_reduction <maximumf>, %164, %cst_57 [1] : vector<8x8xf32> to vector<8xf32>
    %166 = vector.shape_cast %165 : vector<8xf32> to vector<8x1xf32>
    %167 = vector.broadcast %166 : vector<8x1xf32> to vector<8x8xf32>
    %168 = arith.subf %164, %167 : vector<8x8xf32>
    %169 = math.exp %168 : vector<8x8xf32>
    %cst_58 = arith.constant dense<0.000000e+00> : vector<8xf32>
    %170 = vector.multi_reduction <add>, %169, %cst_58 [1] : vector<8x8xf32> to vector<8xf32>
    %171 = vector.shape_cast %170 : vector<8xf32> to vector<8x1xf32>
    %172 = tpu.reciprocal %171 {approx = true} : vector<8x1xf32> -> vector<8x1xf32>
    %173 = vector.broadcast %172 : vector<8x1xf32> to vector<8x8xf32>
    %174 = arith.mulf %169, %173 : vector<8x8xf32>
    %cst_59 = arith.constant dense<0.000000e+00> : vector<8x16xf32>
    %175 = tpu.matmul %174, %162, %cst_59 {dimension_numbers = #tpu.dot_dimension_numbers<[1], [0], [0], [1], [0, 0, 1, 1], [], []>} : vector<8x8xf32>, vector<8x16xf32>, vector<8x16xf32> -> vector<8x16xf32>
    %176 = vector.extract_strided_slice %13 {offsets = [48, 0], sizes = [16, 64], strides = [1, 1]} : vector<64x64xf32> to vector<16x64xf32>
    %cst_60 = arith.constant dense<0.000000e+00> : vector<8x64xf32>
    %177 = tpu.matmul %175, %176, %cst_60 {dimension_numbers = #tpu.dot_dimension_numbers<[1], [0], [0], [1], [0, 0, 1, 1], [], []>} : vector<8x16xf32>, vector<16x64xf32>, vector<8x64xf32> -> vector<8x64xf32>
    %178 = arith.addf %159, %177 : vector<8x64xf32>
    %179 = tpu.concatenate %103, %178 in 0 : vector<8x64xf32>, vector<8x64xf32> -> vector<16x64xf32>
    %c8 = arith.constant 8 : index
    %c0_61 = arith.constant 0 : index
    %180 = vector.load %arg6[%c8, %c0_61] : memref<22x64xf32, #tpu.memory_space<vmem>>, vector<1x64xf32>
    %181 = vector.broadcast %180 : vector<1x64xf32> to vector<16x64xf32>
    %182 = arith.addf %179, %181 : vector<16x64xf32>
    %183 = arith.addf %5, %182 : vector<16x64xf32>
    %c9 = arith.constant 9 : index
    %c0_62 = arith.constant 0 : index
    %184 = vector.load %arg6[%c9, %c0_62] : memref<22x64xf32, #tpu.memory_space<vmem>>, vector<1x64xf32>
    %c10 = arith.constant 10 : index
    %c0_63 = arith.constant 0 : index
    %185 = vector.load %arg6[%c10, %c0_63] : memref<22x64xf32, #tpu.memory_space<vmem>>, vector<1x64xf32>
    %cst_64 = arith.constant dense<0.000000e+00> : vector<16xf32>
    %186 = vector.multi_reduction <add>, %183, %cst_64 [1] : vector<16x64xf32> to vector<16xf32>
    %187 = vector.shape_cast %186 : vector<16xf32> to vector<16x1xf32>
    %cst_65 = arith.constant 6.400000e+01 : f32
    %188 = vector.broadcast %cst_65 : f32 to vector<16x1xf32>
    %189 = arith.divf %187, %188 : vector<16x1xf32>
    %190 = vector.broadcast %189 : vector<16x1xf32> to vector<16x64xf32>
    %191 = arith.subf %183, %190 : vector<16x64xf32>
    %192 = arith.mulf %191, %191 : vector<16x64xf32>
    %cst_66 = arith.constant dense<0.000000e+00> : vector<16xf32>
    %193 = vector.multi_reduction <add>, %192, %cst_66 [1] : vector<16x64xf32> to vector<16xf32>
    %194 = vector.shape_cast %193 : vector<16xf32> to vector<16x1xf32>
    %cst_67 = arith.constant 6.400000e+01 : f32
    %195 = vector.broadcast %cst_67 : f32 to vector<16x1xf32>
    %196 = arith.divf %194, %195 : vector<16x1xf32>
    %cst_68 = arith.constant 9.99999974E-6 : f32
    %197 = vector.broadcast %cst_68 : f32 to vector<16x1xf32>
    %198 = arith.addf %196, %197 : vector<16x1xf32>
    %199 = math.rsqrt %198 : vector<16x1xf32>
    %200 = vector.broadcast %199 : vector<16x1xf32> to vector<16x64xf32>
    %201 = arith.mulf %191, %200 : vector<16x64xf32>
    %202 = vector.broadcast %184 : vector<1x64xf32> to vector<16x64xf32>
    %203 = arith.mulf %201, %202 : vector<16x64xf32>
    %204 = vector.broadcast %185 : vector<1x64xf32> to vector<16x64xf32>
    %205 = arith.addf %203, %204 : vector<16x64xf32>
    %cst_69 = arith.constant dense<0.000000e+00> : vector<16x64xf32>
    %206 = tpu.matmul %205, %15, %cst_69 {dimension_numbers = #tpu.dot_dimension_numbers<[1], [0], [0], [1], [0, 0, 1, 1], [], []>} : vector<16x64xf32>, vector<64x64xf32>, vector<16x64xf32> -> vector<16x64xf32>
    %c13 = arith.constant 13 : index
    %c0_70 = arith.constant 0 : index
    %207 = vector.load %arg6[%c13, %c0_70] : memref<22x64xf32, #tpu.memory_space<vmem>>, vector<1x64xf32>
    %208 = vector.broadcast %207 : vector<1x64xf32> to vector<16x64xf32>
    %209 = arith.addf %206, %208 : vector<16x64xf32>
    %cst_71 = arith.constant 0.000000e+00 : f32
    %210 = vector.broadcast %cst_71 : f32 to vector<16x64xf32>
    %211 = arith.maximumf %209, %210 : vector<16x64xf32>
    %cst_72 = arith.constant dense<0.000000e+00> : vector<16x64xf32>
    %212 = tpu.matmul %211, %17, %cst_72 {dimension_numbers = #tpu.dot_dimension_numbers<[1], [0], [0], [1], [0, 0, 1, 1], [], []>} : vector<16x64xf32>, vector<64x64xf32>, vector<16x64xf32> -> vector<16x64xf32>
    %c14 = arith.constant 14 : index
    %c0_73 = arith.constant 0 : index
    %213 = vector.load %arg6[%c14, %c0_73] : memref<22x64xf32, #tpu.memory_space<vmem>>, vector<1x64xf32>
    %214 = vector.broadcast %213 : vector<1x64xf32> to vector<16x64xf32>
    %215 = arith.addf %212, %214 : vector<16x64xf32>
    %216 = arith.addf %205, %215 : vector<16x64xf32>
    %c11 = arith.constant 11 : index
    %c0_74 = arith.constant 0 : index
    %217 = vector.load %arg6[%c11, %c0_74] : memref<22x64xf32, #tpu.memory_space<vmem>>, vector<1x64xf32>
    %c12 = arith.constant 12 : index
    %c0_75 = arith.constant 0 : index
    %218 = vector.load %arg6[%c12, %c0_75] : memref<22x64xf32, #tpu.memory_space<vmem>>, vector<1x64xf32>
    %cst_76 = arith.constant dense<0.000000e+00> : vector<16xf32>
    %219 = vector.multi_reduction <add>, %216, %cst_76 [1] : vector<16x64xf32> to vector<16xf32>
    %220 = vector.shape_cast %219 : vector<16xf32> to vector<16x1xf32>
    %cst_77 = arith.constant 6.400000e+01 : f32
    %221 = vector.broadcast %cst_77 : f32 to vector<16x1xf32>
    %222 = arith.divf %220, %221 : vector<16x1xf32>
    %223 = vector.broadcast %222 : vector<16x1xf32> to vector<16x64xf32>
    %224 = arith.subf %216, %223 : vector<16x64xf32>
    %225 = arith.mulf %224, %224 : vector<16x64xf32>
    %cst_78 = arith.constant dense<0.000000e+00> : vector<16xf32>
    %226 = vector.multi_reduction <add>, %225, %cst_78 [1] : vector<16x64xf32> to vector<16xf32>
    %227 = vector.shape_cast %226 : vector<16xf32> to vector<16x1xf32>
    %cst_79 = arith.constant 6.400000e+01 : f32
    %228 = vector.broadcast %cst_79 : f32 to vector<16x1xf32>
    %229 = arith.divf %227, %228 : vector<16x1xf32>
    %cst_80 = arith.constant 9.99999974E-6 : f32
    %230 = vector.broadcast %cst_80 : f32 to vector<16x1xf32>
    %231 = arith.addf %229, %230 : vector<16x1xf32>
    %232 = math.rsqrt %231 : vector<16x1xf32>
    %233 = vector.broadcast %232 : vector<16x1xf32> to vector<16x64xf32>
    %234 = arith.mulf %224, %233 : vector<16x64xf32>
    %235 = vector.broadcast %217 : vector<1x64xf32> to vector<16x64xf32>
    %236 = arith.mulf %234, %235 : vector<16x64xf32>
    %237 = vector.broadcast %218 : vector<1x64xf32> to vector<16x64xf32>
    %238 = arith.addf %236, %237 : vector<16x64xf32>
    %c3 = arith.constant 3 : index
    %c0_81 = arith.constant 0 : index
    %c0_82 = arith.constant 0 : index
    %239 = vector.load %arg4[%c3, %c0_81, %c0_82] : memref<6x64x64xf32, #tpu.memory_space<vmem>>, vector<1x64x64xf32>
    %240 = vector.shape_cast %239 : vector<1x64x64xf32> to vector<64x64xf32>
    %c4 = arith.constant 4 : index
    %c0_83 = arith.constant 0 : index
    %c0_84 = arith.constant 0 : index
    %241 = vector.load %arg4[%c4, %c0_83, %c0_84] : memref<6x64x64xf32, #tpu.memory_space<vmem>>, vector<1x64x64xf32>
    %242 = vector.shape_cast %241 : vector<1x64x64xf32> to vector<64x64xf32>
    %c5 = arith.constant 5 : index
    %c0_85 = arith.constant 0 : index
    %c0_86 = arith.constant 0 : index
    %243 = vector.load %arg4[%c5, %c0_85, %c0_86] : memref<6x64x64xf32, #tpu.memory_space<vmem>>, vector<1x64x64xf32>
    %244 = vector.shape_cast %243 : vector<1x64x64xf32> to vector<64x64xf32>
    %c1_87 = arith.constant 1 : index
    %c0_88 = arith.constant 0 : index
    %c0_89 = arith.constant 0 : index
    %245 = vector.load %arg2[%c1_87, %c0_88, %c0_89] : memref<2x64x192xf32, #tpu.memory_space<vmem>>, vector<1x64x192xf32>
    %246 = vector.shape_cast %245 : vector<1x64x192xf32> to vector<64x192xf32>
    %cst_90 = arith.constant dense<0.000000e+00> : vector<16x192xf32>
    %247 = tpu.matmul %238, %246, %cst_90 {dimension_numbers = #tpu.dot_dimension_numbers<[1], [0], [0], [1], [0, 0, 1, 1], [], []>} : vector<16x64xf32>, vector<64x192xf32>, vector<16x192xf32> -> vector<16x192xf32>
    %c1_91 = arith.constant 1 : index
    %c0_92 = arith.constant 0 : index
    %248 = vector.load %arg3[%c1_91, %c0_92] : memref<2x192xf32, #tpu.memory_space<vmem>>, vector<1x192xf32>
    %249 = vector.broadcast %248 : vector<1x192xf32> to vector<16x192xf32>
    %250 = arith.addf %247, %249 : vector<16x192xf32>
    %251 = vector.extract_strided_slice %250 {offsets = [0, 0], sizes = [16, 64], strides = [1, 1]} : vector<16x192xf32> to vector<16x64xf32>
    %cst_93 = arith.constant 2.500000e-01 : f32
    %252 = vector.broadcast %cst_93 : f32 to vector<16x64xf32>
    %253 = arith.mulf %251, %252 : vector<16x64xf32>
    %254 = vector.extract_strided_slice %250 {offsets = [0, 64], sizes = [16, 64], strides = [1, 1]} : vector<16x192xf32> to vector<16x64xf32>
    %255 = vector.extract_strided_slice %250 {offsets = [0, 128], sizes = [16, 64], strides = [1, 1]} : vector<16x192xf32> to vector<16x64xf32>
    %256 = vector.extract_strided_slice %253 {offsets = [0, 0], sizes = [8, 16], strides = [1, 1]} : vector<16x64xf32> to vector<8x16xf32>
    %257 = vector.extract_strided_slice %254 {offsets = [0, 0], sizes = [8, 16], strides = [1, 1]} : vector<16x64xf32> to vector<8x16xf32>
    %258 = vector.extract_strided_slice %255 {offsets = [0, 0], sizes = [8, 16], strides = [1, 1]} : vector<16x64xf32> to vector<8x16xf32>
    %cst_94 = arith.constant dense<0.000000e+00> : vector<8x8xf32>
    %259 = tpu.matmul %256, %257, %cst_94 {dimension_numbers = #tpu.dot_dimension_numbers<[1], [1], [0], [0], [0, 0, 1, 0], [], []>} : vector<8x16xf32>, vector<8x16xf32>, vector<8x8xf32> -> vector<8x8xf32>
    %260 = arith.addf %259, %11 : vector<8x8xf32>
    %cst_95 = arith.constant dense<0xFF800000> : vector<8xf32>
    %261 = vector.multi_reduction <maximumf>, %260, %cst_95 [1] : vector<8x8xf32> to vector<8xf32>
    %262 = vector.shape_cast %261 : vector<8xf32> to vector<8x1xf32>
    %263 = vector.broadcast %262 : vector<8x1xf32> to vector<8x8xf32>
    %264 = arith.subf %260, %263 : vector<8x8xf32>
    %265 = math.exp %264 : vector<8x8xf32>
    %cst_96 = arith.constant dense<0.000000e+00> : vector<8xf32>
    %266 = vector.multi_reduction <add>, %265, %cst_96 [1] : vector<8x8xf32> to vector<8xf32>
    %267 = vector.shape_cast %266 : vector<8xf32> to vector<8x1xf32>
    %268 = tpu.reciprocal %267 {approx = true} : vector<8x1xf32> -> vector<8x1xf32>
    %269 = vector.broadcast %268 : vector<8x1xf32> to vector<8x8xf32>
    %270 = arith.mulf %265, %269 : vector<8x8xf32>
    %cst_97 = arith.constant dense<0.000000e+00> : vector<8x16xf32>
    %271 = tpu.matmul %270, %258, %cst_97 {dimension_numbers = #tpu.dot_dimension_numbers<[1], [0], [0], [1], [0, 0, 1, 1], [], []>} : vector<8x8xf32>, vector<8x16xf32>, vector<8x16xf32> -> vector<8x16xf32>
    %272 = vector.extract_strided_slice %240 {offsets = [0, 0], sizes = [16, 64], strides = [1, 1]} : vector<64x64xf32> to vector<16x64xf32>
    %cst_98 = arith.constant dense<0.000000e+00> : vector<8x64xf32>
    %273 = tpu.matmul %271, %272, %cst_98 {dimension_numbers = #tpu.dot_dimension_numbers<[1], [0], [0], [1], [0, 0, 1, 1], [], []>} : vector<8x16xf32>, vector<16x64xf32>, vector<8x64xf32> -> vector<8x64xf32>
    %274 = vector.extract_strided_slice %253 {offsets = [0, 16], sizes = [8, 16], strides = [1, 1]} : vector<16x64xf32> to vector<8x16xf32>
    %275 = vector.extract_strided_slice %254 {offsets = [0, 16], sizes = [8, 16], strides = [1, 1]} : vector<16x64xf32> to vector<8x16xf32>
    %276 = vector.extract_strided_slice %255 {offsets = [0, 16], sizes = [8, 16], strides = [1, 1]} : vector<16x64xf32> to vector<8x16xf32>
    %cst_99 = arith.constant dense<0.000000e+00> : vector<8x8xf32>
    %277 = tpu.matmul %274, %275, %cst_99 {dimension_numbers = #tpu.dot_dimension_numbers<[1], [1], [0], [0], [0, 0, 1, 0], [], []>} : vector<8x16xf32>, vector<8x16xf32>, vector<8x8xf32> -> vector<8x8xf32>
    %278 = arith.addf %277, %11 : vector<8x8xf32>
    %cst_100 = arith.constant dense<0xFF800000> : vector<8xf32>
    %279 = vector.multi_reduction <maximumf>, %278, %cst_100 [1] : vector<8x8xf32> to vector<8xf32>
    %280 = vector.shape_cast %279 : vector<8xf32> to vector<8x1xf32>
    %281 = vector.broadcast %280 : vector<8x1xf32> to vector<8x8xf32>
    %282 = arith.subf %278, %281 : vector<8x8xf32>
    %283 = math.exp %282 : vector<8x8xf32>
    %cst_101 = arith.constant dense<0.000000e+00> : vector<8xf32>
    %284 = vector.multi_reduction <add>, %283, %cst_101 [1] : vector<8x8xf32> to vector<8xf32>
    %285 = vector.shape_cast %284 : vector<8xf32> to vector<8x1xf32>
    %286 = tpu.reciprocal %285 {approx = true} : vector<8x1xf32> -> vector<8x1xf32>
    %287 = vector.broadcast %286 : vector<8x1xf32> to vector<8x8xf32>
    %288 = arith.mulf %283, %287 : vector<8x8xf32>
    %cst_102 = arith.constant dense<0.000000e+00> : vector<8x16xf32>
    %289 = tpu.matmul %288, %276, %cst_102 {dimension_numbers = #tpu.dot_dimension_numbers<[1], [0], [0], [1], [0, 0, 1, 1], [], []>} : vector<8x8xf32>, vector<8x16xf32>, vector<8x16xf32> -> vector<8x16xf32>
    %290 = vector.extract_strided_slice %240 {offsets = [16, 0], sizes = [16, 64], strides = [1, 1]} : vector<64x64xf32> to vector<16x64xf32>
    %cst_103 = arith.constant dense<0.000000e+00> : vector<8x64xf32>
    %291 = tpu.matmul %289, %290, %cst_103 {dimension_numbers = #tpu.dot_dimension_numbers<[1], [0], [0], [1], [0, 0, 1, 1], [], []>} : vector<8x16xf32>, vector<16x64xf32>, vector<8x64xf32> -> vector<8x64xf32>
    %292 = arith.addf %273, %291 : vector<8x64xf32>
    %293 = vector.extract_strided_slice %253 {offsets = [0, 32], sizes = [8, 16], strides = [1, 1]} : vector<16x64xf32> to vector<8x16xf32>
    %294 = vector.extract_strided_slice %254 {offsets = [0, 32], sizes = [8, 16], strides = [1, 1]} : vector<16x64xf32> to vector<8x16xf32>
    %295 = vector.extract_strided_slice %255 {offsets = [0, 32], sizes = [8, 16], strides = [1, 1]} : vector<16x64xf32> to vector<8x16xf32>
    %cst_104 = arith.constant dense<0.000000e+00> : vector<8x8xf32>
    %296 = tpu.matmul %293, %294, %cst_104 {dimension_numbers = #tpu.dot_dimension_numbers<[1], [1], [0], [0], [0, 0, 1, 0], [], []>} : vector<8x16xf32>, vector<8x16xf32>, vector<8x8xf32> -> vector<8x8xf32>
    %297 = arith.addf %296, %11 : vector<8x8xf32>
    %cst_105 = arith.constant dense<0xFF800000> : vector<8xf32>
    %298 = vector.multi_reduction <maximumf>, %297, %cst_105 [1] : vector<8x8xf32> to vector<8xf32>
    %299 = vector.shape_cast %298 : vector<8xf32> to vector<8x1xf32>
    %300 = vector.broadcast %299 : vector<8x1xf32> to vector<8x8xf32>
    %301 = arith.subf %297, %300 : vector<8x8xf32>
    %302 = math.exp %301 : vector<8x8xf32>
    %cst_106 = arith.constant dense<0.000000e+00> : vector<8xf32>
    %303 = vector.multi_reduction <add>, %302, %cst_106 [1] : vector<8x8xf32> to vector<8xf32>
    %304 = vector.shape_cast %303 : vector<8xf32> to vector<8x1xf32>
    %305 = tpu.reciprocal %304 {approx = true} : vector<8x1xf32> -> vector<8x1xf32>
    %306 = vector.broadcast %305 : vector<8x1xf32> to vector<8x8xf32>
    %307 = arith.mulf %302, %306 : vector<8x8xf32>
    %cst_107 = arith.constant dense<0.000000e+00> : vector<8x16xf32>
    %308 = tpu.matmul %307, %295, %cst_107 {dimension_numbers = #tpu.dot_dimension_numbers<[1], [0], [0], [1], [0, 0, 1, 1], [], []>} : vector<8x8xf32>, vector<8x16xf32>, vector<8x16xf32> -> vector<8x16xf32>
    %309 = vector.extract_strided_slice %240 {offsets = [32, 0], sizes = [16, 64], strides = [1, 1]} : vector<64x64xf32> to vector<16x64xf32>
    %cst_108 = arith.constant dense<0.000000e+00> : vector<8x64xf32>
    %310 = tpu.matmul %308, %309, %cst_108 {dimension_numbers = #tpu.dot_dimension_numbers<[1], [0], [0], [1], [0, 0, 1, 1], [], []>} : vector<8x16xf32>, vector<16x64xf32>, vector<8x64xf32> -> vector<8x64xf32>
    %311 = arith.addf %292, %310 : vector<8x64xf32>
    %312 = vector.extract_strided_slice %253 {offsets = [0, 48], sizes = [8, 16], strides = [1, 1]} : vector<16x64xf32> to vector<8x16xf32>
    %313 = vector.extract_strided_slice %254 {offsets = [0, 48], sizes = [8, 16], strides = [1, 1]} : vector<16x64xf32> to vector<8x16xf32>
    %314 = vector.extract_strided_slice %255 {offsets = [0, 48], sizes = [8, 16], strides = [1, 1]} : vector<16x64xf32> to vector<8x16xf32>
    %cst_109 = arith.constant dense<0.000000e+00> : vector<8x8xf32>
    %315 = tpu.matmul %312, %313, %cst_109 {dimension_numbers = #tpu.dot_dimension_numbers<[1], [1], [0], [0], [0, 0, 1, 0], [], []>} : vector<8x16xf32>, vector<8x16xf32>, vector<8x8xf32> -> vector<8x8xf32>
    %316 = arith.addf %315, %11 : vector<8x8xf32>
    %cst_110 = arith.constant dense<0xFF800000> : vector<8xf32>
    %317 = vector.multi_reduction <maximumf>, %316, %cst_110 [1] : vector<8x8xf32> to vector<8xf32>
    %318 = vector.shape_cast %317 : vector<8xf32> to vector<8x1xf32>
    %319 = vector.broadcast %318 : vector<8x1xf32> to vector<8x8xf32>
    %320 = arith.subf %316, %319 : vector<8x8xf32>
    %321 = math.exp %320 : vector<8x8xf32>
    %cst_111 = arith.constant dense<0.000000e+00> : vector<8xf32>
    %322 = vector.multi_reduction <add>, %321, %cst_111 [1] : vector<8x8xf32> to vector<8xf32>
    %323 = vector.shape_cast %322 : vector<8xf32> to vector<8x1xf32>
    %324 = tpu.reciprocal %323 {approx = true} : vector<8x1xf32> -> vector<8x1xf32>
    %325 = vector.broadcast %324 : vector<8x1xf32> to vector<8x8xf32>
    %326 = arith.mulf %321, %325 : vector<8x8xf32>
    %cst_112 = arith.constant dense<0.000000e+00> : vector<8x16xf32>
    %327 = tpu.matmul %326, %314, %cst_112 {dimension_numbers = #tpu.dot_dimension_numbers<[1], [0], [0], [1], [0, 0, 1, 1], [], []>} : vector<8x8xf32>, vector<8x16xf32>, vector<8x16xf32> -> vector<8x16xf32>
    %328 = vector.extract_strided_slice %240 {offsets = [48, 0], sizes = [16, 64], strides = [1, 1]} : vector<64x64xf32> to vector<16x64xf32>
    %cst_113 = arith.constant dense<0.000000e+00> : vector<8x64xf32>
    %329 = tpu.matmul %327, %328, %cst_113 {dimension_numbers = #tpu.dot_dimension_numbers<[1], [0], [0], [1], [0, 0, 1, 1], [], []>} : vector<8x16xf32>, vector<16x64xf32>, vector<8x64xf32> -> vector<8x64xf32>
    %330 = arith.addf %311, %329 : vector<8x64xf32>
    %331 = vector.extract_strided_slice %253 {offsets = [8, 0], sizes = [8, 16], strides = [1, 1]} : vector<16x64xf32> to vector<8x16xf32>
    %332 = vector.extract_strided_slice %254 {offsets = [8, 0], sizes = [8, 16], strides = [1, 1]} : vector<16x64xf32> to vector<8x16xf32>
    %333 = vector.extract_strided_slice %255 {offsets = [8, 0], sizes = [8, 16], strides = [1, 1]} : vector<16x64xf32> to vector<8x16xf32>
    %cst_114 = arith.constant dense<0.000000e+00> : vector<8x8xf32>
    %334 = tpu.matmul %331, %332, %cst_114 {dimension_numbers = #tpu.dot_dimension_numbers<[1], [1], [0], [0], [0, 0, 1, 0], [], []>} : vector<8x16xf32>, vector<8x16xf32>, vector<8x8xf32> -> vector<8x8xf32>
    %335 = arith.addf %334, %11 : vector<8x8xf32>
    %cst_115 = arith.constant dense<0xFF800000> : vector<8xf32>
    %336 = vector.multi_reduction <maximumf>, %335, %cst_115 [1] : vector<8x8xf32> to vector<8xf32>
    %337 = vector.shape_cast %336 : vector<8xf32> to vector<8x1xf32>
    %338 = vector.broadcast %337 : vector<8x1xf32> to vector<8x8xf32>
    %339 = arith.subf %335, %338 : vector<8x8xf32>
    %340 = math.exp %339 : vector<8x8xf32>
    %cst_116 = arith.constant dense<0.000000e+00> : vector<8xf32>
    %341 = vector.multi_reduction <add>, %340, %cst_116 [1] : vector<8x8xf32> to vector<8xf32>
    %342 = vector.shape_cast %341 : vector<8xf32> to vector<8x1xf32>
    %343 = tpu.reciprocal %342 {approx = true} : vector<8x1xf32> -> vector<8x1xf32>
    %344 = vector.broadcast %343 : vector<8x1xf32> to vector<8x8xf32>
    %345 = arith.mulf %340, %344 : vector<8x8xf32>
    %cst_117 = arith.constant dense<0.000000e+00> : vector<8x16xf32>
    %346 = tpu.matmul %345, %333, %cst_117 {dimension_numbers = #tpu.dot_dimension_numbers<[1], [0], [0], [1], [0, 0, 1, 1], [], []>} : vector<8x8xf32>, vector<8x16xf32>, vector<8x16xf32> -> vector<8x16xf32>
    %347 = vector.extract_strided_slice %240 {offsets = [0, 0], sizes = [16, 64], strides = [1, 1]} : vector<64x64xf32> to vector<16x64xf32>
    %cst_118 = arith.constant dense<0.000000e+00> : vector<8x64xf32>
    %348 = tpu.matmul %346, %347, %cst_118 {dimension_numbers = #tpu.dot_dimension_numbers<[1], [0], [0], [1], [0, 0, 1, 1], [], []>} : vector<8x16xf32>, vector<16x64xf32>, vector<8x64xf32> -> vector<8x64xf32>
    %349 = vector.extract_strided_slice %253 {offsets = [8, 16], sizes = [8, 16], strides = [1, 1]} : vector<16x64xf32> to vector<8x16xf32>
    %350 = vector.extract_strided_slice %254 {offsets = [8, 16], sizes = [8, 16], strides = [1, 1]} : vector<16x64xf32> to vector<8x16xf32>
    %351 = vector.extract_strided_slice %255 {offsets = [8, 16], sizes = [8, 16], strides = [1, 1]} : vector<16x64xf32> to vector<8x16xf32>
    %cst_119 = arith.constant dense<0.000000e+00> : vector<8x8xf32>
    %352 = tpu.matmul %349, %350, %cst_119 {dimension_numbers = #tpu.dot_dimension_numbers<[1], [1], [0], [0], [0, 0, 1, 0], [], []>} : vector<8x16xf32>, vector<8x16xf32>, vector<8x8xf32> -> vector<8x8xf32>
    %353 = arith.addf %352, %11 : vector<8x8xf32>
    %cst_120 = arith.constant dense<0xFF800000> : vector<8xf32>
    %354 = vector.multi_reduction <maximumf>, %353, %cst_120 [1] : vector<8x8xf32> to vector<8xf32>
    %355 = vector.shape_cast %354 : vector<8xf32> to vector<8x1xf32>
    %356 = vector.broadcast %355 : vector<8x1xf32> to vector<8x8xf32>
    %357 = arith.subf %353, %356 : vector<8x8xf32>
    %358 = math.exp %357 : vector<8x8xf32>
    %cst_121 = arith.constant dense<0.000000e+00> : vector<8xf32>
    %359 = vector.multi_reduction <add>, %358, %cst_121 [1] : vector<8x8xf32> to vector<8xf32>
    %360 = vector.shape_cast %359 : vector<8xf32> to vector<8x1xf32>
    %361 = tpu.reciprocal %360 {approx = true} : vector<8x1xf32> -> vector<8x1xf32>
    %362 = vector.broadcast %361 : vector<8x1xf32> to vector<8x8xf32>
    %363 = arith.mulf %358, %362 : vector<8x8xf32>
    %cst_122 = arith.constant dense<0.000000e+00> : vector<8x16xf32>
    %364 = tpu.matmul %363, %351, %cst_122 {dimension_numbers = #tpu.dot_dimension_numbers<[1], [0], [0], [1], [0, 0, 1, 1], [], []>} : vector<8x8xf32>, vector<8x16xf32>, vector<8x16xf32> -> vector<8x16xf32>
    %365 = vector.extract_strided_slice %240 {offsets = [16, 0], sizes = [16, 64], strides = [1, 1]} : vector<64x64xf32> to vector<16x64xf32>
    %cst_123 = arith.constant dense<0.000000e+00> : vector<8x64xf32>
    %366 = tpu.matmul %364, %365, %cst_123 {dimension_numbers = #tpu.dot_dimension_numbers<[1], [0], [0], [1], [0, 0, 1, 1], [], []>} : vector<8x16xf32>, vector<16x64xf32>, vector<8x64xf32> -> vector<8x64xf32>
    %367 = arith.addf %348, %366 : vector<8x64xf32>
    %368 = vector.extract_strided_slice %253 {offsets = [8, 32], sizes = [8, 16], strides = [1, 1]} : vector<16x64xf32> to vector<8x16xf32>
    %369 = vector.extract_strided_slice %254 {offsets = [8, 32], sizes = [8, 16], strides = [1, 1]} : vector<16x64xf32> to vector<8x16xf32>
    %370 = vector.extract_strided_slice %255 {offsets = [8, 32], sizes = [8, 16], strides = [1, 1]} : vector<16x64xf32> to vector<8x16xf32>
    %cst_124 = arith.constant dense<0.000000e+00> : vector<8x8xf32>
    %371 = tpu.matmul %368, %369, %cst_124 {dimension_numbers = #tpu.dot_dimension_numbers<[1], [1], [0], [0], [0, 0, 1, 0], [], []>} : vector<8x16xf32>, vector<8x16xf32>, vector<8x8xf32> -> vector<8x8xf32>
    %372 = arith.addf %371, %11 : vector<8x8xf32>
    %cst_125 = arith.constant dense<0xFF800000> : vector<8xf32>
    %373 = vector.multi_reduction <maximumf>, %372, %cst_125 [1] : vector<8x8xf32> to vector<8xf32>
    %374 = vector.shape_cast %373 : vector<8xf32> to vector<8x1xf32>
    %375 = vector.broadcast %374 : vector<8x1xf32> to vector<8x8xf32>
    %376 = arith.subf %372, %375 : vector<8x8xf32>
    %377 = math.exp %376 : vector<8x8xf32>
    %cst_126 = arith.constant dense<0.000000e+00> : vector<8xf32>
    %378 = vector.multi_reduction <add>, %377, %cst_126 [1] : vector<8x8xf32> to vector<8xf32>
    %379 = vector.shape_cast %378 : vector<8xf32> to vector<8x1xf32>
    %380 = tpu.reciprocal %379 {approx = true} : vector<8x1xf32> -> vector<8x1xf32>
    %381 = vector.broadcast %380 : vector<8x1xf32> to vector<8x8xf32>
    %382 = arith.mulf %377, %381 : vector<8x8xf32>
    %cst_127 = arith.constant dense<0.000000e+00> : vector<8x16xf32>
    %383 = tpu.matmul %382, %370, %cst_127 {dimension_numbers = #tpu.dot_dimension_numbers<[1], [0], [0], [1], [0, 0, 1, 1], [], []>} : vector<8x8xf32>, vector<8x16xf32>, vector<8x16xf32> -> vector<8x16xf32>
    %384 = vector.extract_strided_slice %240 {offsets = [32, 0], sizes = [16, 64], strides = [1, 1]} : vector<64x64xf32> to vector<16x64xf32>
    %cst_128 = arith.constant dense<0.000000e+00> : vector<8x64xf32>
    %385 = tpu.matmul %383, %384, %cst_128 {dimension_numbers = #tpu.dot_dimension_numbers<[1], [0], [0], [1], [0, 0, 1, 1], [], []>} : vector<8x16xf32>, vector<16x64xf32>, vector<8x64xf32> -> vector<8x64xf32>
    %386 = arith.addf %367, %385 : vector<8x64xf32>
    %387 = vector.extract_strided_slice %253 {offsets = [8, 48], sizes = [8, 16], strides = [1, 1]} : vector<16x64xf32> to vector<8x16xf32>
    %388 = vector.extract_strided_slice %254 {offsets = [8, 48], sizes = [8, 16], strides = [1, 1]} : vector<16x64xf32> to vector<8x16xf32>
    %389 = vector.extract_strided_slice %255 {offsets = [8, 48], sizes = [8, 16], strides = [1, 1]} : vector<16x64xf32> to vector<8x16xf32>
    %cst_129 = arith.constant dense<0.000000e+00> : vector<8x8xf32>
    %390 = tpu.matmul %387, %388, %cst_129 {dimension_numbers = #tpu.dot_dimension_numbers<[1], [1], [0], [0], [0, 0, 1, 0], [], []>} : vector<8x16xf32>, vector<8x16xf32>, vector<8x8xf32> -> vector<8x8xf32>
    %391 = arith.addf %390, %11 : vector<8x8xf32>
    %cst_130 = arith.constant dense<0xFF800000> : vector<8xf32>
    %392 = vector.multi_reduction <maximumf>, %391, %cst_130 [1] : vector<8x8xf32> to vector<8xf32>
    %393 = vector.shape_cast %392 : vector<8xf32> to vector<8x1xf32>
    %394 = vector.broadcast %393 : vector<8x1xf32> to vector<8x8xf32>
    %395 = arith.subf %391, %394 : vector<8x8xf32>
    %396 = math.exp %395 : vector<8x8xf32>
    %cst_131 = arith.constant dense<0.000000e+00> : vector<8xf32>
    %397 = vector.multi_reduction <add>, %396, %cst_131 [1] : vector<8x8xf32> to vector<8xf32>
    %398 = vector.shape_cast %397 : vector<8xf32> to vector<8x1xf32>
    %399 = tpu.reciprocal %398 {approx = true} : vector<8x1xf32> -> vector<8x1xf32>
    %400 = vector.broadcast %399 : vector<8x1xf32> to vector<8x8xf32>
    %401 = arith.mulf %396, %400 : vector<8x8xf32>
    %cst_132 = arith.constant dense<0.000000e+00> : vector<8x16xf32>
    %402 = tpu.matmul %401, %389, %cst_132 {dimension_numbers = #tpu.dot_dimension_numbers<[1], [0], [0], [1], [0, 0, 1, 1], [], []>} : vector<8x8xf32>, vector<8x16xf32>, vector<8x16xf32> -> vector<8x16xf32>
    %403 = vector.extract_strided_slice %240 {offsets = [48, 0], sizes = [16, 64], strides = [1, 1]} : vector<64x64xf32> to vector<16x64xf32>
    %cst_133 = arith.constant dense<0.000000e+00> : vector<8x64xf32>
    %404 = tpu.matmul %402, %403, %cst_133 {dimension_numbers = #tpu.dot_dimension_numbers<[1], [0], [0], [1], [0, 0, 1, 1], [], []>} : vector<8x16xf32>, vector<16x64xf32>, vector<8x64xf32> -> vector<8x64xf32>
    %405 = arith.addf %386, %404 : vector<8x64xf32>
    %406 = tpu.concatenate %330, %405 in 0 : vector<8x64xf32>, vector<8x64xf32> -> vector<16x64xf32>
    %c15 = arith.constant 15 : index
    %c0_134 = arith.constant 0 : index
    %407 = vector.load %arg6[%c15, %c0_134] : memref<22x64xf32, #tpu.memory_space<vmem>>, vector<1x64xf32>
    %408 = vector.broadcast %407 : vector<1x64xf32> to vector<16x64xf32>
    %409 = arith.addf %406, %408 : vector<16x64xf32>
    %410 = arith.addf %238, %409 : vector<16x64xf32>
    %c16 = arith.constant 16 : index
    %c0_135 = arith.constant 0 : index
    %411 = vector.load %arg6[%c16, %c0_135] : memref<22x64xf32, #tpu.memory_space<vmem>>, vector<1x64xf32>
    %c17 = arith.constant 17 : index
    %c0_136 = arith.constant 0 : index
    %412 = vector.load %arg6[%c17, %c0_136] : memref<22x64xf32, #tpu.memory_space<vmem>>, vector<1x64xf32>
    %cst_137 = arith.constant dense<0.000000e+00> : vector<16xf32>
    %413 = vector.multi_reduction <add>, %410, %cst_137 [1] : vector<16x64xf32> to vector<16xf32>
    %414 = vector.shape_cast %413 : vector<16xf32> to vector<16x1xf32>
    %cst_138 = arith.constant 6.400000e+01 : f32
    %415 = vector.broadcast %cst_138 : f32 to vector<16x1xf32>
    %416 = arith.divf %414, %415 : vector<16x1xf32>
    %417 = vector.broadcast %416 : vector<16x1xf32> to vector<16x64xf32>
    %418 = arith.subf %410, %417 : vector<16x64xf32>
    %419 = arith.mulf %418, %418 : vector<16x64xf32>
    %cst_139 = arith.constant dense<0.000000e+00> : vector<16xf32>
    %420 = vector.multi_reduction <add>, %419, %cst_139 [1] : vector<16x64xf32> to vector<16xf32>
    %421 = vector.shape_cast %420 : vector<16xf32> to vector<16x1xf32>
    %cst_140 = arith.constant 6.400000e+01 : f32
    %422 = vector.broadcast %cst_140 : f32 to vector<16x1xf32>
    %423 = arith.divf %421, %422 : vector<16x1xf32>
    %cst_141 = arith.constant 9.99999974E-6 : f32
    %424 = vector.broadcast %cst_141 : f32 to vector<16x1xf32>
    %425 = arith.addf %423, %424 : vector<16x1xf32>
    %426 = math.rsqrt %425 : vector<16x1xf32>
    %427 = vector.broadcast %426 : vector<16x1xf32> to vector<16x64xf32>
    %428 = arith.mulf %418, %427 : vector<16x64xf32>
    %429 = vector.broadcast %411 : vector<1x64xf32> to vector<16x64xf32>
    %430 = arith.mulf %428, %429 : vector<16x64xf32>
    %431 = vector.broadcast %412 : vector<1x64xf32> to vector<16x64xf32>
    %432 = arith.addf %430, %431 : vector<16x64xf32>
    %cst_142 = arith.constant dense<0.000000e+00> : vector<16x64xf32>
    %433 = tpu.matmul %432, %242, %cst_142 {dimension_numbers = #tpu.dot_dimension_numbers<[1], [0], [0], [1], [0, 0, 1, 1], [], []>} : vector<16x64xf32>, vector<64x64xf32>, vector<16x64xf32> -> vector<16x64xf32>
    %c20 = arith.constant 20 : index
    %c0_143 = arith.constant 0 : index
    %434 = vector.load %arg6[%c20, %c0_143] : memref<22x64xf32, #tpu.memory_space<vmem>>, vector<1x64xf32>
    %435 = vector.broadcast %434 : vector<1x64xf32> to vector<16x64xf32>
    %436 = arith.addf %433, %435 : vector<16x64xf32>
    %cst_144 = arith.constant 0.000000e+00 : f32
    %437 = vector.broadcast %cst_144 : f32 to vector<16x64xf32>
    %438 = arith.maximumf %436, %437 : vector<16x64xf32>
    %cst_145 = arith.constant dense<0.000000e+00> : vector<16x64xf32>
    %439 = tpu.matmul %438, %244, %cst_145 {dimension_numbers = #tpu.dot_dimension_numbers<[1], [0], [0], [1], [0, 0, 1, 1], [], []>} : vector<16x64xf32>, vector<64x64xf32>, vector<16x64xf32> -> vector<16x64xf32>
    %c21 = arith.constant 21 : index
    %c0_146 = arith.constant 0 : index
    %440 = vector.load %arg6[%c21, %c0_146] : memref<22x64xf32, #tpu.memory_space<vmem>>, vector<1x64xf32>
    %441 = vector.broadcast %440 : vector<1x64xf32> to vector<16x64xf32>
    %442 = arith.addf %439, %441 : vector<16x64xf32>
    %443 = arith.addf %432, %442 : vector<16x64xf32>
    %c18 = arith.constant 18 : index
    %c0_147 = arith.constant 0 : index
    %444 = vector.load %arg6[%c18, %c0_147] : memref<22x64xf32, #tpu.memory_space<vmem>>, vector<1x64xf32>
    %c19 = arith.constant 19 : index
    %c0_148 = arith.constant 0 : index
    %445 = vector.load %arg6[%c19, %c0_148] : memref<22x64xf32, #tpu.memory_space<vmem>>, vector<1x64xf32>
    %cst_149 = arith.constant dense<0.000000e+00> : vector<16xf32>
    %446 = vector.multi_reduction <add>, %443, %cst_149 [1] : vector<16x64xf32> to vector<16xf32>
    %447 = vector.shape_cast %446 : vector<16xf32> to vector<16x1xf32>
    %cst_150 = arith.constant 6.400000e+01 : f32
    %448 = vector.broadcast %cst_150 : f32 to vector<16x1xf32>
    %449 = arith.divf %447, %448 : vector<16x1xf32>
    %450 = vector.broadcast %449 : vector<16x1xf32> to vector<16x64xf32>
    %451 = arith.subf %443, %450 : vector<16x64xf32>
    %452 = arith.mulf %451, %451 : vector<16x64xf32>
    %cst_151 = arith.constant dense<0.000000e+00> : vector<16xf32>
    %453 = vector.multi_reduction <add>, %452, %cst_151 [1] : vector<16x64xf32> to vector<16xf32>
    %454 = vector.shape_cast %453 : vector<16xf32> to vector<16x1xf32>
    %cst_152 = arith.constant 6.400000e+01 : f32
    %455 = vector.broadcast %cst_152 : f32 to vector<16x1xf32>
    %456 = arith.divf %454, %455 : vector<16x1xf32>
    %cst_153 = arith.constant 9.99999974E-6 : f32
    %457 = vector.broadcast %cst_153 : f32 to vector<16x1xf32>
    %458 = arith.addf %456, %457 : vector<16x1xf32>
    %459 = math.rsqrt %458 : vector<16x1xf32>
    %460 = vector.broadcast %459 : vector<16x1xf32> to vector<16x64xf32>
    %461 = arith.mulf %451, %460 : vector<16x64xf32>
    %462 = vector.broadcast %444 : vector<1x64xf32> to vector<16x64xf32>
    %463 = arith.mulf %461, %462 : vector<16x64xf32>
    %464 = vector.broadcast %445 : vector<1x64xf32> to vector<16x64xf32>
    %465 = arith.addf %463, %464 : vector<16x64xf32>
    %c0_154 = arith.constant 0 : index
    %c0_155 = arith.constant 0 : index
    %466 = vector.load %arg5[%c0_154, %c0_155] : memref<65x4xf32, #tpu.memory_space<vmem>>, vector<64x4xf32>
    %cst_156 = arith.constant dense<0.000000e+00> : vector<16x4xf32>
    %467 = tpu.matmul %465, %466, %cst_156 {dimension_numbers = #tpu.dot_dimension_numbers<[1], [0], [0], [1], [0, 0, 1, 1], [], []>} : vector<16x64xf32>, vector<64x4xf32>, vector<16x4xf32> -> vector<16x4xf32>
    %c64 = arith.constant 64 : index
    %c0_157 = arith.constant 0 : index
    %468 = vector.load %arg5[%c64, %c0_157] : memref<65x4xf32, #tpu.memory_space<vmem>>, vector<1x4xf32>
    %469 = vector.broadcast %468 : vector<1x4xf32> to vector<16x4xf32>
    %470 = arith.addf %467, %469 : vector<16x4xf32>
    %c0_158 = arith.constant 0 : index
    %c0_159 = arith.constant 0 : index
    %471 = vector.load %arg7[%c0_158, %c0_159] : memref<16x4xf32, #tpu.memory_space<vmem>>, vector<16x4xf32>
    tpu.vector_store %arg7[%c0_158, %c0_159], %470 {strides = array<i32>} : memref<16x4xf32, #tpu.memory_space<vmem>>, vector<16x4xf32>,
    return
  }
}

</mosaic_0001>

<llo_original>
// kernel: actor_transformer_forward.1
$region0: #{actor_transformer_forward.1}
  #allocation0 [shape = 'u32[]', space=smem, size = 0x4, offset = 0x4, fixed_abs, tag = 'smem constant byte address 0x4 - core index']
  #allocation1 [shape = 'u32[144,128]{1,0:T(1,128)}', space=vmem, size = 0x12000, scoped, tag = 'internal scratch']
  %s0 = inlined_call_operand.vmem [shape: f32[16,16], index: 0, kind: input, shape index: {}]
  %s1 = inlined_call_operand.vmem [shape: f32[16,64], index: 1, kind: input, shape index: {}]
  %s2 = inlined_call_operand.hbm [shape: f32[2,64,192], index: 2, kind: input, shape index: {}]
  %s3 = inlined_call_operand.vmem [shape: f32[2,192], index: 3, kind: input, shape index: {}]
  %s4 = inlined_call_operand.hbm [shape: f32[6,64,64], index: 4, kind: input, shape index: {}]
  %s5 = inlined_call_operand.vmem [shape: f32[65,4], index: 5, kind: input, shape index: {}]
  %s6 = inlined_call_operand.vmem [shape: f32[22,64], index: 6, kind: input, shape index: {}]
  %s7 = inlined_call_operand.vmem [shape: f32[16,4], index: 7, kind: output, shape index: {}]
  %s8 = sld [smem:[#allocation0]]
  $region46: #{actor_transformer_forward.1} parent=0
    _
  %s10 = ssub.s32 1, %s8
  %s11 = scalar_select 0, %s10, %s8
  $region1: #{actor_transformer_forward.1} parent=0
    #allocation2 [shape = 'u8[131072]{0}', space=vmem, size = 0x20000, scoped, tag = 'input window, operand 2, single buffered']
    #allocation3 [shape = 's32[1]{0}', space=sflag, size = 0x4, scoped, tag = 'scoped memory for actor_transformer_forward.1']
    #allocation4 [shape = 'u8[196608]{0}', space=vmem, size = 0x30000, scoped, tag = 'input window, operand 4, single buffered']
    #allocation5 [shape = 's32[1]{0}', space=sflag, size = 0x4, scoped, tag = 'scoped memory for actor_transformer_forward.1']
    %12 = vsyncpa [#allocation3], 0
    %13 = vsyncpa [#allocation5], 0
    // Predicated region
    $region2: #{actor_transformer_forward.1} parent=1 // pred_check
      _
    $region3: #{actor_transformer_forward.1} parent=1 // pred_check_branch
      %15 = sbr.rel (0) target = $region5
    $region4: #{actor_transformer_forward.1} parent=1 // pred_region
      _
    $region5: #{actor_transformer_forward.1} parent=1 // pred_fallthru
      _
    // Predicated region
    $region6: #{actor_transformer_forward.1} parent=1 // pred_check
      _
    $region7: #{actor_transformer_forward.1} parent=1 // pred_check_branch
      %17 = sbr.rel (0) target = $region9
    $region8: #{actor_transformer_forward.1} parent=1 // pred_region
      _
    $region9: #{actor_transformer_forward.1} parent=1 // pred_fallthru
      _
    // Predicated region
    $region10: #{actor_transformer_forward.1} parent=1 // pred_check
      _
    $region11: #{actor_transformer_forward.1} parent=1 // pred_check_branch
      %19 = sbr.rel (0) target = $region13
    $region12: #{actor_transformer_forward.1} parent=1 // pred_region
      %s21 = ssub.s32 4096, 4096
      %22 = vsyncadd [#allocation3], %s21
      %s23 = sshll.u32 [#allocation2], 4
      %s24 = int_to_ptr.vmem [resolvable:$true] %s23
      %29 = dma.hbm_to_vmem [thread:$0]  %s2, 4096, %s24, [#allocation3], 256, 256, 16
    $region13: #{actor_transformer_forward.1} parent=1 // pred_fallthru
      _
    // Predicated region
    $region14: #{actor_transformer_forward.1} parent=1 // pred_check
      _
    $region15: #{actor_transformer_forward.1} parent=1 // pred_check_branch
      %31 = sbr.rel (0) target = $region17
    $region16: #{actor_transformer_forward.1} parent=1 // pred_region
      _
    $region17: #{actor_transformer_forward.1} parent=1 // pred_fallthru
      _
    // Predicated region
    $region18: #{actor_transformer_forward.1} parent=1 // pred_check
      _
    $region19: #{actor_transformer_forward.1} parent=1 // pred_check_branch
      %33 = sbr.rel (0) target = $region21
    $region20: #{actor_transformer_forward.1} parent=1 // pred_region
      %s35 = ssub.s32 6144, 6144
      %36 = vsyncadd [#allocation5], %s35
      %s37 = sshll.u32 [#allocation4], 4
      %s38 = int_to_ptr.vmem [resolvable:$true] %s37
      %43 = dma.hbm_to_vmem [thread:$0]  %s4, 6144, %s38, [#allocation5], 128, 128, 8
    $region21: #{actor_transformer_forward.1} parent=1 // pred_fallthru
      _
    // Predicated region
    $region22: #{actor_transformer_forward.1} parent=1 // pred_check
      _
    $region23: #{actor_transformer_forward.1} parent=1 // pred_check_branch
      %45 = sbr.rel (0) target = $region25
    $region24: #{actor_transformer_forward.1} parent=1 // pred_region
      _
    $region25: #{actor_transformer_forward.1} parent=1 // pred_fallthru
      _
    // Predicated region
    $region26: #{actor_transformer_forward.1} parent=1 // pred_check
      _
    $region27: #{actor_transformer_forward.1} parent=1 // pred_check_branch
      %47 = sbr.rel (0) target = $region29
    $region28: #{actor_transformer_forward.1} parent=1 // pred_region
      _
    $region29: #{actor_transformer_forward.1} parent=1 // pred_fallthru
      _
    // Predicated region
    $region30: #{actor_transformer_forward.1} parent=1 // pred_check
      _
    $region31: #{actor_transformer_forward.1} parent=1 // pred_check_branch
      %49 = sbr.rel (0) target = $region33
    $region32: #{actor_transformer_forward.1} parent=1 // pred_region
      %50 = dma.done [#allocation3], 4096
    $region33: #{actor_transformer_forward.1} parent=1 // pred_fallthru
      _
    // Predicated region
    $region34: #{actor_transformer_forward.1} parent=1 // pred_check
      _
    $region35: #{actor_transformer_forward.1} parent=1 // pred_check_branch
      %52 = sbr.rel (0) target = $region37
    $region36: #{actor_transformer_forward.1} parent=1 // pred_region
      %53 = dma.done [#allocation5], 6144
    $region37: #{actor_transformer_forward.1} parent=1 // pred_fallthru
      _
    %v54 = vld [vmem:[%s6] sm:$0xff]
    %v55 = vld [vmem:[%s0] sm:$0xff]
    %v56 = vld [vmem:[%s0 + $0x8] sm:$0xff]
    %v57 = vld [vmem:[%s1] sm:$0xff]
    %v58 = vld [vmem:[%s1 + $0x8] sm:$0xff]
    %vm59 = vcmask 130048
    %v61 = vsel %vm59, %v55, 0
    %v64 = vsel %vm59, %v56, 0
    %66 = vmatprep.subr.mxu0 0.0
    %67 = vmatpush1.msra.mxu0 %v57
    %68 = vmatprep.subr.mxu0 0.0
    %69 = vmatpush1.msra.mxu0 %v58
    %70 = vmatprep.subr.mxu0 0.0
    %71 = vmatpush1.msra.mxu0 0.0
    %72 = vmatprep.subr.mxu0 0.0
    %73 = vmatpush1.msra.mxu0 0.0
    %74 = vmatprep.subr.mxu0 0.0
    %75 = vmatpush1.msra.mxu0 0.0
    %76 = vmatprep.subr.mxu0 0.0
    %77 = vmatpush1.msra.mxu0 0.0
    %78 = vmatprep.subr.mxu0 0.0
    %79 = vmatpush1.msra.mxu0 0.0
    %80 = vmatprep.subr.mxu0 0.0
    %81 = vmatpush1.msra.mxu0 0.0
    %82 = vmatprep.subr.mxu0 0.0
    %83 = vmatpush1.msra.mxu0 0.0
    %84 = vmatprep.subr.mxu0 0.0
    %85 = vmatpush1.msra.mxu0 0.0
    %86 = vmatprep.subr.mxu0 0.0
    %87 = vmatpush1.msra.mxu0 0.0
    %88 = vmatprep.subr.mxu0 0.0
    %89 = vmatpush1.msra.mxu0 0.0
    %90 = vmatprep.subr.mxu0 0.0
    %91 = vmatpush1.msra.mxu0 0.0
    %92 = vmatprep.subr.mxu0 0.0
    %93 = vmatpush1.msra.mxu0 0.0
    %94 = vmatprep.subr.mxu0 0.0
    %95 = vmatpush1.msra.mxu0 0.0
    %96 = vmatprep.subr.mxu0 0.0
    %97 = vmatpush1.msra.mxu0 0.0
    %98 = vmatprep.subr.mxu0 0.0
    %99 = vmatpush1.msra.mxu0 0.0
    %100 = vmatprep.subr.mxu0 0.0
    %101 = vmatpush1.msra.mxu0 0.0
    %102 = vmatprep.subr.mxu0 0.0
    %103 = vmatpush1.msra.mxu0 0.0
    %104 = vmatprep.subr.mxu0 0.0
    %105 = vmatpush1.msra.mxu0 0.0
    %106 = vmatprep.subr.mxu0 0.0
    %107 = vmatpush1.msra.mxu0 0.0
    %108 = vmatprep.subr.mxu0 0.0
    %109 = vmatpush1.msra.mxu0 0.0
    %110 = vmatprep.subr.mxu0 0.0
    %111 = vmatpush1.msra.mxu0 0.0
    %112 = vmatprep.subr.mxu0 0.0
    %113 = vmatpush1.msra.mxu0 0.0
    %114 = vmatprep.subr.mxu0 0.0
    %115 = vmatpush1.msra.mxu0 0.0
    %116 = vmatprep.subr.mxu0 0.0
    %117 = vmatpush1.msra.mxu0 0.0
    %118 = vmatprep.subr.mxu0 0.0
    %119 = vmatpush1.msra.mxu0 0.0
    %120 = vmatprep.subr.mxu0 0.0
    %121 = vmatpush1.msra.mxu0 0.0
    %122 = vmatprep.subr.mxu0 0.0
    %123 = vmatpush1.msra.mxu0 0.0
    %124 = vmatprep.subr.mxu0 0.0
    %125 = vmatpush1.msra.mxu0 0.0
    %126 = vmatprep.subr.mxu0 0.0
    %127 = vmatpush1.msra.mxu0 0.0
    %128 = vmatprep.subr.mxu0 0.0
    %129 = vmatpush1.msra.mxu0 0.0
    %130 = vmatprep.mubr.f32.mxu0 0.0
    %131 = vmatmul.mubr.f32.gmra.mrb[0].mxu0 %v61
    %v132 = vpop.f32.mrb[0].mxu0
    %v133 = vadd.f32 %v54, %v132
    %v134 = vpop.f32.mrb[0].mxu0
    %135 = vmatprep.mubr.f32.mxu0 0.0
    %136 = vmatmul.mubr.f32.gmra.mrb[0].mxu0 %v64
    %v137 = vpop.f32.mrb[0].mxu0
    %v138 = vadd.f32 %v54, %v137
    %v139 = vpop.f32.mrb[0].mxu0
    %140 = vdwg.mxu0
    %v141 = vlaneseq
    %v142 = vshrl.u32 %v141, 7
    %v143 = vlaneseq
    %v144 = vand.u32 %v143, 127
    %vm145 = vcmp.gt.s32.totalorder %v144, %v142
    %v146 = vsel %vm145, -inf, 0.0
    %v147 = vld [vmem:[#allocation4] sm:$0xff]
    %v148 = vld [vmem:[#allocation4 + $0x8] sm:$0xff]
    %v149 = vld [vmem:[#allocation4 + $0x10] sm:$0xff]
    %v150 = vld [vmem:[#allocation4 + $0x18] sm:$0xff]
    %v151 = vld [vmem:[#allocation4 + $0x20] sm:$0xff]
    %v152 = vld [vmem:[#allocation4 + $0x28] sm:$0xff]
    %v153 = vld [vmem:[#allocation4 + $0x30] sm:$0xff]
    %v154 = vld [vmem:[#allocation4 + $0x38] sm:$0xff]
    %s155 = scalar_lea.vmem [#allocation4], 64
    %v156 = vld [vmem:[%s155] sm:$0xff]
    %v157 = vld [vmem:[%s155 + $0x8] sm:$0xff]
    %v158 = vld [vmem:[%s155 + $0x10] sm:$0xff]
    %v159 = vld [vmem:[%s155 + $0x18] sm:$0xff]
    %v160 = vld [vmem:[%s155 + $0x20] sm:$0xff]
    %v161 = vld [vmem:[%s155 + $0x28] sm:$0xff]
    %v162 = vld [vmem:[%s155 + $0x30] sm:$0xff]
    %v163 = vld [vmem:[%s155 + $0x38] sm:$0xff]
    %s164 = scalar_lea.vmem [#allocation4], 128
    %v165 = vld [vmem:[%s164] sm:$0xff]
    %v166 = vld [vmem:[%s164 + $0x8] sm:$0xff]
    %v167 = vld [vmem:[%s164 + $0x10] sm:$0xff]
    %v168 = vld [vmem:[%s164 + $0x18] sm:$0xff]
    %v169 = vld [vmem:[%s164 + $0x20] sm:$0xff]
    %v170 = vld [vmem:[%s164 + $0x28] sm:$0xff]
    %v171 = vld [vmem:[%s164 + $0x30] sm:$0xff]
    %v172 = vld [vmem:[%s164 + $0x38] sm:$0xff]
    %v173 = vld [vmem:[#allocation2] sm:$0xff]
    %v174 = vld [vmem:[#allocation2 + $0x8] sm:$0xff]
    %v175 = vld [vmem:[#allocation2 + $0x10] sm:$0xff]
    %v176 = vld [vmem:[#allocation2 + $0x18] sm:$0xff]
    %v177 = vld [vmem:[#allocation2 + $0x20] sm:$0xff]
    %v178 = vld [vmem:[#allocation2 + $0x28] sm:$0xff]
    %v179 = vld [vmem:[#allocation2 + $0x30] sm:$0xff]
    %v180 = vld [vmem:[#allocation2 + $0x38] sm:$0xff]
    %v181 = vld [vmem:[#allocation2 + $0x40] sm:$0xff]
    %v182 = vld [vmem:[#allocation2 + $0x48] sm:$0xff]
    %v183 = vld [vmem:[#allocation2 + $0x50] sm:$0xff]
    %v184 = vld [vmem:[#allocation2 + $0x58] sm:$0xff]
    %v185 = vld [vmem:[#allocation2 + $0x60] sm:$0xff]
    %v186 = vld [vmem:[#allocation2 + $0x68] sm:$0xff]
    %v187 = vld [vmem:[#allocation2 + $0x70] sm:$0xff]
    %v188 = vld [vmem:[#allocation2 + $0x78] sm:$0xff]
    %v189 = vld [vmem:[%s3] ss:$2 sm:$0x3]
    %v191 = vlaneseq
    %v192 = vshrl.u32 %v191, 7
    %v193 = vsub.s32 0, %v192
    %v194 = vrot.slane %v189, %v193
    %v195 = vlaneseq
    %v196 = vshrl.u32 %v195, 7
    %v197 = vsub.s32 1, %v196
    %v198 = vrot.slane %v189, %v197
    %vm201 = vcmask 523264
    %v203 = vsel %vm201, %v133, 0
    %v206 = vsel %vm201, %v138, 0
    %208 = vmatprep.subr.mxu0 %v174
    %209 = vmatpush1.msra.mxu0 %v173
    %210 = vmatprep.subr.mxu0 %v176
    %211 = vmatpush1.msra.mxu0 %v175
    %212 = vmatprep.subr.mxu0 %v178
    %213 = vmatpush1.msra.mxu0 %v177
    %214 = vmatprep.subr.mxu0 %v180
    %215 = vmatpush1.msra.mxu0 %v179
    %216 = vmatprep.subr.mxu0 %v182
    %217 = vmatpush1.msra.mxu0 %v181
    %218 = vmatprep.subr.mxu0 %v184
    %219 = vmatpush1.msra.mxu0 %v183
    %220 = vmatprep.subr.mxu0 %v186
    %221 = vmatpush1.msra.mxu0 %v185
    %222 = vmatprep.subr.mxu0 %v188
    %223 = vmatpush1.msra.mxu0 %v187
    %224 = vmatprep.subr.mxu0 0.0
    %225 = vmatpush1.msra.mxu0 0.0
    %226 = vmatprep.subr.mxu0 0.0
    %227 = vmatpush1.msra.mxu0 0.0
    %228 = vmatprep.subr.mxu0 0.0
    %229 = vmatpush1.msra.mxu0 0.0
    %230 = vmatprep.subr.mxu0 0.0
    %231 = vmatpush1.msra.mxu0 0.0
    %232 = vmatprep.subr.mxu0 0.0
    %233 = vmatpush1.msra.mxu0 0.0
    %234 = vmatprep.subr.mxu0 0.0
    %235 = vmatpush1.msra.mxu0 0.0
    %236 = vmatprep.subr.mxu0 0.0
    %237 = vmatpush1.msra.mxu0 0.0
    %238 = vmatprep.subr.mxu0 0.0
    %239 = vmatpush1.msra.mxu0 0.0
    %240 = vmatprep.subr.mxu0 0.0
    %241 = vmatpush1.msra.mxu0 0.0
    %242 = vmatprep.subr.mxu0 0.0
    %243 = vmatpush1.msra.mxu0 0.0
    %244 = vmatprep.subr.mxu0 0.0
    %245 = vmatpush1.msra.mxu0 0.0
    %246 = vmatprep.subr.mxu0 0.0
    %247 = vmatpush1.msra.mxu0 0.0
    %248 = vmatprep.subr.mxu0 0.0
    %249 = vmatpush1.msra.mxu0 0.0
    %250 = vmatprep.subr.mxu0 0.0
    %251 = vmatpush1.msra.mxu0 0.0
    %252 = vmatprep.subr.mxu0 0.0
    %253 = vmatpush1.msra.mxu0 0.0
    %254 = vmatprep.subr.mxu0 0.0
    %255 = vmatpush1.msra.mxu0 0.0
    %256 = vmatprep.subr.mxu0 0.0
    %257 = vmatpush1.msra.mxu0 0.0
    %258 = vmatprep.subr.mxu0 0.0
    %259 = vmatpush1.msra.mxu0 0.0
    %260 = vmatprep.subr.mxu0 0.0
    %261 = vmatpush1.msra.mxu0 0.0
    %262 = vmatprep.subr.mxu0 0.0
    %263 = vmatpush1.msra.mxu0 0.0
    %264 = vmatprep.subr.mxu0 0.0
    %265 = vmatpush1.msra.mxu0 0.0
    %266 = vmatprep.subr.mxu0 0.0
    %267 = vmatpush1.msra.mxu0 0.0
    %268 = vmatprep.subr.mxu0 0.0
    %269 = vmatpush1.msra.mxu0 0.0
    %270 = vmatprep.subr.mxu0 0.0
    %271 = vmatpush1.msra.mxu0 0.0
    %272 = vmatprep.mubr.f32.mxu0 0.0
    %273 = vmatmul.mubr.f32.gmra.mrb[0].mxu0 %v203
    %v274 = vpop.f32.mrb[0].mxu0
    %v275 = vadd.f32 %v194, %v274
    %v276 = vpop.f32.mrb[0].mxu0
    %v277 = vadd.f32 %v198, %v276
    %278 = vmatprep.mubr.f32.mxu0 0.0
    %279 = vmatmul.mubr.f32.gmra.mrb[0].mxu0 %v206
    %v280 = vpop.f32.mrb[0].mxu0
    %v281 = vadd.f32 %v194, %v280
    %v282 = vpop.f32.mrb[0].mxu0
    %v283 = vadd.f32 %v198, %v282
    %284 = vdwg.mxu0
    %v285 = vmul.f32 %v275, 0.25
    %v286 = vmul.f32 %v281, 0.25
    %288 = vrot.lane.b32.xlu0 %v275, 64
    %v289 = vpop.permute.xlu0 %288
    %v291 = vsel %vm59, %v285, 0
    %v293 = vsel %vm59, %v289, 0
    %295 = vmatprep.subr.mxu0 0.0
    %296 = vmatpush1.xpose.msra.mxu0 %v293
    %297 = vmatprep.subr.mxu0 0.0
    %298 = vmatpush1.xpose.msra.mxu0 0.0
    %299 = vmatprep.subr.mxu0 0.0
    %300 = vmatpush1.xpose.msra.mxu0 0.0
    %301 = vmatprep.subr.mxu0 0.0
    %302 = vmatpush1.xpose.msra.mxu0 0.0
    %303 = vmatprep.subr.mxu0 0.0
    %304 = vmatpush1.xpose.msra.mxu0 0.0
    %305 = vmatprep.subr.mxu0 0.0
    %306 = vmatpush1.xpose.msra.mxu0 0.0
    %307 = vmatprep.subr.mxu0 0.0
    %308 = vmatpush1.xpose.msra.mxu0 0.0
    %309 = vmatprep.subr.mxu0 0.0
    %310 = vmatpush1.xpose.msra.mxu0 0.0
    %311 = vmatprep.subr.mxu0 0.0
    %312 = vmatpush1.xpose.msra.mxu0 0.0
    %313 = vmatprep.subr.mxu0 0.0
    %314 = vmatpush1.xpose.msra.mxu0 0.0
    %315 = vmatprep.subr.mxu0 0.0
    %316 = vmatpush1.xpose.msra.mxu0 0.0
    %317 = vmatprep.subr.mxu0 0.0
    %318 = vmatpush1.xpose.msra.mxu0 0.0
    %319 = vmatprep.subr.mxu0 0.0
    %320 = vmatpush1.xpose.msra.mxu0 0.0
    %321 = vmatprep.subr.mxu0 0.0
    %322 = vmatpush1.xpose.msra.mxu0 0.0
    %323 = vmatprep.subr.mxu0 0.0
    %324 = vmatpush1.xpose.msra.mxu0 0.0
    %325 = vmatprep.subr.mxu0 0.0
    %326 = vmatpush1.xpose.msra.mxu0 0.0
    %327 = vmatprep.subr.mxu0 0.0
    %328 = vmatpush1.xpose.msra.mxu0 0.0
    %329 = vmatprep.subr.mxu0 0.0
    %330 = vmatpush1.xpose.msra.mxu0 0.0
    %331 = vmatprep.subr.mxu0 0.0
    %332 = vmatpush1.xpose.msra.mxu0 0.0
    %333 = vmatprep.subr.mxu0 0.0
    %334 = vmatpush1.xpose.msra.mxu0 0.0
    %335 = vmatprep.subr.mxu0 0.0
    %336 = vmatpush1.xpose.msra.mxu0 0.0
    %337 = vmatprep.subr.mxu0 0.0
    %338 = vmatpush1.xpose.msra.mxu0 0.0
    %339 = vmatprep.subr.mxu0 0.0
    %340 = vmatpush1.xpose.msra.mxu0 0.0
    %341 = vmatprep.subr.mxu0 0.0
    %342 = vmatpush1.xpose.msra.mxu0 0.0
    %343 = vmatprep.subr.mxu0 0.0
    %344 = vmatpush1.xpose.msra.mxu0 0.0
    %345 = vmatprep.subr.mxu0 0.0
    %346 = vmatpush1.xpose.msra.mxu0 0.0
    %347 = vmatprep.subr.mxu0 0.0
    %348 = vmatpush1.xpose.msra.mxu0 0.0
    %349 = vmatprep.subr.mxu0 0.0
    %350 = vmatpush1.xpose.msra.mxu0 0.0
    %351 = vmatprep.subr.mxu0 0.0
    %352 = vmatpush1.xpose.msra.mxu0 0.0
    %353 = vmatprep.subr.mxu0 0.0
    %354 = vmatpush1.xpose.msra.mxu0 0.0
    %355 = vmatprep.subr.mxu0 0.0
    %356 = vmatpush1.xpose.msra.mxu0 0.0
    %357 = vmatprep.subr.mxu0 0.0
    %358 = vmatpush1.xpose.msra.mxu0 0.0
    %359 = vmatprep.mubr.f32.mxu0 0.0
    %360 = vmatmul.mubr.f32.gmra.mrb[0].mxu0 %v291
    %v361 = vpop.f32.mrb[0].mxu0
    %v362 = vadd.f32 %v146, %v361
    %v363 = vpop.f32.mrb[0].mxu0
    %364 = vdwg.mxu0
    %vm365 = vcmask 64512
    %v366 = vsel %vm365, %v362, -inf
    %367 = vmax.xlane.f32.xlu0 %v366
    %v368 = vpop.xlane.xlu0 %367
    %v369 = vsub.f32 %v362, %v368
    %v370 = vmul.f32 %v369, 1.442695
    %v371 = vpow.pop %v370
    %v372 = vsel %vm365, %v371, 0.0
    %373 = vadd.xlane.f32.xlu0 %v372
    %v374 = vpop.xlane.xlu0 %373
    %v375 = vrcp.pop %v374
    %v376 = vmul.f32 %v371, %v375
    %v378 = vsel %vm365, %v376, 0
    %380 = vmatprep.subr.mxu0 0.0
    %381 = vmatpush1.msra.mxu0 %v277
    %382 = vmatprep.subr.mxu0 0.0
    %383 = vmatpush1.msra.mxu0 0.0
    %384 = vmatprep.subr.mxu0 0.0
    %385 = vmatpush1.msra.mxu0 0.0
    %386 = vmatprep.subr.mxu0 0.0
    %387 = vmatpush1.msra.mxu0 0.0
    %388 = vmatprep.subr.mxu0 0.0
    %389 = vmatpush1.msra.mxu0 0.0
    %390 = vmatprep.subr.mxu0 0.0
    %391 = vmatpush1.msra.mxu0 0.0
    %392 = vmatprep.subr.mxu0 0.0
    %393 = vmatpush1.msra.mxu0 0.0
    %394 = vmatprep.subr.mxu0 0.0
    %395 = vmatpush1.msra.mxu0 0.0
    %396 = vmatprep.subr.mxu0 0.0
    %397 = vmatpush1.msra.mxu0 0.0
    %398 = vmatprep.subr.mxu0 0.0
    %399 = vmatpush1.msra.mxu0 0.0
    %400 = vmatprep.subr.mxu0 0.0
    %401 = vmatpush1.msra.mxu0 0.0
    %402 = vmatprep.subr.mxu0 0.0
    %403 = vmatpush1.msra.mxu0 0.0
    %404 = vmatprep.subr.mxu0 0.0
    %405 = vmatpush1.msra.mxu0 0.0
    %406 = vmatprep.subr.mxu0 0.0
    %407 = vmatpush1.msra.mxu0 0.0
    %408 = vmatprep.subr.mxu0 0.0
    %409 = vmatpush1.msra.mxu0 0.0
    %410 = vmatprep.subr.mxu0 0.0
    %411 = vmatpush1.msra.mxu0 0.0
    %412 = vmatprep.subr.mxu0 0.0
    %413 = vmatpush1.msra.mxu0 0.0
    %414 = vmatprep.subr.mxu0 0.0
    %415 = vmatpush1.msra.mxu0 0.0
    %416 = vmatprep.subr.mxu0 0.0
    %417 = vmatpush1.msra.mxu0 0.0
    %418 = vmatprep.subr.mxu0 0.0
    %419 = vmatpush1.msra.mxu0 0.0
    %420 = vmatprep.subr.mxu0 0.0
    %421 = vmatpush1.msra.mxu0 0.0
    %422 = vmatprep.subr.mxu0 0.0
    %423 = vmatpush1.msra.mxu0 0.0
    %424 = vmatprep.subr.mxu0 0.0
    %425 = vmatpush1.msra.mxu0 0.0
    %426 = vmatprep.subr.mxu0 0.0
    %427 = vmatpush1.msra.mxu0 0.0
    %428 = vmatprep.subr.mxu0 0.0
    %429 = vmatpush1.msra.mxu0 0.0
    %430 = vmatprep.subr.mxu0 0.0
    %431 = vmatpush1.msra.mxu0 0.0
    %432 = vmatprep.subr.mxu0 0.0
    %433 = vmatpush1.msra.mxu0 0.0
    %434 = vmatprep.subr.mxu0 0.0
    %435 = vmatpush1.msra.mxu0 0.0
    %436 = vmatprep.subr.mxu0 0.0
    %437 = vmatpush1.msra.mxu0 0.0
    %438 = vmatprep.subr.mxu0 0.0
    %439 = vmatpush1.msra.mxu0 0.0
    %440 = vmatprep.subr.mxu0 0.0
    %441 = vmatpush1.msra.mxu0 0.0
    %442 = vmatprep.subr.mxu0 0.0
    %443 = vmatpush1.msra.mxu0 0.0
    %444 = vmatprep.mubr.f32.mxu0 0.0
    %445 = vmatmul.mubr.f32.gmra.mrb[0].mxu0 %v378
    %v446 = vpop.f32.mrb[0].mxu0
    %v447 = vadd.f32 0.0, %v446
    %v448 = vpop.f32.mrb[0].mxu0
    %449 = vdwg.mxu0
    %450 = vrot.lane.b32.xlu0 %v285, 112
    %v451 = vpop.permute.xlu0 %450
    %452 = vrot.lane.b32.xlu0 %v275, 48
    %v453 = vpop.permute.xlu0 %452
    %v454 = vsel %vm59, %v451, 0
    %v456 = vsel %vm59, %v453, 0
    %458 = vmatprep.subr.mxu0 0.0
    %459 = vmatpush1.xpose.msra.mxu0 %v456
    %460 = vmatprep.subr.mxu0 0.0
    %461 = vmatpush1.xpose.msra.mxu0 0.0
    %462 = vmatprep.subr.mxu0 0.0
    %463 = vmatpush1.xpose.msra.mxu0 0.0
    %464 = vmatprep.subr.mxu0 0.0
    %465 = vmatpush1.xpose.msra.mxu0 0.0
    %466 = vmatprep.subr.mxu0 0.0
    %467 = vmatpush1.xpose.msra.mxu0 0.0
    %468 = vmatprep.subr.mxu0 0.0
    %469 = vmatpush1.xpose.msra.mxu0 0.0
    %470 = vmatprep.subr.mxu0 0.0
    %471 = vmatpush1.xpose.msra.mxu0 0.0
    %472 = vmatprep.subr.mxu0 0.0
    %473 = vmatpush1.xpose.msra.mxu0 0.0
    %474 = vmatprep.subr.mxu0 0.0
    %475 = vmatpush1.xpose.msra.mxu0 0.0
    %476 = vmatprep.subr.mxu0 0.0
    %477 = vmatpush1.xpose.msra.mxu0 0.0
    %478 = vmatprep.subr.mxu0 0.0
    %479 = vmatpush1.xpose.msra.mxu0 0.0
    %480 = vmatprep.subr.mxu0 0.0
    %481 = vmatpush1.xpose.msra.mxu0 0.0
    %482 = vmatprep.subr.mxu0 0.0
    %483 = vmatpush1.xpose.msra.mxu0 0.0
    %484 = vmatprep.subr.mxu0 0.0
    %485 = vmatpush1.xpose.msra.mxu0 0.0
    %486 = vmatprep.subr.mxu0 0.0
    %487 = vmatpush1.xpose.msra.mxu0 0.0
    %488 = vmatprep.subr.mxu0 0.0
    %489 = vmatpush1.xpose.msra.mxu0 0.0
    %490 = vmatprep.subr.mxu0 0.0
    %491 = vmatpush1.xpose.msra.mxu0 0.0
    %492 = vmatprep.subr.mxu0 0.0
    %493 = vmatpush1.xpose.msra.mxu0 0.0
    %494 = vmatprep.subr.mxu0 0.0
    %495 = vmatpush1.xpose.msra.mxu0 0.0
    %496 = vmatprep.subr.mxu0 0.0
    %497 = vmatpush1.xpose.msra.mxu0 0.0
    %498 = vmatprep.subr.mxu0 0.0
    %499 = vmatpush1.xpose.msra.mxu0 0.0
    %500 = vmatprep.subr.mxu0 0.0
    %501 = vmatpush1.xpose.msra.mxu0 0.0
    %502 = vmatprep.subr.mxu0 0.0
    %503 = vmatpush1.xpose.msra.mxu0 0.0
    %504 = vmatprep.subr.mxu0 0.0
    %505 = vmatpush1.xpose.msra.mxu0 0.0
    %506 = vmatprep.subr.mxu0 0.0
    %507 = vmatpush1.xpose.msra.mxu0 0.0
    %508 = vmatprep.subr.mxu0 0.0
    %509 = vmatpush1.xpose.msra.mxu0 0.0
    %510 = vmatprep.subr.mxu0 0.0
    %511 = vmatpush1.xpose.msra.mxu0 0.0
    %512 = vmatprep.subr.mxu0 0.0
    %513 = vmatpush1.xpose.msra.mxu0 0.0
    %514 = vmatprep.subr.mxu0 0.0
    %515 = vmatpush1.xpose.msra.mxu0 0.0
    %516 = vmatprep.subr.mxu0 0.0
    %517 = vmatpush1.xpose.msra.mxu0 0.0
    %518 = vmatprep.subr.mxu0 0.0
    %519 = vmatpush1.xpose.msra.mxu0 0.0
    %520 = vmatprep.subr.mxu0 0.0
    %521 = vmatpush1.xpose.msra.mxu0 0.0
    %522 = vmatprep.mubr.f32.mxu0 0.0
    %523 = vmatmul.mubr.f32.gmra.mrb[0].mxu0 %v454
    %v524 = vpop.f32.mrb[0].mxu0
    %v525 = vadd.f32 %v146, %v524
    %v526 = vpop.f32.mrb[0].mxu0
    %527 = vdwg.mxu0
    %v528 = vsel %vm365, %v525, -inf
    %529 = vmax.xlane.f32.xlu0 %v528
    %v530 = vpop.xlane.xlu0 %529
    %v531 = vsub.f32 %v525, %v530
    %v532 = vmul.f32 %v531, 1.442695
    %v533 = vpow.pop %v532
    %v534 = vsel %vm365, %v533, 0.0
    %535 = vadd.xlane.f32.xlu0 %v534
    %v536 = vpop.xlane.xlu0 %535
    %v537 = vrcp.pop %v536
    %v538 = vmul.f32 %v533, %v537
    %540 = vrot.lane.b32.xlu0 %v277, 112
    %v541 = vpop.permute.xlu0 %540
    %v544 = vsel %vm365, %v538, 0
    %546 = vmatprep.subr.mxu0 0.0
    %547 = vmatpush1.msra.mxu0 %v541
    %548 = vmatprep.subr.mxu0 0.0
    %549 = vmatpush1.msra.mxu0 0.0
    %550 = vmatprep.subr.mxu0 0.0
    %551 = vmatpush1.msra.mxu0 0.0
    %552 = vmatprep.subr.mxu0 0.0
    %553 = vmatpush1.msra.mxu0 0.0
    %554 = vmatprep.subr.mxu0 0.0
    %555 = vmatpush1.msra.mxu0 0.0
    %556 = vmatprep.subr.mxu0 0.0
    %557 = vmatpush1.msra.mxu0 0.0
    %558 = vmatprep.subr.mxu0 0.0
    %559 = vmatpush1.msra.mxu0 0.0
    %560 = vmatprep.subr.mxu0 0.0
    %561 = vmatpush1.msra.mxu0 0.0
    %562 = vmatprep.subr.mxu0 0.0
    %563 = vmatpush1.msra.mxu0 0.0
    %564 = vmatprep.subr.mxu0 0.0
    %565 = vmatpush1.msra.mxu0 0.0
    %566 = vmatprep.subr.mxu0 0.0
    %567 = vmatpush1.msra.mxu0 0.0
    %568 = vmatprep.subr.mxu0 0.0
    %569 = vmatpush1.msra.mxu0 0.0
    %570 = vmatprep.subr.mxu0 0.0
    %571 = vmatpush1.msra.mxu0 0.0
    %572 = vmatprep.subr.mxu0 0.0
    %573 = vmatpush1.msra.mxu0 0.0
    %574 = vmatprep.subr.mxu0 0.0
    %575 = vmatpush1.msra.mxu0 0.0
    %576 = vmatprep.subr.mxu0 0.0
    %577 = vmatpush1.msra.mxu0 0.0
    %578 = vmatprep.subr.mxu0 0.0
    %579 = vmatpush1.msra.mxu0 0.0
    %580 = vmatprep.subr.mxu0 0.0
    %581 = vmatpush1.msra.mxu0 0.0
    %582 = vmatprep.subr.mxu0 0.0
    %583 = vmatpush1.msra.mxu0 0.0
    %584 = vmatprep.subr.mxu0 0.0
    %585 = vmatpush1.msra.mxu0 0.0
    %586 = vmatprep.subr.mxu0 0.0
    %587 = vmatpush1.msra.mxu0 0.0
    %588 = vmatprep.subr.mxu0 0.0
    %589 = vmatpush1.msra.mxu0 0.0
    %590 = vmatprep.subr.mxu0 0.0
    %591 = vmatpush1.msra.mxu0 0.0
    %592 = vmatprep.subr.mxu0 0.0
    %593 = vmatpush1.msra.mxu0 0.0
    %594 = vmatprep.subr.mxu0 0.0
    %595 = vmatpush1.msra.mxu0 0.0
    %596 = vmatprep.subr.mxu0 0.0
    %597 = vmatpush1.msra.mxu0 0.0
    %598 = vmatprep.subr.mxu0 0.0
    %599 = vmatpush1.msra.mxu0 0.0
    %600 = vmatprep.subr.mxu0 0.0
    %601 = vmatpush1.msra.mxu0 0.0
    %602 = vmatprep.subr.mxu0 0.0
    %603 = vmatpush1.msra.mxu0 0.0
    %604 = vmatprep.subr.mxu0 0.0
    %605 = vmatpush1.msra.mxu0 0.0
    %606 = vmatprep.subr.mxu0 0.0
    %607 = vmatpush1.msra.mxu0 0.0
    %608 = vmatprep.subr.mxu0 0.0
    %609 = vmatpush1.msra.mxu0 0.0
    %610 = vmatprep.mubr.f32.mxu0 0.0
    %611 = vmatmul.mubr.f32.gmra.mrb[0].mxu0 %v544
    %v612 = vpop.f32.mrb[0].mxu0
    %v613 = vadd.f32 0.0, %v612
    %v614 = vpop.f32.mrb[0].mxu0
    %615 = vdwg.mxu0
    %v617 = vsel %vm59, %v613, 0
    %619 = vmatprep.subr.mxu0 0.0
    %620 = vmatpush1.msra.mxu0 %v149
    %621 = vmatprep.subr.mxu0 0.0
    %622 = vmatpush1.msra.mxu0 %v150
    %623 = vmatprep.subr.mxu0 0.0
    %624 = vmatpush1.msra.mxu0 0.0
    %625 = vmatprep.subr.mxu0 0.0
    %626 = vmatpush1.msra.mxu0 0.0
    %627 = vmatprep.subr.mxu0 0.0
    %628 = vmatpush1.msra.mxu0 0.0
    %629 = vmatprep.subr.mxu0 0.0
    %630 = vmatpush1.msra.mxu0 0.0
    %631 = vmatprep.subr.mxu0 0.0
    %632 = vmatpush1.msra.mxu0 0.0
    %633 = vmatprep.subr.mxu0 0.0
    %634 = vmatpush1.msra.mxu0 0.0
    %635 = vmatprep.subr.mxu0 0.0
    %636 = vmatpush1.msra.mxu0 0.0
    %637 = vmatprep.subr.mxu0 0.0
    %638 = vmatpush1.msra.mxu0 0.0
    %639 = vmatprep.subr.mxu0 0.0
    %640 = vmatpush1.msra.mxu0 0.0
    %641 = vmatprep.subr.mxu0 0.0
    %642 = vmatpush1.msra.mxu0 0.0
    %643 = vmatprep.subr.mxu0 0.0
    %644 = vmatpush1.msra.mxu0 0.0
    %645 = vmatprep.subr.mxu0 0.0
    %646 = vmatpush1.msra.mxu0 0.0
    %647 = vmatprep.subr.mxu0 0.0
    %648 = vmatpush1.msra.mxu0 0.0
    %649 = vmatprep.subr.mxu0 0.0
    %650 = vmatpush1.msra.mxu0 0.0
    %651 = vmatprep.subr.mxu0 0.0
    %652 = vmatpush1.msra.mxu0 0.0
    %653 = vmatprep.subr.mxu0 0.0
    %654 = vmatpush1.msra.mxu0 0.0
    %655 = vmatprep.subr.mxu0 0.0
    %656 = vmatpush1.msra.mxu0 0.0
    %657 = vmatprep.subr.mxu0 0.0
    %658 = vmatpush1.msra.mxu0 0.0
    %659 = vmatprep.subr.mxu0 0.0
    %660 = vmatpush1.msra.mxu0 0.0
    %661 = vmatprep.subr.mxu0 0.0
    %662 = vmatpush1.msra.mxu0 0.0
    %663 = vmatprep.subr.mxu0 0.0
    %664 = vmatpush1.msra.mxu0 0.0
    %665 = vmatprep.subr.mxu0 0.0
    %666 = vmatpush1.msra.mxu0 0.0
    %667 = vmatprep.subr.mxu0 0.0
    %668 = vmatpush1.msra.mxu0 0.0
    %669 = vmatprep.subr.mxu0 0.0
    %670 = vmatpush1.msra.mxu0 0.0
    %671 = vmatprep.subr.mxu0 0.0
    %672 = vmatpush1.msra.mxu0 0.0
    %673 = vmatprep.subr.mxu0 0.0
    %674 = vmatpush1.msra.mxu0 0.0
    %675 = vmatprep.subr.mxu0 0.0
    %676 = vmatpush1.msra.mxu0 0.0
    %677 = vmatprep.subr.mxu0 0.0
    %678 = vmatpush1.msra.mxu0 0.0
    %679 = vmatprep.subr.mxu0 0.0
    %680 = vmatpush1.msra.mxu0 0.0
    %681 = vmatprep.subr.mxu0 0.0
    %682 = vmatpush1.msra.mxu0 0.0
    %683 = vmatprep.mubr.f32.mxu0 0.0
    %684 = vmatmul.mubr.f32.gmra.mrb[0].mxu0 %v617
    %v685 = vpop.f32.mrb[0].mxu0
    %v686 = vadd.f32 0.0, %v685
    %v687 = vpop.f32.mrb[0].mxu0
    %688 = vdwg.mxu0
    %v690 = vsel %vm59, %v447, 0
    %692 = vmatprep.subr.mxu0 0.0
    %693 = vmatpush1.msra.mxu0 %v147
    %694 = vmatprep.subr.mxu0 0.0
    %695 = vmatpush1.msra.mxu0 %v148
    %696 = vmatprep.subr.mxu0 0.0
    %697 = vmatpush1.msra.mxu0 0.0
    %698 = vmatprep.subr.mxu0 0.0
    %699 = vmatpush1.msra.mxu0 0.0
    %700 = vmatprep.subr.mxu0 0.0
    %701 = vmatpush1.msra.mxu0 0.0
    %702 = vmatprep.subr.mxu0 0.0
    %703 = vmatpush1.msra.mxu0 0.0
    %704 = vmatprep.subr.mxu0 0.0
    %705 = vmatpush1.msra.mxu0 0.0
    %706 = vmatprep.subr.mxu0 0.0
    %707 = vmatpush1.msra.mxu0 0.0
    %708 = vmatprep.subr.mxu0 0.0
    %709 = vmatpush1.msra.mxu0 0.0
    %710 = vmatprep.subr.mxu0 0.0
    %711 = vmatpush1.msra.mxu0 0.0
    %712 = vmatprep.subr.mxu0 0.0
    %713 = vmatpush1.msra.mxu0 0.0
    %714 = vmatprep.subr.mxu0 0.0
    %715 = vmatpush1.msra.mxu0 0.0
    %716 = vmatprep.subr.mxu0 0.0
    %717 = vmatpush1.msra.mxu0 0.0
    %718 = vmatprep.subr.mxu0 0.0
    %719 = vmatpush1.msra.mxu0 0.0
    %720 = vmatprep.subr.mxu0 0.0
    %721 = vmatpush1.msra.mxu0 0.0
    %722 = vmatprep.subr.mxu0 0.0
    %723 = vmatpush1.msra.mxu0 0.0
    %724 = vmatprep.subr.mxu0 0.0
    %725 = vmatpush1.msra.mxu0 0.0
    %726 = vmatprep.subr.mxu0 0.0
    %727 = vmatpush1.msra.mxu0 0.0
    %728 = vmatprep.subr.mxu0 0.0
    %729 = vmatpush1.msra.mxu0 0.0
    %730 = vmatprep.subr.mxu0 0.0
    %731 = vmatpush1.msra.mxu0 0.0
    %732 = vmatprep.subr.mxu0 0.0
    %733 = vmatpush1.msra.mxu0 0.0
    %734 = vmatprep.subr.mxu0 0.0
    %735 = vmatpush1.msra.mxu0 0.0
    %736 = vmatprep.subr.mxu0 0.0
    %737 = vmatpush1.msra.mxu0 0.0
    %738 = vmatprep.subr.mxu0 0.0
    %739 = vmatpush1.msra.mxu0 0.0
    %740 = vmatprep.subr.mxu0 0.0
    %741 = vmatpush1.msra.mxu0 0.0
    %742 = vmatprep.subr.mxu0 0.0
    %743 = vmatpush1.msra.mxu0 0.0
    %744 = vmatprep.subr.mxu0 0.0
    %745 = vmatpush1.msra.mxu0 0.0
    %746 = vmatprep.subr.mxu0 0.0
    %747 = vmatpush1.msra.mxu0 0.0
    %748 = vmatprep.subr.mxu0 0.0
    %749 = vmatpush1.msra.mxu0 0.0
    %750 = vmatprep.subr.mxu0 0.0
    %751 = vmatpush1.msra.mxu0 0.0
    %752 = vmatprep.subr.mxu0 0.0
    %753 = vmatpush1.msra.mxu0 0.0
    %754 = vmatprep.subr.mxu0 0.0
    %755 = vmatpush1.msra.mxu0 0.0
    %756 = vmatprep.mubr.f32.mxu0 0.0
    %757 = vmatmul.mubr.f32.gmra.mrb[0].mxu0 %v690
    %v758 = vpop.f32.mrb[0].mxu0
    %v759 = vadd.f32 %v686, %v758
    %v760 = vpop.f32.mrb[0].mxu0
    %761 = vdwg.mxu0
    %762 = vrot.lane.b32.xlu0 %v285, 96
    %v763 = vpop.permute.xlu0 %762
    %764 = vrot.lane.b32.xlu0 %v275, 32
    %v765 = vpop.permute.xlu0 %764
    %v766 = vsel %vm59, %v763, 0
    %v768 = vsel %vm59, %v765, 0
    %770 = vmatprep.subr.mxu0 0.0
    %771 = vmatpush1.xpose.msra.mxu0 %v768
    %772 = vmatprep.subr.mxu0 0.0
    %773 = vmatpush1.xpose.msra.mxu0 0.0
    %774 = vmatprep.subr.mxu0 0.0
    %775 = vmatpush1.xpose.msra.mxu0 0.0
    %776 = vmatprep.subr.mxu0 0.0
    %777 = vmatpush1.xpose.msra.mxu0 0.0
    %778 = vmatprep.subr.mxu0 0.0
    %779 = vmatpush1.xpose.msra.mxu0 0.0
    %780 = vmatprep.subr.mxu0 0.0
    %781 = vmatpush1.xpose.msra.mxu0 0.0
    %782 = vmatprep.subr.mxu0 0.0
    %783 = vmatpush1.xpose.msra.mxu0 0.0
    %784 = vmatprep.subr.mxu0 0.0
    %785 = vmatpush1.xpose.msra.mxu0 0.0
    %786 = vmatprep.subr.mxu0 0.0
    %787 = vmatpush1.xpose.msra.mxu0 0.0
    %788 = vmatprep.subr.mxu0 0.0
    %789 = vmatpush1.xpose.msra.mxu0 0.0
    %790 = vmatprep.subr.mxu0 0.0
    %791 = vmatpush1.xpose.msra.mxu0 0.0
    %792 = vmatprep.subr.mxu0 0.0
    %793 = vmatpush1.xpose.msra.mxu0 0.0
    %794 = vmatprep.subr.mxu0 0.0
    %795 = vmatpush1.xpose.msra.mxu0 0.0
    %796 = vmatprep.subr.mxu0 0.0
    %797 = vmatpush1.xpose.msra.mxu0 0.0
    %798 = vmatprep.subr.mxu0 0.0
    %799 = vmatpush1.xpose.msra.mxu0 0.0
    %800 = vmatprep.subr.mxu0 0.0
    %801 = vmatpush1.xpose.msra.mxu0 0.0
    %802 = vmatprep.subr.mxu0 0.0
    %803 = vmatpush1.xpose.msra.mxu0 0.0
    %804 = vmatprep.subr.mxu0 0.0
    %805 = vmatpush1.xpose.msra.mxu0 0.0
    %806 = vmatprep.subr.mxu0 0.0
    %807 = vmatpush1.xpose.msra.mxu0 0.0
    %808 = vmatprep.subr.mxu0 0.0
    %809 = vmatpush1.xpose.msra.mxu0 0.0
    %810 = vmatprep.subr.mxu0 0.0
    %811 = vmatpush1.xpose.msra.mxu0 0.0
    %812 = vmatprep.subr.mxu0 0.0
    %813 = vmatpush1.xpose.msra.mxu0 0.0
    %814 = vmatprep.subr.mxu0 0.0
    %815 = vmatpush1.xpose.msra.mxu0 0.0
    %816 = vmatprep.subr.mxu0 0.0
    %817 = vmatpush1.xpose.msra.mxu0 0.0
    %818 = vmatprep.subr.mxu0 0.0
    %819 = vmatpush1.xpose.msra.mxu0 0.0
    %820 = vmatprep.subr.mxu0 0.0
    %821 = vmatpush1.xpose.msra.mxu0 0.0
    %822 = vmatprep.subr.mxu0 0.0
    %823 = vmatpush1.xpose.msra.mxu0 0.0
    %824 = vmatprep.subr.mxu0 0.0
    %825 = vmatpush1.xpose.msra.mxu0 0.0
    %826 = vmatprep.subr.mxu0 0.0
    %827 = vmatpush1.xpose.msra.mxu0 0.0
    %828 = vmatprep.subr.mxu0 0.0
    %829 = vmatpush1.xpose.msra.mxu0 0.0
    %830 = vmatprep.subr.mxu0 0.0
    %831 = vmatpush1.xpose.msra.mxu0 0.0
    %832 = vmatprep.subr.mxu0 0.0
    %833 = vmatpush1.xpose.msra.mxu0 0.0
    %834 = vmatprep.mubr.f32.mxu0 0.0
    %835 = vmatmul.mubr.f32.gmra.mrb[0].mxu0 %v766
    %v836 = vpop.f32.mrb[0].mxu0
    %v837 = vadd.f32 %v146, %v836
    %v838 = vpop.f32.mrb[0].mxu0
    %839 = vdwg.mxu0
    %v840 = vsel %vm365, %v837, -inf
    %841 = vmax.xlane.f32.xlu0 %v840
    %v842 = vpop.xlane.xlu0 %841
    %v843 = vsub.f32 %v837, %v842
    %v844 = vmul.f32 %v843, 1.442695
    %v845 = vpow.pop %v844
    %v846 = vsel %vm365, %v845, 0.0
    %847 = vadd.xlane.f32.xlu0 %v846
    %v848 = vpop.xlane.xlu0 %847
    %v849 = vrcp.pop %v848
    %v850 = vmul.f32 %v845, %v849
    %851 = vrot.lane.b32.xlu0 %v277, 96
    %v852 = vpop.permute.xlu0 %851
    %v855 = vsel %vm365, %v850, 0
    %857 = vmatprep.subr.mxu0 0.0
    %858 = vmatpush1.msra.mxu0 %v852
    %859 = vmatprep.subr.mxu0 0.0
    %860 = vmatpush1.msra.mxu0 0.0
    %861 = vmatprep.subr.mxu0 0.0
    %862 = vmatpush1.msra.mxu0 0.0
    %863 = vmatprep.subr.mxu0 0.0
    %864 = vmatpush1.msra.mxu0 0.0
    %865 = vmatprep.subr.mxu0 0.0
    %866 = vmatpush1.msra.mxu0 0.0
    %867 = vmatprep.subr.mxu0 0.0
    %868 = vmatpush1.msra.mxu0 0.0
    %869 = vmatprep.subr.mxu0 0.0
    %870 = vmatpush1.msra.mxu0 0.0
    %871 = vmatprep.subr.mxu0 0.0
    %872 = vmatpush1.msra.mxu0 0.0
    %873 = vmatprep.subr.mxu0 0.0
    %874 = vmatpush1.msra.mxu0 0.0
    %875 = vmatprep.subr.mxu0 0.0
    %876 = vmatpush1.msra.mxu0 0.0
    %877 = vmatprep.subr.mxu0 0.0
    %878 = vmatpush1.msra.mxu0 0.0
    %879 = vmatprep.subr.mxu0 0.0
    %880 = vmatpush1.msra.mxu0 0.0
    %881 = vmatprep.subr.mxu0 0.0
    %882 = vmatpush1.msra.mxu0 0.0
    %883 = vmatprep.subr.mxu0 0.0
    %884 = vmatpush1.msra.mxu0 0.0
    %885 = vmatprep.subr.mxu0 0.0
    %886 = vmatpush1.msra.mxu0 0.0
    %887 = vmatprep.subr.mxu0 0.0
    %888 = vmatpush1.msra.mxu0 0.0
    %889 = vmatprep.subr.mxu0 0.0
    %890 = vmatpush1.msra.mxu0 0.0
    %891 = vmatprep.subr.mxu0 0.0
    %892 = vmatpush1.msra.mxu0 0.0
    %893 = vmatprep.subr.mxu0 0.0
    %894 = vmatpush1.msra.mxu0 0.0
    %895 = vmatprep.subr.mxu0 0.0
    %896 = vmatpush1.msra.mxu0 0.0
    %897 = vmatprep.subr.mxu0 0.0
    %898 = vmatpush1.msra.mxu0 0.0
    %899 = vmatprep.subr.mxu0 0.0
    %900 = vmatpush1.msra.mxu0 0.0
    %901 = vmatprep.subr.mxu0 0.0
    %902 = vmatpush1.msra.mxu0 0.0
    %903 = vmatprep.subr.mxu0 0.0
    %904 = vmatpush1.msra.mxu0 0.0
    %905 = vmatprep.subr.mxu0 0.0
    %906 = vmatpush1.msra.mxu0 0.0
    %907 = vmatprep.subr.mxu0 0.0
    %908 = vmatpush1.msra.mxu0 0.0
    %909 = vmatprep.subr.mxu0 0.0
    %910 = vmatpush1.msra.mxu0 0.0
    %911 = vmatprep.subr.mxu0 0.0
    %912 = vmatpush1.msra.mxu0 0.0
    %913 = vmatprep.subr.mxu0 0.0
    %914 = vmatpush1.msra.mxu0 0.0
    %915 = vmatprep.subr.mxu0 0.0
    %916 = vmatpush1.msra.mxu0 0.0
    %917 = vmatprep.subr.mxu0 0.0
    %918 = vmatpush1.msra.mxu0 0.0
    %919 = vmatprep.subr.mxu0 0.0
    %920 = vmatpush1.msra.mxu0 0.0
    %921 = vmatprep.mubr.f32.mxu0 0.0
    %922 = vmatmul.mubr.f32.gmra.mrb[0].mxu0 %v855
    %v923 = vpop.f32.mrb[0].mxu0
    %v924 = vadd.f32 0.0, %v923
    %v925 = vpop.f32.mrb[0].mxu0
    %926 = vdwg.mxu0
    %v928 = vsel %vm59, %v924, 0
    %930 = vmatprep.subr.mxu0 0.0
    %931 = vmatpush1.msra.mxu0 %v151
    %932 = vmatprep.subr.mxu0 0.0
    %933 = vmatpush1.msra.mxu0 %v152
    %934 = vmatprep.subr.mxu0 0.0
    %935 = vmatpush1.msra.mxu0 0.0
    %936 = vmatprep.subr.mxu0 0.0
    %937 = vmatpush1.msra.mxu0 0.0
    %938 = vmatprep.subr.mxu0 0.0
    %939 = vmatpush1.msra.mxu0 0.0
    %940 = vmatprep.subr.mxu0 0.0
    %941 = vmatpush1.msra.mxu0 0.0
    %942 = vmatprep.subr.mxu0 0.0
    %943 = vmatpush1.msra.mxu0 0.0
    %944 = vmatprep.subr.mxu0 0.0
    %945 = vmatpush1.msra.mxu0 0.0
    %946 = vmatprep.subr.mxu0 0.0
    %947 = vmatpush1.msra.mxu0 0.0
    %948 = vmatprep.subr.mxu0 0.0
    %949 = vmatpush1.msra.mxu0 0.0
    %950 = vmatprep.subr.mxu0 0.0
    %951 = vmatpush1.msra.mxu0 0.0
    %952 = vmatprep.subr.mxu0 0.0
    %953 = vmatpush1.msra.mxu0 0.0
    %954 = vmatprep.subr.mxu0 0.0
    %955 = vmatpush1.msra.mxu0 0.0
    %956 = vmatprep.subr.mxu0 0.0
    %957 = vmatpush1.msra.mxu0 0.0
    %958 = vmatprep.subr.mxu0 0.0
    %959 = vmatpush1.msra.mxu0 0.0
    %960 = vmatprep.subr.mxu0 0.0
    %961 = vmatpush1.msra.mxu0 0.0
    %962 = vmatprep.subr.mxu0 0.0
    %963 = vmatpush1.msra.mxu0 0.0
    %964 = vmatprep.subr.mxu0 0.0
    %965 = vmatpush1.msra.mxu0 0.0
    %966 = vmatprep.subr.mxu0 0.0
    %967 = vmatpush1.msra.mxu0 0.0
    %968 = vmatprep.subr.mxu0 0.0
    %969 = vmatpush1.msra.mxu0 0.0
    %970 = vmatprep.subr.mxu0 0.0
    %971 = vmatpush1.msra.mxu0 0.0
    %972 = vmatprep.subr.mxu0 0.0
    %973 = vmatpush1.msra.mxu0 0.0
    %974 = vmatprep.subr.mxu0 0.0
    %975 = vmatpush1.msra.mxu0 0.0
    %976 = vmatprep.subr.mxu0 0.0
    %977 = vmatpush1.msra.mxu0 0.0
    %978 = vmatprep.subr.mxu0 0.0
    %979 = vmatpush1.msra.mxu0 0.0
    %980 = vmatprep.subr.mxu0 0.0
    %981 = vmatpush1.msra.mxu0 0.0
    %982 = vmatprep.subr.mxu0 0.0
    %983 = vmatpush1.msra.mxu0 0.0
    %984 = vmatprep.subr.mxu0 0.0
    %985 = vmatpush1.msra.mxu0 0.0
    %986 = vmatprep.subr.mxu0 0.0
    %987 = vmatpush1.msra.mxu0 0.0
    %988 = vmatprep.subr.mxu0 0.0
    %989 = vmatpush1.msra.mxu0 0.0
    %990 = vmatprep.subr.mxu0 0.0
    %991 = vmatpush1.msra.mxu0 0.0
    %992 = vmatprep.subr.mxu0 0.0
    %993 = vmatpush1.msra.mxu0 0.0
    %994 = vmatprep.mubr.f32.mxu0 0.0
    %995 = vmatmul.mubr.f32.gmra.mrb[0].mxu0 %v928
    %v996 = vpop.f32.mrb[0].mxu0
    %v997 = vadd.f32 0.0, %v996
    %v998 = vpop.f32.mrb[0].mxu0
    %999 = vdwg.mxu0
    %v1000 = vadd.f32 %v759, %v997
    %1001 = vrot.lane.b32.xlu0 %v285, 80
    %v1002 = vpop.permute.xlu0 %1001
    %1003 = vrot.lane.b32.xlu0 %v275, 16
    %v1004 = vpop.permute.xlu0 %1003
    %v1005 = vsel %vm59, %v1002, 0
    %v1007 = vsel %vm59, %v1004, 0
    %1009 = vmatprep.subr.mxu0 0.0
    %1010 = vmatpush1.xpose.msra.mxu0 %v1007
    %1011 = vmatprep.subr.mxu0 0.0
    %1012 = vmatpush1.xpose.msra.mxu0 0.0
    %1013 = vmatprep.subr.mxu0 0.0
    %1014 = vmatpush1.xpose.msra.mxu0 0.0
    %1015 = vmatprep.subr.mxu0 0.0
    %1016 = vmatpush1.xpose.msra.mxu0 0.0
    %1017 = vmatprep.subr.mxu0 0.0
    %1018 = vmatpush1.xpose.msra.mxu0 0.0
    %1019 = vmatprep.subr.mxu0 0.0
    %1020 = vmatpush1.xpose.msra.mxu0 0.0
    %1021 = vmatprep.subr.mxu0 0.0
    %1022 = vmatpush1.xpose.msra.mxu0 0.0
    %1023 = vmatprep.subr.mxu0 0.0
    %1024 = vmatpush1.xpose.msra.mxu0 0.0
    %1025 = vmatprep.subr.mxu0 0.0
    %1026 = vmatpush1.xpose.msra.mxu0 0.0
    %1027 = vmatprep.subr.mxu0 0.0
    %1028 = vmatpush1.xpose.msra.mxu0 0.0
    %1029 = vmatprep.subr.mxu0 0.0
    %1030 = vmatpush1.xpose.msra.mxu0 0.0
    %1031 = vmatprep.subr.mxu0 0.0
    %1032 = vmatpush1.xpose.msra.mxu0 0.0
    %1033 = vmatprep.subr.mxu0 0.0
    %1034 = vmatpush1.xpose.msra.mxu0 0.0
    %1035 = vmatprep.subr.mxu0 0.0
    %1036 = vmatpush1.xpose.msra.mxu0 0.0
    %1037 = vmatprep.subr.mxu0 0.0
    %1038 = vmatpush1.xpose.msra.mxu0 0.0
    %1039 = vmatprep.subr.mxu0 0.0
    %1040 = vmatpush1.xpose.msra.mxu0 0.0
    %1041 = vmatprep.subr.mxu0 0.0
    %1042 = vmatpush1.xpose.msra.mxu0 0.0
    %1043 = vmatprep.subr.mxu0 0.0
    %1044 = vmatpush1.xpose.msra.mxu0 0.0
    %1045 = vmatprep.subr.mxu0 0.0
    %1046 = vmatpush1.xpose.msra.mxu0 0.0
    %1047 = vmatprep.subr.mxu0 0.0
    %1048 = vmatpush1.xpose.msra.mxu0 0.0
    %1049 = vmatprep.subr.mxu0 0.0
    %1050 = vmatpush1.xpose.msra.mxu0 0.0
    %1051 = vmatprep.subr.mxu0 0.0
    %1052 = vmatpush1.xpose.msra.mxu0 0.0
    %1053 = vmatprep.subr.mxu0 0.0
    %1054 = vmatpush1.xpose.msra.mxu0 0.0
    %1055 = vmatprep.subr.mxu0 0.0
    %1056 = vmatpush1.xpose.msra.mxu0 0.0
    %1057 = vmatprep.subr.mxu0 0.0
    %1058 = vmatpush1.xpose.msra.mxu0 0.0
    %1059 = vmatprep.subr.mxu0 0.0
    %1060 = vmatpush1.xpose.msra.mxu0 0.0
    %1061 = vmatprep.subr.mxu0 0.0
    %1062 = vmatpush1.xpose.msra.mxu0 0.0
    %1063 = vmatprep.subr.mxu0 0.0
    %1064 = vmatpush1.xpose.msra.mxu0 0.0
    %1065 = vmatprep.subr.mxu0 0.0
    %1066 = vmatpush1.xpose.msra.mxu0 0.0
    %1067 = vmatprep.subr.mxu0 0.0
    %1068 = vmatpush1.xpose.msra.mxu0 0.0
    %1069 = vmatprep.subr.mxu0 0.0
    %1070 = vmatpush1.xpose.msra.mxu0 0.0
    %1071 = vmatprep.subr.mxu0 0.0
    %1072 = vmatpush1.xpose.msra.mxu0 0.0
    %1073 = vmatprep.mubr.f32.mxu0 0.0
    %1074 = vmatmul.mubr.f32.gmra.mrb[0].mxu0 %v1005
    %v1075 = vpop.f32.mrb[0].mxu0
    %v1076 = vadd.f32 %v146, %v1075
    %v1077 = vpop.f32.mrb[0].mxu0
    %1078 = vdwg.mxu0
    %v1079 = vsel %vm365, %v1076, -inf
    %1080 = vmax.xlane.f32.xlu0 %v1079
    %v1081 = vpop.xlane.xlu0 %1080
    %v1082 = vsub.f32 %v1076, %v1081
    %v1083 = vmul.f32 %v1082, 1.442695
    %v1084 = vpow.pop %v1083
    %v1085 = vsel %vm365, %v1084, 0.0
    %1086 = vadd.xlane.f32.xlu0 %v1085
    %v1087 = vpop.xlane.xlu0 %1086
    %v1088 = vrcp.pop %v1087
    %v1089 = vmul.f32 %v1084, %v1088
    %1090 = vrot.lane.b32.xlu0 %v277, 80
    %v1091 = vpop.permute.xlu0 %1090
    %v1094 = vsel %vm365, %v1089, 0
    %1096 = vmatprep.subr.mxu0 0.0
    %1097 = vmatpush1.msra.mxu0 %v1091
    %1098 = vmatprep.subr.mxu0 0.0
    %1099 = vmatpush1.msra.mxu0 0.0
    %1100 = vmatprep.subr.mxu0 0.0
    %1101 = vmatpush1.msra.mxu0 0.0
    %1102 = vmatprep.subr.mxu0 0.0
    %1103 = vmatpush1.msra.mxu0 0.0
    %1104 = vmatprep.subr.mxu0 0.0
    %1105 = vmatpush1.msra.mxu0 0.0
    %1106 = vmatprep.subr.mxu0 0.0
    %1107 = vmatpush1.msra.mxu0 0.0
    %1108 = vmatprep.subr.mxu0 0.0
    %1109 = vmatpush1.msra.mxu0 0.0
    %1110 = vmatprep.subr.mxu0 0.0
    %1111 = vmatpush1.msra.mxu0 0.0
    %1112 = vmatprep.subr.mxu0 0.0
    %1113 = vmatpush1.msra.mxu0 0.0
    %1114 = vmatprep.subr.mxu0 0.0
    %1115 = vmatpush1.msra.mxu0 0.0
    %1116 = vmatprep.subr.mxu0 0.0
    %1117 = vmatpush1.msra.mxu0 0.0
    %1118 = vmatprep.subr.mxu0 0.0
    %1119 = vmatpush1.msra.mxu0 0.0
    %1120 = vmatprep.subr.mxu0 0.0
    %1121 = vmatpush1.msra.mxu0 0.0
    %1122 = vmatprep.subr.mxu0 0.0
    %1123 = vmatpush1.msra.mxu0 0.0
    %1124 = vmatprep.subr.mxu0 0.0
    %1125 = vmatpush1.msra.mxu0 0.0
    %1126 = vmatprep.subr.mxu0 0.0
    %1127 = vmatpush1.msra.mxu0 0.0
    %1128 = vmatprep.subr.mxu0 0.0
    %1129 = vmatpush1.msra.mxu0 0.0
    %1130 = vmatprep.subr.mxu0 0.0
    %1131 = vmatpush1.msra.mxu0 0.0
    %1132 = vmatprep.subr.mxu0 0.0
    %1133 = vmatpush1.msra.mxu0 0.0
    %1134 = vmatprep.subr.mxu0 0.0
    %1135 = vmatpush1.msra.mxu0 0.0
    %1136 = vmatprep.subr.mxu0 0.0
    %1137 = vmatpush1.msra.mxu0 0.0
    %1138 = vmatprep.subr.mxu0 0.0
    %1139 = vmatpush1.msra.mxu0 0.0
    %1140 = vmatprep.subr.mxu0 0.0
    %1141 = vmatpush1.msra.mxu0 0.0
    %1142 = vmatprep.subr.mxu0 0.0
    %1143 = vmatpush1.msra.mxu0 0.0
    %1144 = vmatprep.subr.mxu0 0.0
    %1145 = vmatpush1.msra.mxu0 0.0
    %1146 = vmatprep.subr.mxu0 0.0
    %1147 = vmatpush1.msra.mxu0 0.0
    %1148 = vmatprep.subr.mxu0 0.0
    %1149 = vmatpush1.msra.mxu0 0.0
    %1150 = vmatprep.subr.mxu0 0.0
    %1151 = vmatpush1.msra.mxu0 0.0
    %1152 = vmatprep.subr.mxu0 0.0
    %1153 = vmatpush1.msra.mxu0 0.0
    %1154 = vmatprep.subr.mxu0 0.0
    %1155 = vmatpush1.msra.mxu0 0.0
    %1156 = vmatprep.subr.mxu0 0.0
    %1157 = vmatpush1.msra.mxu0 0.0
    %1158 = vmatprep.subr.mxu0 0.0
    %1159 = vmatpush1.msra.mxu0 0.0
    %1160 = vmatprep.mubr.f32.mxu0 0.0
    %1161 = vmatmul.mubr.f32.gmra.mrb[0].mxu0 %v1094
    %v1162 = vpop.f32.mrb[0].mxu0
    %v1163 = vadd.f32 0.0, %v1162
    %v1164 = vpop.f32.mrb[0].mxu0
    %1165 = vdwg.mxu0
    %v1167 = vsel %vm59, %v1163, 0
    %1169 = vmatprep.subr.mxu0 0.0
    %1170 = vmatpush1.msra.mxu0 %v153
    %1171 = vmatprep.subr.mxu0 0.0
    %1172 = vmatpush1.msra.mxu0 %v154
    %1173 = vmatprep.subr.mxu0 0.0
    %1174 = vmatpush1.msra.mxu0 0.0
    %1175 = vmatprep.subr.mxu0 0.0
    %1176 = vmatpush1.msra.mxu0 0.0
    %1177 = vmatprep.subr.mxu0 0.0
    %1178 = vmatpush1.msra.mxu0 0.0
    %1179 = vmatprep.subr.mxu0 0.0
    %1180 = vmatpush1.msra.mxu0 0.0
    %1181 = vmatprep.subr.mxu0 0.0
    %1182 = vmatpush1.msra.mxu0 0.0
    %1183 = vmatprep.subr.mxu0 0.0
    %1184 = vmatpush1.msra.mxu0 0.0
    %1185 = vmatprep.subr.mxu0 0.0
    %1186 = vmatpush1.msra.mxu0 0.0
    %1187 = vmatprep.subr.mxu0 0.0
    %1188 = vmatpush1.msra.mxu0 0.0
    %1189 = vmatprep.subr.mxu0 0.0
    %1190 = vmatpush1.msra.mxu0 0.0
    %1191 = vmatprep.subr.mxu0 0.0
    %1192 = vmatpush1.msra.mxu0 0.0
    %1193 = vmatprep.subr.mxu0 0.0
    %1194 = vmatpush1.msra.mxu0 0.0
    %1195 = vmatprep.subr.mxu0 0.0
    %1196 = vmatpush1.msra.mxu0 0.0
    %1197 = vmatprep.subr.mxu0 0.0
    %1198 = vmatpush1.msra.mxu0 0.0
    %1199 = vmatprep.subr.mxu0 0.0
    %1200 = vmatpush1.msra.mxu0 0.0
    %1201 = vmatprep.subr.mxu0 0.0
    %1202 = vmatpush1.msra.mxu0 0.0
    %1203 = vmatprep.subr.mxu0 0.0
    %1204 = vmatpush1.msra.mxu0 0.0
    %1205 = vmatprep.subr.mxu0 0.0
    %1206 = vmatpush1.msra.mxu0 0.0
    %1207 = vmatprep.subr.mxu0 0.0
    %1208 = vmatpush1.msra.mxu0 0.0
    %1209 = vmatprep.subr.mxu0 0.0
    %1210 = vmatpush1.msra.mxu0 0.0
    %1211 = vmatprep.subr.mxu0 0.0
    %1212 = vmatpush1.msra.mxu0 0.0
    %1213 = vmatprep.subr.mxu0 0.0
    %1214 = vmatpush1.msra.mxu0 0.0
    %1215 = vmatprep.subr.mxu0 0.0
    %1216 = vmatpush1.msra.mxu0 0.0
    %1217 = vmatprep.subr.mxu0 0.0
    %1218 = vmatpush1.msra.mxu0 0.0
    %1219 = vmatprep.subr.mxu0 0.0
    %1220 = vmatpush1.msra.mxu0 0.0
    %1221 = vmatprep.subr.mxu0 0.0
    %1222 = vmatpush1.msra.mxu0 0.0
    %1223 = vmatprep.subr.mxu0 0.0
    %1224 = vmatpush1.msra.mxu0 0.0
    %1225 = vmatprep.subr.mxu0 0.0
    %1226 = vmatpush1.msra.mxu0 0.0
    %1227 = vmatprep.subr.mxu0 0.0
    %1228 = vmatpush1.msra.mxu0 0.0
    %1229 = vmatprep.subr.mxu0 0.0
    %1230 = vmatpush1.msra.mxu0 0.0
    %1231 = vmatprep.subr.mxu0 0.0
    %1232 = vmatpush1.msra.mxu0 0.0
    %1233 = vmatprep.mubr.f32.mxu0 0.0
    %1234 = vmatmul.mubr.f32.gmra.mrb[0].mxu0 %v1167
    %v1235 = vpop.f32.mrb[0].mxu0
    %v1236 = vadd.f32 0.0, %v1235
    %v1237 = vpop.f32.mrb[0].mxu0
    %1238 = vdwg.mxu0
    %v1239 = vadd.f32 %v1000, %v1236
    %1241 = vrot.lane.b32.xlu0 %v281, 64
    %v1242 = vpop.permute.xlu0 %1241
    %v1244 = vsel %vm59, %v286, 0
    %v1246 = vsel %vm59, %v1242, 0
    %1248 = vmatprep.subr.mxu0 0.0
    %1249 = vmatpush1.xpose.msra.mxu0 %v1246
    %1250 = vmatprep.subr.mxu0 0.0
    %1251 = vmatpush1.xpose.msra.mxu0 0.0
    %1252 = vmatprep.subr.mxu0 0.0
    %1253 = vmatpush1.xpose.msra.mxu0 0.0
    %1254 = vmatprep.subr.mxu0 0.0
    %1255 = vmatpush1.xpose.msra.mxu0 0.0
    %1256 = vmatprep.subr.mxu0 0.0
    %1257 = vmatpush1.xpose.msra.mxu0 0.0
    %1258 = vmatprep.subr.mxu0 0.0
    %1259 = vmatpush1.xpose.msra.mxu0 0.0
    %1260 = vmatprep.subr.mxu0 0.0
    %1261 = vmatpush1.xpose.msra.mxu0 0.0
    %1262 = vmatprep.subr.mxu0 0.0
    %1263 = vmatpush1.xpose.msra.mxu0 0.0
    %1264 = vmatprep.subr.mxu0 0.0
    %1265 = vmatpush1.xpose.msra.mxu0 0.0
    %1266 = vmatprep.subr.mxu0 0.0
    %1267 = vmatpush1.xpose.msra.mxu0 0.0
    %1268 = vmatprep.subr.mxu0 0.0
    %1269 = vmatpush1.xpose.msra.mxu0 0.0
    %1270 = vmatprep.subr.mxu0 0.0
    %1271 = vmatpush1.xpose.msra.mxu0 0.0
    %1272 = vmatprep.subr.mxu0 0.0
    %1273 = vmatpush1.xpose.msra.mxu0 0.0
    %1274 = vmatprep.subr.mxu0 0.0
    %1275 = vmatpush1.xpose.msra.mxu0 0.0
    %1276 = vmatprep.subr.mxu0 0.0
    %1277 = vmatpush1.xpose.msra.mxu0 0.0
    %1278 = vmatprep.subr.mxu0 0.0
    %1279 = vmatpush1.xpose.msra.mxu0 0.0
    %1280 = vmatprep.subr.mxu0 0.0
    %1281 = vmatpush1.xpose.msra.mxu0 0.0
    %1282 = vmatprep.subr.mxu0 0.0
    %1283 = vmatpush1.xpose.msra.mxu0 0.0
    %1284 = vmatprep.subr.mxu0 0.0
    %1285 = vmatpush1.xpose.msra.mxu0 0.0
    %1286 = vmatprep.subr.mxu0 0.0
    %1287 = vmatpush1.xpose.msra.mxu0 0.0
    %1288 = vmatprep.subr.mxu0 0.0
    %1289 = vmatpush1.xpose.msra.mxu0 0.0
    %1290 = vmatprep.subr.mxu0 0.0
    %1291 = vmatpush1.xpose.msra.mxu0 0.0
    %1292 = vmatprep.subr.mxu0 0.0
    %1293 = vmatpush1.xpose.msra.mxu0 0.0
    %1294 = vmatprep.subr.mxu0 0.0
    %1295 = vmatpush1.xpose.msra.mxu0 0.0
    %1296 = vmatprep.subr.mxu0 0.0
    %1297 = vmatpush1.xpose.msra.mxu0 0.0
    %1298 = vmatprep.subr.mxu0 0.0
    %1299 = vmatpush1.xpose.msra.mxu0 0.0
    %1300 = vmatprep.subr.mxu0 0.0
    %1301 = vmatpush1.xpose.msra.mxu0 0.0
    %1302 = vmatprep.subr.mxu0 0.0
    %1303 = vmatpush1.xpose.msra.mxu0 0.0
    %1304 = vmatprep.subr.mxu0 0.0
    %1305 = vmatpush1.xpose.msra.mxu0 0.0
    %1306 = vmatprep.subr.mxu0 0.0
    %1307 = vmatpush1.xpose.msra.mxu0 0.0
    %1308 = vmatprep.subr.mxu0 0.0
    %1309 = vmatpush1.xpose.msra.mxu0 0.0
    %1310 = vmatprep.subr.mxu0 0.0
    %1311 = vmatpush1.xpose.msra.mxu0 0.0
    %1312 = vmatprep.mubr.f32.mxu0 0.0
    %1313 = vmatmul.mubr.f32.gmra.mrb[0].mxu0 %v1244
    %v1314 = vpop.f32.mrb[0].mxu0
    %v1315 = vadd.f32 %v146, %v1314
    %v1316 = vpop.f32.mrb[0].mxu0
    %1317 = vdwg.mxu0
    %v1318 = vsel %vm365, %v1315, -inf
    %1319 = vmax.xlane.f32.xlu0 %v1318
    %v1320 = vpop.xlane.xlu0 %1319
    %v1321 = vsub.f32 %v1315, %v1320
    %v1322 = vmul.f32 %v1321, 1.442695
    %v1323 = vpow.pop %v1322
    %v1324 = vsel %vm365, %v1323, 0.0
    %1325 = vadd.xlane.f32.xlu0 %v1324
    %v1326 = vpop.xlane.xlu0 %1325
    %v1327 = vrcp.pop %v1326
    %v1328 = vmul.f32 %v1323, %v1327
    %v1330 = vsel %vm365, %v1328, 0
    %1332 = vmatprep.subr.mxu0 0.0
    %1333 = vmatpush1.msra.mxu0 %v283
    %1334 = vmatprep.subr.mxu0 0.0
    %1335 = vmatpush1.msra.mxu0 0.0
    %1336 = vmatprep.subr.mxu0 0.0
    %1337 = vmatpush1.msra.mxu0 0.0
    %1338 = vmatprep.subr.mxu0 0.0
    %1339 = vmatpush1.msra.mxu0 0.0
    %1340 = vmatprep.subr.mxu0 0.0
    %1341 = vmatpush1.msra.mxu0 0.0
    %1342 = vmatprep.subr.mxu0 0.0
    %1343 = vmatpush1.msra.mxu0 0.0
    %1344 = vmatprep.subr.mxu0 0.0
    %1345 = vmatpush1.msra.mxu0 0.0
    %1346 = vmatprep.subr.mxu0 0.0
    %1347 = vmatpush1.msra.mxu0 0.0
    %1348 = vmatprep.subr.mxu0 0.0
    %1349 = vmatpush1.msra.mxu0 0.0
    %1350 = vmatprep.subr.mxu0 0.0
    %1351 = vmatpush1.msra.mxu0 0.0
    %1352 = vmatprep.subr.mxu0 0.0
    %1353 = vmatpush1.msra.mxu0 0.0
    %1354 = vmatprep.subr.mxu0 0.0
    %1355 = vmatpush1.msra.mxu0 0.0
    %1356 = vmatprep.subr.mxu0 0.0
    %1357 = vmatpush1.msra.mxu0 0.0
    %1358 = vmatprep.subr.mxu0 0.0
    %1359 = vmatpush1.msra.mxu0 0.0
    %1360 = vmatprep.subr.mxu0 0.0
    %1361 = vmatpush1.msra.mxu0 0.0
    %1362 = vmatprep.subr.mxu0 0.0
    %1363 = vmatpush1.msra.mxu0 0.0
    %1364 = vmatprep.subr.mxu0 0.0
    %1365 = vmatpush1.msra.mxu0 0.0
    %1366 = vmatprep.subr.mxu0 0.0
    %1367 = vmatpush1.msra.mxu0 0.0
    %1368 = vmatprep.subr.mxu0 0.0
    %1369 = vmatpush1.msra.mxu0 0.0
    %1370 = vmatprep.subr.mxu0 0.0
    %1371 = vmatpush1.msra.mxu0 0.0
    %1372 = vmatprep.subr.mxu0 0.0
    %1373 = vmatpush1.msra.mxu0 0.0
    %1374 = vmatprep.subr.mxu0 0.0
    %1375 = vmatpush1.msra.mxu0 0.0
    %1376 = vmatprep.subr.mxu0 0.0
    %1377 = vmatpush1.msra.mxu0 0.0
    %1378 = vmatprep.subr.mxu0 0.0
    %1379 = vmatpush1.msra.mxu0 0.0
    %1380 = vmatprep.subr.mxu0 0.0
    %1381 = vmatpush1.msra.mxu0 0.0
    %1382 = vmatprep.subr.mxu0 0.0
    %1383 = vmatpush1.msra.mxu0 0.0
    %1384 = vmatprep.subr.mxu0 0.0
    %1385 = vmatpush1.msra.mxu0 0.0
    %1386 = vmatprep.subr.mxu0 0.0
    %1387 = vmatpush1.msra.mxu0 0.0
    %1388 = vmatprep.subr.mxu0 0.0
    %1389 = vmatpush1.msra.mxu0 0.0
    %1390 = vmatprep.subr.mxu0 0.0
    %1391 = vmatpush1.msra.mxu0 0.0
    %1392 = vmatprep.subr.mxu0 0.0
    %1393 = vmatpush1.msra.mxu0 0.0
    %1394 = vmatprep.subr.mxu0 0.0
    %1395 = vmatpush1.msra.mxu0 0.0
    %1396 = vmatprep.mubr.f32.mxu0 0.0
    %1397 = vmatmul.mubr.f32.gmra.mrb[0].mxu0 %v1330
    %v1398 = vpop.f32.mrb[0].mxu0
    %v1399 = vadd.f32 0.0, %v1398
    %v1400 = vpop.f32.mrb[0].mxu0
    %1401 = vdwg.mxu0
    %1402 = vrot.lane.b32.xlu0 %v286, 112
    %v1403 = vpop.permute.xlu0 %1402
    %1404 = vrot.lane.b32.xlu0 %v281, 48
    %v1405 = vpop.permute.xlu0 %1404
    %v1406 = vsel %vm59, %v1403, 0
    %v1408 = vsel %vm59, %v1405, 0
    %1410 = vmatprep.subr.mxu0 0.0
    %1411 = vmatpush1.xpose.msra.mxu0 %v1408
    %1412 = vmatprep.subr.mxu0 0.0
    %1413 = vmatpush1.xpose.msra.mxu0 0.0
    %1414 = vmatprep.subr.mxu0 0.0
    %1415 = vmatpush1.xpose.msra.mxu0 0.0
    %1416 = vmatprep.subr.mxu0 0.0
    %1417 = vmatpush1.xpose.msra.mxu0 0.0
    %1418 = vmatprep.subr.mxu0 0.0
    %1419 = vmatpush1.xpose.msra.mxu0 0.0
    %1420 = vmatprep.subr.mxu0 0.0
    %1421 = vmatpush1.xpose.msra.mxu0 0.0
    %1422 = vmatprep.subr.mxu0 0.0
    %1423 = vmatpush1.xpose.msra.mxu0 0.0
    %1424 = vmatprep.subr.mxu0 0.0
    %1425 = vmatpush1.xpose.msra.mxu0 0.0
    %1426 = vmatprep.subr.mxu0 0.0
    %1427 = vmatpush1.xpose.msra.mxu0 0.0
    %1428 = vmatprep.subr.mxu0 0.0
    %1429 = vmatpush1.xpose.msra.mxu0 0.0
    %1430 = vmatprep.subr.mxu0 0.0
    %1431 = vmatpush1.xpose.msra.mxu0 0.0
    %1432 = vmatprep.subr.mxu0 0.0
    %1433 = vmatpush1.xpose.msra.mxu0 0.0
    %1434 = vmatprep.subr.mxu0 0.0
    %1435 = vmatpush1.xpose.msra.mxu0 0.0
    %1436 = vmatprep.subr.mxu0 0.0
    %1437 = vmatpush1.xpose.msra.mxu0 0.0
    %1438 = vmatprep.subr.mxu0 0.0
    %1439 = vmatpush1.xpose.msra.mxu0 0.0
    %1440 = vmatprep.subr.mxu0 0.0
    %1441 = vmatpush1.xpose.msra.mxu0 0.0
    %1442 = vmatprep.subr.mxu0 0.0
    %1443 = vmatpush1.xpose.msra.mxu0 0.0
    %1444 = vmatprep.subr.mxu0 0.0
    %1445 = vmatpush1.xpose.msra.mxu0 0.0
    %1446 = vmatprep.subr.mxu0 0.0
    %1447 = vmatpush1.xpose.msra.mxu0 0.0
    %1448 = vmatprep.subr.mxu0 0.0
    %1449 = vmatpush1.xpose.msra.mxu0 0.0
    %1450 = vmatprep.subr.mxu0 0.0
    %1451 = vmatpush1.xpose.msra.mxu0 0.0
    %1452 = vmatprep.subr.mxu0 0.0
    %1453 = vmatpush1.xpose.msra.mxu0 0.0
    %1454 = vmatprep.subr.mxu0 0.0
    %1455 = vmatpush1.xpose.msra.mxu0 0.0
    %1456 = vmatprep.subr.mxu0 0.0
    %1457 = vmatpush1.xpose.msra.mxu0 0.0
    %1458 = vmatprep.subr.mxu0 0.0
    %1459 = vmatpush1.xpose.msra.mxu0 0.0
    %1460 = vmatprep.subr.mxu0 0.0
    %1461 = vmatpush1.xpose.msra.mxu0 0.0
    %1462 = vmatprep.subr.mxu0 0.0
    %1463 = vmatpush1.xpose.msra.mxu0 0.0
    %1464 = vmatprep.subr.mxu0 0.0
    %1465 = vmatpush1.xpose.msra.mxu0 0.0
    %1466 = vmatprep.subr.mxu0 0.0
    %1467 = vmatpush1.xpose.msra.mxu0 0.0
    %1468 = vmatprep.subr.mxu0 0.0
    %1469 = vmatpush1.xpose.msra.mxu0 0.0
    %1470 = vmatprep.subr.mxu0 0.0
    %1471 = vmatpush1.xpose.msra.mxu0 0.0
    %1472 = vmatprep.subr.mxu0 0.0
    %1473 = vmatpush1.xpose.msra.mxu0 0.0
    %1474 = vmatprep.mubr.f32.mxu0 0.0
    %1475 = vmatmul.mubr.f32.gmra.mrb[0].mxu0 %v1406
    %v1476 = vpop.f32.mrb[0].mxu0
    %v1477 = vadd.f32 %v146, %v1476
    %v1478 = vpop.f32.mrb[0].mxu0
    %1479 = vdwg.mxu0
    %v1480 = vsel %vm365, %v1477, -inf
    %1481 = vmax.xlane.f32.xlu0 %v1480
    %v1482 = vpop.xlane.xlu0 %1481
    %v1483 = vsub.f32 %v1477, %v1482
    %v1484 = vmul.f32 %v1483, 1.442695
    %v1485 = vpow.pop %v1484
    %v1486 = vsel %vm365, %v1485, 0.0
    %1487 = vadd.xlane.f32.xlu0 %v1486
    %v1488 = vpop.xlane.xlu0 %1487
    %v1489 = vrcp.pop %v1488
    %v1490 = vmul.f32 %v1485, %v1489
    %1492 = vrot.lane.b32.xlu0 %v283, 112
    %v1493 = vpop.permute.xlu0 %1492
    %v1496 = vsel %vm365, %v1490, 0
    %1498 = vmatprep.subr.mxu0 0.0
    %1499 = vmatpush1.msra.mxu0 %v1493
    %1500 = vmatprep.subr.mxu0 0.0
    %1501 = vmatpush1.msra.mxu0 0.0
    %1502 = vmatprep.subr.mxu0 0.0
    %1503 = vmatpush1.msra.mxu0 0.0
    %1504 = vmatprep.subr.mxu0 0.0
    %1505 = vmatpush1.msra.mxu0 0.0
    %1506 = vmatprep.subr.mxu0 0.0
    %1507 = vmatpush1.msra.mxu0 0.0
    %1508 = vmatprep.subr.mxu0 0.0
    %1509 = vmatpush1.msra.mxu0 0.0
    %1510 = vmatprep.subr.mxu0 0.0
    %1511 = vmatpush1.msra.mxu0 0.0
    %1512 = vmatprep.subr.mxu0 0.0
    %1513 = vmatpush1.msra.mxu0 0.0
    %1514 = vmatprep.subr.mxu0 0.0
    %1515 = vmatpush1.msra.mxu0 0.0
    %1516 = vmatprep.subr.mxu0 0.0
    %1517 = vmatpush1.msra.mxu0 0.0
    %1518 = vmatprep.subr.mxu0 0.0
    %1519 = vmatpush1.msra.mxu0 0.0
    %1520 = vmatprep.subr.mxu0 0.0
    %1521 = vmatpush1.msra.mxu0 0.0
    %1522 = vmatprep.subr.mxu0 0.0
    %1523 = vmatpush1.msra.mxu0 0.0
    %1524 = vmatprep.subr.mxu0 0.0
    %1525 = vmatpush1.msra.mxu0 0.0
    %1526 = vmatprep.subr.mxu0 0.0
    %1527 = vmatpush1.msra.mxu0 0.0
    %1528 = vmatprep.subr.mxu0 0.0
    %1529 = vmatpush1.msra.mxu0 0.0
    %1530 = vmatprep.subr.mxu0 0.0
    %1531 = vmatpush1.msra.mxu0 0.0
    %1532 = vmatprep.subr.mxu0 0.0
    %1533 = vmatpush1.msra.mxu0 0.0
    %1534 = vmatprep.subr.mxu0 0.0
    %1535 = vmatpush1.msra.mxu0 0.0
    %1536 = vmatprep.subr.mxu0 0.0
    %1537 = vmatpush1.msra.mxu0 0.0
    %1538 = vmatprep.subr.mxu0 0.0
    %1539 = vmatpush1.msra.mxu0 0.0
    %1540 = vmatprep.subr.mxu0 0.0
    %1541 = vmatpush1.msra.mxu0 0.0
    %1542 = vmatprep.subr.mxu0 0.0
    %1543 = vmatpush1.msra.mxu0 0.0
    %1544 = vmatprep.subr.mxu0 0.0
    %1545 = vmatpush1.msra.mxu0 0.0
    %1546 = vmatprep.subr.mxu0 0.0
    %1547 = vmatpush1.msra.mxu0 0.0
    %1548 = vmatprep.subr.mxu0 0.0
    %1549 = vmatpush1.msra.mxu0 0.0
    %1550 = vmatprep.subr.mxu0 0.0
    %1551 = vmatpush1.msra.mxu0 0.0
    %1552 = vmatprep.subr.mxu0 0.0
    %1553 = vmatpush1.msra.mxu0 0.0
    %1554 = vmatprep.subr.mxu0 0.0
    %1555 = vmatpush1.msra.mxu0 0.0
    %1556 = vmatprep.subr.mxu0 0.0
    %1557 = vmatpush1.msra.mxu0 0.0
    %1558 = vmatprep.subr.mxu0 0.0
    %1559 = vmatpush1.msra.mxu0 0.0
    %1560 = vmatprep.subr.mxu0 0.0
    %1561 = vmatpush1.msra.mxu0 0.0
    %1562 = vmatprep.mubr.f32.mxu0 0.0
    %1563 = vmatmul.mubr.f32.gmra.mrb[0].mxu0 %v1496
    %v1564 = vpop.f32.mrb[0].mxu0
    %v1565 = vadd.f32 0.0, %v1564
    %v1566 = vpop.f32.mrb[0].mxu0
    %1567 = vdwg.mxu0
    %v1569 = vsel %vm59, %v1565, 0
    %1571 = vmatprep.subr.mxu0 0.0
    %1572 = vmatpush1.msra.mxu0 %v149
    %1573 = vmatprep.subr.mxu0 0.0
    %1574 = vmatpush1.msra.mxu0 %v150
    %1575 = vmatprep.subr.mxu0 0.0
    %1576 = vmatpush1.msra.mxu0 0.0
    %1577 = vmatprep.subr.mxu0 0.0
    %1578 = vmatpush1.msra.mxu0 0.0
    %1579 = vmatprep.subr.mxu0 0.0
    %1580 = vmatpush1.msra.mxu0 0.0
    %1581 = vmatprep.subr.mxu0 0.0
    %1582 = vmatpush1.msra.mxu0 0.0
    %1583 = vmatprep.subr.mxu0 0.0
    %1584 = vmatpush1.msra.mxu0 0.0
    %1585 = vmatprep.subr.mxu0 0.0
    %1586 = vmatpush1.msra.mxu0 0.0
    %1587 = vmatprep.subr.mxu0 0.0
    %1588 = vmatpush1.msra.mxu0 0.0
    %1589 = vmatprep.subr.mxu0 0.0
    %1590 = vmatpush1.msra.mxu0 0.0
    %1591 = vmatprep.subr.mxu0 0.0
    %1592 = vmatpush1.msra.mxu0 0.0
    %1593 = vmatprep.subr.mxu0 0.0
    %1594 = vmatpush1.msra.mxu0 0.0
    %1595 = vmatprep.subr.mxu0 0.0
    %1596 = vmatpush1.msra.mxu0 0.0
    %1597 = vmatprep.subr.mxu0 0.0
    %1598 = vmatpush1.msra.mxu0 0.0
    %1599 = vmatprep.subr.mxu0 0.0
    %1600 = vmatpush1.msra.mxu0 0.0
    %1601 = vmatprep.subr.mxu0 0.0
    %1602 = vmatpush1.msra.mxu0 0.0
    %1603 = vmatprep.subr.mxu0 0.0
    %1604 = vmatpush1.msra.mxu0 0.0
    %1605 = vmatprep.subr.mxu0 0.0
    %1606 = vmatpush1.msra.mxu0 0.0
    %1607 = vmatprep.subr.mxu0 0.0
    %1608 = vmatpush1.msra.mxu0 0.0
    %1609 = vmatprep.subr.mxu0 0.0
    %1610 = vmatpush1.msra.mxu0 0.0
    %1611 = vmatprep.subr.mxu0 0.0
    %1612 = vmatpush1.msra.mxu0 0.0
    %1613 = vmatprep.subr.mxu0 0.0
    %1614 = vmatpush1.msra.mxu0 0.0
    %1615 = vmatprep.subr.mxu0 0.0
    %1616 = vmatpush1.msra.mxu0 0.0
    %1617 = vmatprep.subr.mxu0 0.0
    %1618 = vmatpush1.msra.mxu0 0.0
    %1619 = vmatprep.subr.mxu0 0.0
    %1620 = vmatpush1.msra.mxu0 0.0
    %1621 = vmatprep.subr.mxu0 0.0
    %1622 = vmatpush1.msra.mxu0 0.0
    %1623 = vmatprep.subr.mxu0 0.0
    %1624 = vmatpush1.msra.mxu0 0.0
    %1625 = vmatprep.subr.mxu0 0.0
    %1626 = vmatpush1.msra.mxu0 0.0
    %1627 = vmatprep.subr.mxu0 0.0
    %1628 = vmatpush1.msra.mxu0 0.0
    %1629 = vmatprep.subr.mxu0 0.0
    %1630 = vmatpush1.msra.mxu0 0.0
    %1631 = vmatprep.subr.mxu0 0.0
    %1632 = vmatpush1.msra.mxu0 0.0
    %1633 = vmatprep.subr.mxu0 0.0
    %1634 = vmatpush1.msra.mxu0 0.0
    %1635 = vmatprep.mubr.f32.mxu0 0.0
    %1636 = vmatmul.mubr.f32.gmra.mrb[0].mxu0 %v1569
    %v1637 = vpop.f32.mrb[0].mxu0
    %v1638 = vadd.f32 0.0, %v1637
    %v1639 = vpop.f32.mrb[0].mxu0
    %1640 = vdwg.mxu0
    %v1642 = vsel %vm59, %v1399, 0
    %1644 = vmatprep.subr.mxu0 0.0
    %1645 = vmatpush1.msra.mxu0 %v147
    %1646 = vmatprep.subr.mxu0 0.0
    %1647 = vmatpush1.msra.mxu0 %v148
    %1648 = vmatprep.subr.mxu0 0.0
    %1649 = vmatpush1.msra.mxu0 0.0
    %1650 = vmatprep.subr.mxu0 0.0
    %1651 = vmatpush1.msra.mxu0 0.0
    %1652 = vmatprep.subr.mxu0 0.0
    %1653 = vmatpush1.msra.mxu0 0.0
    %1654 = vmatprep.subr.mxu0 0.0
    %1655 = vmatpush1.msra.mxu0 0.0
    %1656 = vmatprep.subr.mxu0 0.0
    %1657 = vmatpush1.msra.mxu0 0.0
    %1658 = vmatprep.subr.mxu0 0.0
    %1659 = vmatpush1.msra.mxu0 0.0
    %1660 = vmatprep.subr.mxu0 0.0
    %1661 = vmatpush1.msra.mxu0 0.0
    %1662 = vmatprep.subr.mxu0 0.0
    %1663 = vmatpush1.msra.mxu0 0.0
    %1664 = vmatprep.subr.mxu0 0.0
    %1665 = vmatpush1.msra.mxu0 0.0
    %1666 = vmatprep.subr.mxu0 0.0
    %1667 = vmatpush1.msra.mxu0 0.0
    %1668 = vmatprep.subr.mxu0 0.0
    %1669 = vmatpush1.msra.mxu0 0.0
    %1670 = vmatprep.subr.mxu0 0.0
    %1671 = vmatpush1.msra.mxu0 0.0
    %1672 = vmatprep.subr.mxu0 0.0
    %1673 = vmatpush1.msra.mxu0 0.0
    %1674 = vmatprep.subr.mxu0 0.0
    %1675 = vmatpush1.msra.mxu0 0.0
    %1676 = vmatprep.subr.mxu0 0.0
    %1677 = vmatpush1.msra.mxu0 0.0
    %1678 = vmatprep.subr.mxu0 0.0
    %1679 = vmatpush1.msra.mxu0 0.0
    %1680 = vmatprep.subr.mxu0 0.0
    %1681 = vmatpush1.msra.mxu0 0.0
    %1682 = vmatprep.subr.mxu0 0.0
    %1683 = vmatpush1.msra.mxu0 0.0
    %1684 = vmatprep.subr.mxu0 0.0
    %1685 = vmatpush1.msra.mxu0 0.0
    %1686 = vmatprep.subr.mxu0 0.0
    %1687 = vmatpush1.msra.mxu0 0.0
    %1688 = vmatprep.subr.mxu0 0.0
    %1689 = vmatpush1.msra.mxu0 0.0
    %1690 = vmatprep.subr.mxu0 0.0
    %1691 = vmatpush1.msra.mxu0 0.0
    %1692 = vmatprep.subr.mxu0 0.0
    %1693 = vmatpush1.msra.mxu0 0.0
    %1694 = vmatprep.subr.mxu0 0.0
    %1695 = vmatpush1.msra.mxu0 0.0
    %1696 = vmatprep.subr.mxu0 0.0
    %1697 = vmatpush1.msra.mxu0 0.0
    %1698 = vmatprep.subr.mxu0 0.0
    %1699 = vmatpush1.msra.mxu0 0.0
    %1700 = vmatprep.subr.mxu0 0.0
    %1701 = vmatpush1.msra.mxu0 0.0
    %1702 = vmatprep.subr.mxu0 0.0
    %1703 = vmatpush1.msra.mxu0 0.0
    %1704 = vmatprep.subr.mxu0 0.0
    %1705 = vmatpush1.msra.mxu0 0.0
    %1706 = vmatprep.subr.mxu0 0.0
    %1707 = vmatpush1.msra.mxu0 0.0
    %1708 = vmatprep.mubr.f32.mxu0 0.0
    %1709 = vmatmul.mubr.f32.gmra.mrb[0].mxu0 %v1642
    %v1710 = vpop.f32.mrb[0].mxu0
    %v1711 = vadd.f32 %v1638, %v1710
    %v1712 = vpop.f32.mrb[0].mxu0
    %1713 = vdwg.mxu0
    %1714 = vrot.lane.b32.xlu0 %v286, 96
    %v1715 = vpop.permute.xlu0 %1714
    %1716 = vrot.lane.b32.xlu0 %v281, 32
    %v1717 = vpop.permute.xlu0 %1716
    %v1718 = vsel %vm59, %v1715, 0
    %v1720 = vsel %vm59, %v1717, 0
    %1722 = vmatprep.subr.mxu0 0.0
    %1723 = vmatpush1.xpose.msra.mxu0 %v1720
    %1724 = vmatprep.subr.mxu0 0.0
    %1725 = vmatpush1.xpose.msra.mxu0 0.0
    %1726 = vmatprep.subr.mxu0 0.0
    %1727 = vmatpush1.xpose.msra.mxu0 0.0
    %1728 = vmatprep.subr.mxu0 0.0
    %1729 = vmatpush1.xpose.msra.mxu0 0.0
    %1730 = vmatprep.subr.mxu0 0.0
    %1731 = vmatpush1.xpose.msra.mxu0 0.0
    %1732 = vmatprep.subr.mxu0 0.0
    %1733 = vmatpush1.xpose.msra.mxu0 0.0
    %1734 = vmatprep.subr.mxu0 0.0
    %1735 = vmatpush1.xpose.msra.mxu0 0.0
    %1736 = vmatprep.subr.mxu0 0.0
    %1737 = vmatpush1.xpose.msra.mxu0 0.0
    %1738 = vmatprep.subr.mxu0 0.0
    %1739 = vmatpush1.xpose.msra.mxu0 0.0
    %1740 = vmatprep.subr.mxu0 0.0
    %1741 = vmatpush1.xpose.msra.mxu0 0.0
    %1742 = vmatprep.subr.mxu0 0.0
    %1743 = vmatpush1.xpose.msra.mxu0 0.0
    %1744 = vmatprep.subr.mxu0 0.0
    %1745 = vmatpush1.xpose.msra.mxu0 0.0
    %1746 = vmatprep.subr.mxu0 0.0
    %1747 = vmatpush1.xpose.msra.mxu0 0.0
    %1748 = vmatprep.subr.mxu0 0.0
    %1749 = vmatpush1.xpose.msra.mxu0 0.0
    %1750 = vmatprep.subr.mxu0 0.0
    %1751 = vmatpush1.xpose.msra.mxu0 0.0
    %1752 = vmatprep.subr.mxu0 0.0
    %1753 = vmatpush1.xpose.msra.mxu0 0.0
    %1754 = vmatprep.subr.mxu0 0.0
    %1755 = vmatpush1.xpose.msra.mxu0 0.0
    %1756 = vmatprep.subr.mxu0 0.0
    %1757 = vmatpush1.xpose.msra.mxu0 0.0
    %1758 = vmatprep.subr.mxu0 0.0
    %1759 = vmatpush1.xpose.msra.mxu0 0.0
    %1760 = vmatprep.subr.mxu0 0.0
    %1761 = vmatpush1.xpose.msra.mxu0 0.0
    %1762 = vmatprep.subr.mxu0 0.0
    %1763 = vmatpush1.xpose.msra.mxu0 0.0
    %1764 = vmatprep.subr.mxu0 0.0
    %1765 = vmatpush1.xpose.msra.mxu0 0.0
    %1766 = vmatprep.subr.mxu0 0.0
    %1767 = vmatpush1.xpose.msra.mxu0 0.0
    %1768 = vmatprep.subr.mxu0 0.0
    %1769 = vmatpush1.xpose.msra.mxu0 0.0
    %1770 = vmatprep.subr.mxu0 0.0
    %1771 = vmatpush1.xpose.msra.mxu0 0.0
    %1772 = vmatprep.subr.mxu0 0.0
    %1773 = vmatpush1.xpose.msra.mxu0 0.0
    %1774 = vmatprep.subr.mxu0 0.0
    %1775 = vmatpush1.xpose.msra.mxu0 0.0
    %1776 = vmatprep.subr.mxu0 0.0
    %1777 = vmatpush1.xpose.msra.mxu0 0.0
    %1778 = vmatprep.subr.mxu0 0.0
    %1779 = vmatpush1.xpose.msra.mxu0 0.0
    %1780 = vmatprep.subr.mxu0 0.0
    %1781 = vmatpush1.xpose.msra.mxu0 0.0
    %1782 = vmatprep.subr.mxu0 0.0
    %1783 = vmatpush1.xpose.msra.mxu0 0.0
    %1784 = vmatprep.subr.mxu0 0.0
    %1785 = vmatpush1.xpose.msra.mxu0 0.0
    %1786 = vmatprep.mubr.f32.mxu0 0.0
    %1787 = vmatmul.mubr.f32.gmra.mrb[0].mxu0 %v1718
    %v1788 = vpop.f32.mrb[0].mxu0
    %v1789 = vadd.f32 %v146, %v1788
    %v1790 = vpop.f32.mrb[0].mxu0
    %1791 = vdwg.mxu0
    %v1792 = vsel %vm365, %v1789, -inf
    %1793 = vmax.xlane.f32.xlu0 %v1792
    %v1794 = vpop.xlane.xlu0 %1793
    %v1795 = vsub.f32 %v1789, %v1794
    %v1796 = vmul.f32 %v1795, 1.442695
    %v1797 = vpow.pop %v1796
    %v1798 = vsel %vm365, %v1797, 0.0
    %1799 = vadd.xlane.f32.xlu0 %v1798
    %v1800 = vpop.xlane.xlu0 %1799
    %v1801 = vrcp.pop %v1800
    %v1802 = vmul.f32 %v1797, %v1801
    %1803 = vrot.lane.b32.xlu0 %v283, 96
    %v1804 = vpop.permute.xlu0 %1803
    %v1807 = vsel %vm365, %v1802, 0
    %1809 = vmatprep.subr.mxu0 0.0
    %1810 = vmatpush1.msra.mxu0 %v1804
    %1811 = vmatprep.subr.mxu0 0.0
    %1812 = vmatpush1.msra.mxu0 0.0
    %1813 = vmatprep.subr.mxu0 0.0
    %1814 = vmatpush1.msra.mxu0 0.0
    %1815 = vmatprep.subr.mxu0 0.0
    %1816 = vmatpush1.msra.mxu0 0.0
    %1817 = vmatprep.subr.mxu0 0.0
    %1818 = vmatpush1.msra.mxu0 0.0
    %1819 = vmatprep.subr.mxu0 0.0
    %1820 = vmatpush1.msra.mxu0 0.0
    %1821 = vmatprep.subr.mxu0 0.0
    %1822 = vmatpush1.msra.mxu0 0.0
    %1823 = vmatprep.subr.mxu0 0.0
    %1824 = vmatpush1.msra.mxu0 0.0
    %1825 = vmatprep.subr.mxu0 0.0
    %1826 = vmatpush1.msra.mxu0 0.0
    %1827 = vmatprep.subr.mxu0 0.0
    %1828 = vmatpush1.msra.mxu0 0.0
    %1829 = vmatprep.subr.mxu0 0.0
    %1830 = vmatpush1.msra.mxu0 0.0
    %1831 = vmatprep.subr.mxu0 0.0
    %1832 = vmatpush1.msra.mxu0 0.0
    %1833 = vmatprep.subr.mxu0 0.0
    %1834 = vmatpush1.msra.mxu0 0.0
    %1835 = vmatprep.subr.mxu0 0.0
    %1836 = vmatpush1.msra.mxu0 0.0
    %1837 = vmatprep.subr.mxu0 0.0
    %1838 = vmatpush1.msra.mxu0 0.0
    %1839 = vmatprep.subr.mxu0 0.0
    %1840 = vmatpush1.msra.mxu0 0.0
    %1841 = vmatprep.subr.mxu0 0.0
    %1842 = vmatpush1.msra.mxu0 0.0
    %1843 = vmatprep.subr.mxu0 0.0
    %1844 = vmatpush1.msra.mxu0 0.0
    %1845 = vmatprep.subr.mxu0 0.0
    %1846 = vmatpush1.msra.mxu0 0.0
    %1847 = vmatprep.subr.mxu0 0.0
    %1848 = vmatpush1.msra.mxu0 0.0
    %1849 = vmatprep.subr.mxu0 0.0
    %1850 = vmatpush1.msra.mxu0 0.0
    %1851 = vmatprep.subr.mxu0 0.0
    %1852 = vmatpush1.msra.mxu0 0.0
    %1853 = vmatprep.subr.mxu0 0.0
    %1854 = vmatpush1.msra.mxu0 0.0
    %1855 = vmatprep.subr.mxu0 0.0
    %1856 = vmatpush1.msra.mxu0 0.0
    %1857 = vmatprep.subr.mxu0 0.0
    %1858 = vmatpush1.msra.mxu0 0.0
    %1859 = vmatprep.subr.mxu0 0.0
    %1860 = vmatpush1.msra.mxu0 0.0
    %1861 = vmatprep.subr.mxu0 0.0
    %1862 = vmatpush1.msra.mxu0 0.0
    %1863 = vmatprep.subr.mxu0 0.0
    %1864 = vmatpush1.msra.mxu0 0.0
    %1865 = vmatprep.subr.mxu0 0.0
    %1866 = vmatpush1.msra.mxu0 0.0
    %1867 = vmatprep.subr.mxu0 0.0
    %1868 = vmatpush1.msra.mxu0 0.0
    %1869 = vmatprep.subr.mxu0 0.0
    %1870 = vmatpush1.msra.mxu0 0.0
    %1871 = vmatprep.subr.mxu0 0.0
    %1872 = vmatpush1.msra.mxu0 0.0
    %1873 = vmatprep.mubr.f32.mxu0 0.0
    %1874 = vmatmul.mubr.f32.gmra.mrb[0].mxu0 %v1807
    %v1875 = vpop.f32.mrb[0].mxu0
    %v1876 = vadd.f32 0.0, %v1875
    %v1877 = vpop.f32.mrb[0].mxu0
    %1878 = vdwg.mxu0
    %v1880 = vsel %vm59, %v1876, 0
    %1882 = vmatprep.subr.mxu0 0.0
    %1883 = vmatpush1.msra.mxu0 %v151
    %1884 = vmatprep.subr.mxu0 0.0
    %1885 = vmatpush1.msra.mxu0 %v152
    %1886 = vmatprep.subr.mxu0 0.0
    %1887 = vmatpush1.msra.mxu0 0.0
    %1888 = vmatprep.subr.mxu0 0.0
    %1889 = vmatpush1.msra.mxu0 0.0
    %1890 = vmatprep.subr.mxu0 0.0
    %1891 = vmatpush1.msra.mxu0 0.0
    %1892 = vmatprep.subr.mxu0 0.0
    %1893 = vmatpush1.msra.mxu0 0.0
    %1894 = vmatprep.subr.mxu0 0.0
    %1895 = vmatpush1.msra.mxu0 0.0
    %1896 = vmatprep.subr.mxu0 0.0
    %1897 = vmatpush1.msra.mxu0 0.0
    %1898 = vmatprep.subr.mxu0 0.0
    %1899 = vmatpush1.msra.mxu0 0.0
    %1900 = vmatprep.subr.mxu0 0.0
    %1901 = vmatpush1.msra.mxu0 0.0
    %1902 = vmatprep.subr.mxu0 0.0
    %1903 = vmatpush1.msra.mxu0 0.0
    %1904 = vmatprep.subr.mxu0 0.0
    %1905 = vmatpush1.msra.mxu0 0.0
    %1906 = vmatprep.subr.mxu0 0.0
    %1907 = vmatpush1.msra.mxu0 0.0
    %1908 = vmatprep.subr.mxu0 0.0
    %1909 = vmatpush1.msra.mxu0 0.0
    %1910 = vmatprep.subr.mxu0 0.0
    %1911 = vmatpush1.msra.mxu0 0.0
    %1912 = vmatprep.subr.mxu0 0.0
    %1913 = vmatpush1.msra.mxu0 0.0
    %1914 = vmatprep.subr.mxu0 0.0
    %1915 = vmatpush1.msra.mxu0 0.0
    %1916 = vmatprep.subr.mxu0 0.0
    %1917 = vmatpush1.msra.mxu0 0.0
    %1918 = vmatprep.subr.mxu0 0.0
    %1919 = vmatpush1.msra.mxu0 0.0
    %1920 = vmatprep.subr.mxu0 0.0
    %1921 = vmatpush1.msra.mxu0 0.0
    %1922 = vmatprep.subr.mxu0 0.0
    %1923 = vmatpush1.msra.mxu0 0.0
    %1924 = vmatprep.subr.mxu0 0.0
    %1925 = vmatpush1.msra.mxu0 0.0
    %1926 = vmatprep.subr.mxu0 0.0
    %1927 = vmatpush1.msra.mxu0 0.0
    %1928 = vmatprep.subr.mxu0 0.0
    %1929 = vmatpush1.msra.mxu0 0.0
    %1930 = vmatprep.subr.mxu0 0.0
    %1931 = vmatpush1.msra.mxu0 0.0
    %1932 = vmatprep.subr.mxu0 0.0
    %1933 = vmatpush1.msra.mxu0 0.0
    %1934 = vmatprep.subr.mxu0 0.0
    %1935 = vmatpush1.msra.mxu0 0.0
    %1936 = vmatprep.subr.mxu0 0.0
    %1937 = vmatpush1.msra.mxu0 0.0
    %1938 = vmatprep.subr.mxu0 0.0
    %1939 = vmatpush1.msra.mxu0 0.0
    %1940 = vmatprep.subr.mxu0 0.0
    %1941 = vmatpush1.msra.mxu0 0.0
    %1942 = vmatprep.subr.mxu0 0.0
    %1943 = vmatpush1.msra.mxu0 0.0
    %1944 = vmatprep.subr.mxu0 0.0
    %1945 = vmatpush1.msra.mxu0 0.0
    %1946 = vmatprep.mubr.f32.mxu0 0.0
    %1947 = vmatmul.mubr.f32.gmra.mrb[0].mxu0 %v1880
    %v1948 = vpop.f32.mrb[0].mxu0
    %v1949 = vadd.f32 0.0, %v1948
    %v1950 = vpop.f32.mrb[0].mxu0
    %1951 = vdwg.mxu0
    %v1952 = vadd.f32 %v1711, %v1949
    %1953 = vrot.lane.b32.xlu0 %v286, 80
    %v1954 = vpop.permute.xlu0 %1953
    %1955 = vrot.lane.b32.xlu0 %v281, 16
    %v1956 = vpop.permute.xlu0 %1955
    %v1957 = vsel %vm59, %v1954, 0
    %v1959 = vsel %vm59, %v1956, 0
    %1961 = vmatprep.subr.mxu0 0.0
    %1962 = vmatpush1.xpose.msra.mxu0 %v1959
    %1963 = vmatprep.subr.mxu0 0.0
    %1964 = vmatpush1.xpose.msra.mxu0 0.0
    %1965 = vmatprep.subr.mxu0 0.0
    %1966 = vmatpush1.xpose.msra.mxu0 0.0
    %1967 = vmatprep.subr.mxu0 0.0
    %1968 = vmatpush1.xpose.msra.mxu0 0.0
    %1969 = vmatprep.subr.mxu0 0.0
    %1970 = vmatpush1.xpose.msra.mxu0 0.0
    %1971 = vmatprep.subr.mxu0 0.0
    %1972 = vmatpush1.xpose.msra.mxu0 0.0
    %1973 = vmatprep.subr.mxu0 0.0
    %1974 = vmatpush1.xpose.msra.mxu0 0.0
    %1975 = vmatprep.subr.mxu0 0.0
    %1976 = vmatpush1.xpose.msra.mxu0 0.0
    %1977 = vmatprep.subr.mxu0 0.0
    %1978 = vmatpush1.xpose.msra.mxu0 0.0
    %1979 = vmatprep.subr.mxu0 0.0
    %1980 = vmatpush1.xpose.msra.mxu0 0.0
    %1981 = vmatprep.subr.mxu0 0.0
    %1982 = vmatpush1.xpose.msra.mxu0 0.0
    %1983 = vmatprep.subr.mxu0 0.0
    %1984 = vmatpush1.xpose.msra.mxu0 0.0
    %1985 = vmatprep.subr.mxu0 0.0
    %1986 = vmatpush1.xpose.msra.mxu0 0.0
    %1987 = vmatprep.subr.mxu0 0.0
    %1988 = vmatpush1.xpose.msra.mxu0 0.0
    %1989 = vmatprep.subr.mxu0 0.0
    %1990 = vmatpush1.xpose.msra.mxu0 0.0
    %1991 = vmatprep.subr.mxu0 0.0
    %1992 = vmatpush1.xpose.msra.mxu0 0.0
    %1993 = vmatprep.subr.mxu0 0.0
    %1994 = vmatpush1.xpose.msra.mxu0 0.0
    %1995 = vmatprep.subr.mxu0 0.0
    %1996 = vmatpush1.xpose.msra.mxu0 0.0
    %1997 = vmatprep.subr.mxu0 0.0
    %1998 = vmatpush1.xpose.msra.mxu0 0.0
    %1999 = vmatprep.subr.mxu0 0.0
    %2000 = vmatpush1.xpose.msra.mxu0 0.0
    %2001 = vmatprep.subr.mxu0 0.0
    %2002 = vmatpush1.xpose.msra.mxu0 0.0
    %2003 = vmatprep.subr.mxu0 0.0
    %2004 = vmatpush1.xpose.msra.mxu0 0.0
    %2005 = vmatprep.subr.mxu0 0.0
    %2006 = vmatpush1.xpose.msra.mxu0 0.0
    %2007 = vmatprep.subr.mxu0 0.0
    %2008 = vmatpush1.xpose.msra.mxu0 0.0
    %2009 = vmatprep.subr.mxu0 0.0
    %2010 = vmatpush1.xpose.msra.mxu0 0.0
    %2011 = vmatprep.subr.mxu0 0.0
    %2012 = vmatpush1.xpose.msra.mxu0 0.0
    %2013 = vmatprep.subr.mxu0 0.0
    %2014 = vmatpush1.xpose.msra.mxu0 0.0
    %2015 = vmatprep.subr.mxu0 0.0
    %2016 = vmatpush1.xpose.msra.mxu0 0.0
    %2017 = vmatprep.subr.mxu0 0.0
    %2018 = vmatpush1.xpose.msra.mxu0 0.0
    %2019 = vmatprep.subr.mxu0 0.0
    %2020 = vmatpush1.xpose.msra.mxu0 0.0
    %2021 = vmatprep.subr.mxu0 0.0
    %2022 = vmatpush1.xpose.msra.mxu0 0.0
    %2023 = vmatprep.subr.mxu0 0.0
    %2024 = vmatpush1.xpose.msra.mxu0 0.0
    %2025 = vmatprep.mubr.f32.mxu0 0.0
    %2026 = vmatmul.mubr.f32.gmra.mrb[0].mxu0 %v1957
    %v2027 = vpop.f32.mrb[0].mxu0
    %v2028 = vadd.f32 %v146, %v2027
    %v2029 = vpop.f32.mrb[0].mxu0
    %2030 = vdwg.mxu0
    %v2031 = vsel %vm365, %v2028, -inf
    %2032 = vmax.xlane.f32.xlu0 %v2031
    %v2033 = vpop.xlane.xlu0 %2032
    %v2034 = vsub.f32 %v2028, %v2033
    %v2035 = vmul.f32 %v2034, 1.442695
    %v2036 = vpow.pop %v2035
    %v2037 = vsel %vm365, %v2036, 0.0
    %2038 = vadd.xlane.f32.xlu0 %v2037
    %v2039 = vpop.xlane.xlu0 %2038
    %v2040 = vrcp.pop %v2039
    %v2041 = vmul.f32 %v2036, %v2040
    %2042 = vrot.lane.b32.xlu0 %v283, 80
    %v2043 = vpop.permute.xlu0 %2042
    %v2046 = vsel %vm365, %v2041, 0
    %2048 = vmatprep.subr.mxu0 0.0
    %2049 = vmatpush1.msra.mxu0 %v2043
    %2050 = vmatprep.subr.mxu0 0.0
    %2051 = vmatpush1.msra.mxu0 0.0
    %2052 = vmatprep.subr.mxu0 0.0
    %2053 = vmatpush1.msra.mxu0 0.0
    %2054 = vmatprep.subr.mxu0 0.0
    %2055 = vmatpush1.msra.mxu0 0.0
    %2056 = vmatprep.subr.mxu0 0.0
    %2057 = vmatpush1.msra.mxu0 0.0
    %2058 = vmatprep.subr.mxu0 0.0
    %2059 = vmatpush1.msra.mxu0 0.0
    %2060 = vmatprep.subr.mxu0 0.0
    %2061 = vmatpush1.msra.mxu0 0.0
    %2062 = vmatprep.subr.mxu0 0.0
    %2063 = vmatpush1.msra.mxu0 0.0
    %2064 = vmatprep.subr.mxu0 0.0
    %2065 = vmatpush1.msra.mxu0 0.0
    %2066 = vmatprep.subr.mxu0 0.0
    %2067 = vmatpush1.msra.mxu0 0.0
    %2068 = vmatprep.subr.mxu0 0.0
    %2069 = vmatpush1.msra.mxu0 0.0
    %2070 = vmatprep.subr.mxu0 0.0
    %2071 = vmatpush1.msra.mxu0 0.0
    %2072 = vmatprep.subr.mxu0 0.0
    %2073 = vmatpush1.msra.mxu0 0.0
    %2074 = vmatprep.subr.mxu0 0.0
    %2075 = vmatpush1.msra.mxu0 0.0
    %2076 = vmatprep.subr.mxu0 0.0
    %2077 = vmatpush1.msra.mxu0 0.0
    %2078 = vmatprep.subr.mxu0 0.0
    %2079 = vmatpush1.msra.mxu0 0.0
    %2080 = vmatprep.subr.mxu0 0.0
    %2081 = vmatpush1.msra.mxu0 0.0
    %2082 = vmatprep.subr.mxu0 0.0
    %2083 = vmatpush1.msra.mxu0 0.0
    %2084 = vmatprep.subr.mxu0 0.0
    %2085 = vmatpush1.msra.mxu0 0.0
    %2086 = vmatprep.subr.mxu0 0.0
    %2087 = vmatpush1.msra.mxu0 0.0
    %2088 = vmatprep.subr.mxu0 0.0
    %2089 = vmatpush1.msra.mxu0 0.0
    %2090 = vmatprep.subr.mxu0 0.0
    %2091 = vmatpush1.msra.mxu0 0.0
    %2092 = vmatprep.subr.mxu0 0.0
    %2093 = vmatpush1.msra.mxu0 0.0
    %2094 = vmatprep.subr.mxu0 0.0
    %2095 = vmatpush1.msra.mxu0 0.0
    %2096 = vmatprep.subr.mxu0 0.0
    %2097 = vmatpush1.msra.mxu0 0.0
    %2098 = vmatprep.subr.mxu0 0.0
    %2099 = vmatpush1.msra.mxu0 0.0
    %2100 = vmatprep.subr.mxu0 0.0
    %2101 = vmatpush1.msra.mxu0 0.0
    %2102 = vmatprep.subr.mxu0 0.0
    %2103 = vmatpush1.msra.mxu0 0.0
    %2104 = vmatprep.subr.mxu0 0.0
    %2105 = vmatpush1.msra.mxu0 0.0
    %2106 = vmatprep.subr.mxu0 0.0
    %2107 = vmatpush1.msra.mxu0 0.0
    %2108 = vmatprep.subr.mxu0 0.0
    %2109 = vmatpush1.msra.mxu0 0.0
    %2110 = vmatprep.subr.mxu0 0.0
    %2111 = vmatpush1.msra.mxu0 0.0
    %2112 = vmatprep.mubr.f32.mxu0 0.0
    %2113 = vmatmul.mubr.f32.gmra.mrb[0].mxu0 %v2046
    %v2114 = vpop.f32.mrb[0].mxu0
    %v2115 = vadd.f32 0.0, %v2114
    %v2116 = vpop.f32.mrb[0].mxu0
    %2117 = vdwg.mxu0
    %v2119 = vsel %vm59, %v2115, 0
    %2121 = vmatprep.subr.mxu0 0.0
    %2122 = vmatpush1.msra.mxu0 %v153
    %2123 = vmatprep.subr.mxu0 0.0
    %2124 = vmatpush1.msra.mxu0 %v154
    %2125 = vmatprep.subr.mxu0 0.0
    %2126 = vmatpush1.msra.mxu0 0.0
    %2127 = vmatprep.subr.mxu0 0.0
    %2128 = vmatpush1.msra.mxu0 0.0
    %2129 = vmatprep.subr.mxu0 0.0
    %2130 = vmatpush1.msra.mxu0 0.0
    %2131 = vmatprep.subr.mxu0 0.0
    %2132 = vmatpush1.msra.mxu0 0.0
    %2133 = vmatprep.subr.mxu0 0.0
    %2134 = vmatpush1.msra.mxu0 0.0
    %2135 = vmatprep.subr.mxu0 0.0
    %2136 = vmatpush1.msra.mxu0 0.0
    %2137 = vmatprep.subr.mxu0 0.0
    %2138 = vmatpush1.msra.mxu0 0.0
    %2139 = vmatprep.subr.mxu0 0.0
    %2140 = vmatpush1.msra.mxu0 0.0
    %2141 = vmatprep.subr.mxu0 0.0
    %2142 = vmatpush1.msra.mxu0 0.0
    %2143 = vmatprep.subr.mxu0 0.0
    %2144 = vmatpush1.msra.mxu0 0.0
    %2145 = vmatprep.subr.mxu0 0.0
    %2146 = vmatpush1.msra.mxu0 0.0
    %2147 = vmatprep.subr.mxu0 0.0
    %2148 = vmatpush1.msra.mxu0 0.0
    %2149 = vmatprep.subr.mxu0 0.0
    %2150 = vmatpush1.msra.mxu0 0.0
    %2151 = vmatprep.subr.mxu0 0.0
    %2152 = vmatpush1.msra.mxu0 0.0
    %2153 = vmatprep.subr.mxu0 0.0
    %2154 = vmatpush1.msra.mxu0 0.0
    %2155 = vmatprep.subr.mxu0 0.0
    %2156 = vmatpush1.msra.mxu0 0.0
    %2157 = vmatprep.subr.mxu0 0.0
    %2158 = vmatpush1.msra.mxu0 0.0
    %2159 = vmatprep.subr.mxu0 0.0
    %2160 = vmatpush1.msra.mxu0 0.0
    %2161 = vmatprep.subr.mxu0 0.0
    %2162 = vmatpush1.msra.mxu0 0.0
    %2163 = vmatprep.subr.mxu0 0.0
    %2164 = vmatpush1.msra.mxu0 0.0
    %2165 = vmatprep.subr.mxu0 0.0
    %2166 = vmatpush1.msra.mxu0 0.0
    %2167 = vmatprep.subr.mxu0 0.0
    %2168 = vmatpush1.msra.mxu0 0.0
    %2169 = vmatprep.subr.mxu0 0.0
    %2170 = vmatpush1.msra.mxu0 0.0
    %2171 = vmatprep.subr.mxu0 0.0
    %2172 = vmatpush1.msra.mxu0 0.0
    %2173 = vmatprep.subr.mxu0 0.0
    %2174 = vmatpush1.msra.mxu0 0.0
    %2175 = vmatprep.subr.mxu0 0.0
    %2176 = vmatpush1.msra.mxu0 0.0
    %2177 = vmatprep.subr.mxu0 0.0
    %2178 = vmatpush1.msra.mxu0 0.0
    %2179 = vmatprep.subr.mxu0 0.0
    %2180 = vmatpush1.msra.mxu0 0.0
    %2181 = vmatprep.subr.mxu0 0.0
    %2182 = vmatpush1.msra.mxu0 0.0
    %2183 = vmatprep.subr.mxu0 0.0
    %2184 = vmatpush1.msra.mxu0 0.0
    %2185 = vmatprep.mubr.f32.mxu0 0.0
    %2186 = vmatmul.mubr.f32.gmra.mrb[0].mxu0 %v2119
    %v2187 = vpop.f32.mrb[0].mxu0
    %v2188 = vadd.f32 0.0, %v2187
    %v2189 = vpop.f32.mrb[0].mxu0
    %2190 = vdwg.mxu0
    %v2191 = vadd.f32 %v1952, %v2188
    %v2192 = vld [vmem:[%s6 + $0x8] sm:$0x1]
    %v2193 = vlaneseq
    %v2194 = vshrl.u32 %v2193, 7
    %v2195 = vsub.s32 0, %v2194
    %v2196 = vrot.slane %v2192, %v2195
    %v2197 = vadd.f32 %v1239, %v2196
    %v2198 = vadd.f32 %v2191, %v2196
    %v2199 = vadd.f32 %v133, %v2197
    %v2200 = vadd.f32 %v138, %v2198
    %v2201 = vld [vmem:[%s6 + $0x9] sm:$0x1]
    %v2202 = vld [vmem:[%s6 + $0xa] sm:$0x1]
    %v2203 = vsel %vm201, %v2199, 0.0
    %2204 = vadd.xlane.f32.xlu0 %v2203
    %v2205 = vpop.xlane.xlu0 %2204
    %v2206 = vsel %vm201, %v2200, 0.0
    %2207 = vadd.xlane.f32.xlu0 %v2206
    %v2208 = vpop.xlane.xlu0 %2207
    %v2209 = vrcp.pop 64.0
    %v2210 = vmul.f32 %v2205, %v2209
    %v2211 = vmul.f32 %v2208, %v2209
    %v2212 = vsub.f32 %v2199, %v2210
    %v2213 = vsub.f32 %v2200, %v2211
    %v2214 = vmul.f32 %v2212, %v2212
    %v2215 = vmul.f32 %v2213, %v2213
    %v2216 = vsel %vm201, %v2214, 0.0
    %2217 = vadd.xlane.f32.xlu0 %v2216
    %v2218 = vpop.xlane.xlu0 %2217
    %v2219 = vsel %vm201, %v2215, 0.0
    %2220 = vadd.xlane.f32.xlu0 %v2219
    %v2221 = vpop.xlane.xlu0 %2220
    %v2222 = vmul.f32 %v2218, %v2209
    %v2223 = vmul.f32 %v2221, %v2209
    %v2224 = vadd.f32 %v2222, 1e-05
    %v2225 = vadd.f32 %v2223, 1e-05
    %v2226 = vrsqrt.pop %v2224
    %v2227 = vrsqrt.pop %v2225
    %v2228 = vmul.f32 %v2212, %v2226
    %v2229 = vmul.f32 %v2213, %v2227
    %v2230 = vlaneseq
    %v2231 = vshrl.u32 %v2230, 7
    %v2232 = vsub.s32 0, %v2231
    %v2233 = vrot.slane %v2201, %v2232
    %v2234 = vmul.f32 %v2228, %v2233
    %v2235 = vmul.f32 %v2229, %v2233
    %v2236 = vlaneseq
    %v2237 = vshrl.u32 %v2236, 7
    %v2238 = vsub.s32 0, %v2237
    %v2239 = vrot.slane %v2202, %v2238
    %v2240 = vadd.f32 %v2234, %v2239
    %v2241 = vadd.f32 %v2235, %v2239
    %v2242 = vld [vmem:[%s6 + $0xd] sm:$0x1]
    %v2243 = vlaneseq
    %v2244 = vshrl.u32 %v2243, 7
    %v2245 = vsub.s32 0, %v2244
    %v2246 = vrot.slane %v2242, %v2245
    %v2248 = vsel %vm201, %v2240, 0
    %v2251 = vsel %vm201, %v2241, 0
    %2253 = vmatprep.subr.mxu0 0.0
    %2254 = vmatpush1.msra.mxu0 %v156
    %2255 = vmatprep.subr.mxu0 0.0
    %2256 = vmatpush1.msra.mxu0 %v157
    %2257 = vmatprep.subr.mxu0 0.0
    %2258 = vmatpush1.msra.mxu0 %v158
    %2259 = vmatprep.subr.mxu0 0.0
    %2260 = vmatpush1.msra.mxu0 %v159
    %2261 = vmatprep.subr.mxu0 0.0
    %2262 = vmatpush1.msra.mxu0 %v160
    %2263 = vmatprep.subr.mxu0 0.0
    %2264 = vmatpush1.msra.mxu0 %v161
    %2265 = vmatprep.subr.mxu0 0.0
    %2266 = vmatpush1.msra.mxu0 %v162
    %2267 = vmatprep.subr.mxu0 0.0
    %2268 = vmatpush1.msra.mxu0 %v163
    %2269 = vmatprep.subr.mxu0 0.0
    %2270 = vmatpush1.msra.mxu0 0.0
    %2271 = vmatprep.subr.mxu0 0.0
    %2272 = vmatpush1.msra.mxu0 0.0
    %2273 = vmatprep.subr.mxu0 0.0
    %2274 = vmatpush1.msra.mxu0 0.0
    %2275 = vmatprep.subr.mxu0 0.0
    %2276 = vmatpush1.msra.mxu0 0.0
    %2277 = vmatprep.subr.mxu0 0.0
    %2278 = vmatpush1.msra.mxu0 0.0
    %2279 = vmatprep.subr.mxu0 0.0
    %2280 = vmatpush1.msra.mxu0 0.0
    %2281 = vmatprep.subr.mxu0 0.0
    %2282 = vmatpush1.msra.mxu0 0.0
    %2283 = vmatprep.subr.mxu0 0.0
    %2284 = vmatpush1.msra.mxu0 0.0
    %2285 = vmatprep.subr.mxu0 0.0
    %2286 = vmatpush1.msra.mxu0 0.0
    %2287 = vmatprep.subr.mxu0 0.0
    %2288 = vmatpush1.msra.mxu0 0.0
    %2289 = vmatprep.subr.mxu0 0.0
    %2290 = vmatpush1.msra.mxu0 0.0
    %2291 = vmatprep.subr.mxu0 0.0
    %2292 = vmatpush1.msra.mxu0 0.0
    %2293 = vmatprep.subr.mxu0 0.0
    %2294 = vmatpush1.msra.mxu0 0.0
    %2295 = vmatprep.subr.mxu0 0.0
    %2296 = vmatpush1.msra.mxu0 0.0
    %2297 = vmatprep.subr.mxu0 0.0
    %2298 = vmatpush1.msra.mxu0 0.0
    %2299 = vmatprep.subr.mxu0 0.0
    %2300 = vmatpush1.msra.mxu0 0.0
    %2301 = vmatprep.subr.mxu0 0.0
    %2302 = vmatpush1.msra.mxu0 0.0
    %2303 = vmatprep.subr.mxu0 0.0
    %2304 = vmatpush1.msra.mxu0 0.0
    %2305 = vmatprep.subr.mxu0 0.0
    %2306 = vmatpush1.msra.mxu0 0.0
    %2307 = vmatprep.subr.mxu0 0.0
    %2308 = vmatpush1.msra.mxu0 0.0
    %2309 = vmatprep.subr.mxu0 0.0
    %2310 = vmatpush1.msra.mxu0 0.0
    %2311 = vmatprep.subr.mxu0 0.0
    %2312 = vmatpush1.msra.mxu0 0.0
    %2313 = vmatprep.subr.mxu0 0.0
    %2314 = vmatpush1.msra.mxu0 0.0
    %2315 = vmatprep.subr.mxu0 0.0
    %2316 = vmatpush1.msra.mxu0 0.0
    %2317 = vmatprep.mubr.f32.mxu0 0.0
    %2318 = vmatmul.mubr.f32.gmra.mrb[0].mxu0 %v2248
    %v2319 = vpop.f32.mrb[0].mxu0
    %v2320 = vadd.f32 %v2246, %v2319
    %v2321 = vpop.f32.mrb[0].mxu0
    %2322 = vmatprep.mubr.f32.mxu0 0.0
    %2323 = vmatmul.mubr.f32.gmra.mrb[0].mxu0 %v2251
    %v2324 = vpop.f32.mrb[0].mxu0
    %v2325 = vadd.f32 %v2246, %v2324
    %v2326 = vpop.f32.mrb[0].mxu0
    %2327 = vdwg.mxu0
    %v2328 = vmax.f32 %v2320, 0.0
    %v2329 = vmax.f32 %v2325, 0.0
    %v2330 = vld [vmem:[%s6 + $0xe] sm:$0x1]
    %v2331 = vlaneseq
    %v2332 = vshrl.u32 %v2331, 7
    %v2333 = vsub.s32 0, %v2332
    %v2334 = vrot.slane %v2330, %v2333
    %v2336 = vsel %vm201, %v2328, 0
    %v2339 = vsel %vm201, %v2329, 0
    %2341 = vmatprep.subr.mxu0 0.0
    %2342 = vmatpush1.msra.mxu0 %v165
    %2343 = vmatprep.subr.mxu0 0.0
    %2344 = vmatpush1.msra.mxu0 %v166
    %2345 = vmatprep.subr.mxu0 0.0
    %2346 = vmatpush1.msra.mxu0 %v167
    %2347 = vmatprep.subr.mxu0 0.0
    %2348 = vmatpush1.msra.mxu0 %v168
    %2349 = vmatprep.subr.mxu0 0.0
    %2350 = vmatpush1.msra.mxu0 %v169
    %2351 = vmatprep.subr.mxu0 0.0
    %2352 = vmatpush1.msra.mxu0 %v170
    %2353 = vmatprep.subr.mxu0 0.0
    %2354 = vmatpush1.msra.mxu0 %v171
    %2355 = vmatprep.subr.mxu0 0.0
    %2356 = vmatpush1.msra.mxu0 %v172
    %2357 = vmatprep.subr.mxu0 0.0
    %2358 = vmatpush1.msra.mxu0 0.0
    %2359 = vmatprep.subr.mxu0 0.0
    %2360 = vmatpush1.msra.mxu0 0.0
    %2361 = vmatprep.subr.mxu0 0.0
    %2362 = vmatpush1.msra.mxu0 0.0
    %2363 = vmatprep.subr.mxu0 0.0
    %2364 = vmatpush1.msra.mxu0 0.0
    %2365 = vmatprep.subr.mxu0 0.0
    %2366 = vmatpush1.msra.mxu0 0.0
    %2367 = vmatprep.subr.mxu0 0.0
    %2368 = vmatpush1.msra.mxu0 0.0
    %2369 = vmatprep.subr.mxu0 0.0
    %2370 = vmatpush1.msra.mxu0 0.0
    %2371 = vmatprep.subr.mxu0 0.0
    %2372 = vmatpush1.msra.mxu0 0.0
    %2373 = vmatprep.subr.mxu0 0.0
    %2374 = vmatpush1.msra.mxu0 0.0
    %2375 = vmatprep.subr.mxu0 0.0
    %2376 = vmatpush1.msra.mxu0 0.0
    %2377 = vmatprep.subr.mxu0 0.0
    %2378 = vmatpush1.msra.mxu0 0.0
    %2379 = vmatprep.subr.mxu0 0.0
    %2380 = vmatpush1.msra.mxu0 0.0
    %2381 = vmatprep.subr.mxu0 0.0
    %2382 = vmatpush1.msra.mxu0 0.0
    %2383 = vmatprep.subr.mxu0 0.0
    %2384 = vmatpush1.msra.mxu0 0.0
    %2385 = vmatprep.subr.mxu0 0.0
    %2386 = vmatpush1.msra.mxu0 0.0
    %2387 = vmatprep.subr.mxu0 0.0
    %2388 = vmatpush1.msra.mxu0 0.0
    %2389 = vmatprep.subr.mxu0 0.0
    %2390 = vmatpush1.msra.mxu0 0.0
    %2391 = vmatprep.subr.mxu0 0.0
    %2392 = vmatpush1.msra.mxu0 0.0
    %2393 = vmatprep.subr.mxu0 0.0
    %2394 = vmatpush1.msra.mxu0 0.0
    %2395 = vmatprep.subr.mxu0 0.0
    %2396 = vmatpush1.msra.mxu0 0.0
    %2397 = vmatprep.subr.mxu0 0.0
    %2398 = vmatpush1.msra.mxu0 0.0
    %2399 = vmatprep.subr.mxu0 0.0
    %2400 = vmatpush1.msra.mxu0 0.0
    %2401 = vmatprep.subr.mxu0 0.0
    %2402 = vmatpush1.msra.mxu0 0.0
    %2403 = vmatprep.subr.mxu0 0.0
    %2404 = vmatpush1.msra.mxu0 0.0
    %2405 = vmatprep.mubr.f32.mxu0 0.0
    %2406 = vmatmul.mubr.f32.gmra.mrb[0].mxu0 %v2336
    %v2407 = vpop.f32.mrb[0].mxu0
    %v2408 = vadd.f32 %v2334, %v2407
    %v2409 = vpop.f32.mrb[0].mxu0
    %2410 = vmatprep.mubr.f32.mxu0 0.0
    %2411 = vmatmul.mubr.f32.gmra.mrb[0].mxu0 %v2339
    %v2412 = vpop.f32.mrb[0].mxu0
    %v2413 = vadd.f32 %v2334, %v2412
    %v2414 = vpop.f32.mrb[0].mxu0
    %2415 = vdwg.mxu0
    %v2416 = vadd.f32 %v2240, %v2408
    %v2417 = vadd.f32 %v2241, %v2413
    %v2418 = vld [vmem:[%s6 + $0xb] sm:$0x1]
    %v2419 = vld [vmem:[%s6 + $0xc] sm:$0x1]
    %v2420 = vsel %vm201, %v2416, 0.0
    %2421 = vadd.xlane.f32.xlu0 %v2420
    %v2422 = vpop.xlane.xlu0 %2421
    %v2423 = vsel %vm201, %v2417, 0.0
    %2424 = vadd.xlane.f32.xlu0 %v2423
    %v2425 = vpop.xlane.xlu0 %2424
    %v2426 = vmul.f32 %v2422, %v2209
    %v2427 = vmul.f32 %v2425, %v2209
    %v2428 = vsub.f32 %v2416, %v2426
    %v2429 = vsub.f32 %v2417, %v2427
    %v2430 = vmul.f32 %v2428, %v2428
    %v2431 = vmul.f32 %v2429, %v2429
    %v2432 = vsel %vm201, %v2430, 0.0
    %2433 = vadd.xlane.f32.xlu0 %v2432
    %v2434 = vpop.xlane.xlu0 %2433
    %v2435 = vsel %vm201, %v2431, 0.0
    %2436 = vadd.xlane.f32.xlu0 %v2435
    %v2437 = vpop.xlane.xlu0 %2436
    %v2438 = vmul.f32 %v2434, %v2209
    %v2439 = vmul.f32 %v2437, %v2209
    %v2440 = vadd.f32 %v2438, 1e-05
    %v2441 = vadd.f32 %v2439, 1e-05
    %v2442 = vrsqrt.pop %v2440
    %v2443 = vrsqrt.pop %v2441
    %v2444 = vmul.f32 %v2428, %v2442
    %v2445 = vmul.f32 %v2429, %v2443
    %v2446 = vlaneseq
    %v2447 = vshrl.u32 %v2446, 7
    %v2448 = vsub.s32 0, %v2447
    %v2449 = vrot.slane %v2418, %v2448
    %v2450 = vmul.f32 %v2444, %v2449
    %v2451 = vmul.f32 %v2445, %v2449
    %v2452 = vlaneseq
    %v2453 = vshrl.u32 %v2452, 7
    %v2454 = vsub.s32 0, %v2453
    %v2455 = vrot.slane %v2419, %v2454
    %v2456 = vadd.f32 %v2450, %v2455
    %v2457 = vadd.f32 %v2451, %v2455
    %s2458 = scalar_lea.vmem [#allocation4], 192
    %v2459 = vld [vmem:[%s2458] sm:$0xff]
    %v2460 = vld [vmem:[%s2458 + $0x8] sm:$0xff]
    %v2461 = vld [vmem:[%s2458 + $0x10] sm:$0xff]
    %v2462 = vld [vmem:[%s2458 + $0x18] sm:$0xff]
    %v2463 = vld [vmem:[%s2458 + $0x20] sm:$0xff]
    %v2464 = vld [vmem:[%s2458 + $0x28] sm:$0xff]
    %v2465 = vld [vmem:[%s2458 + $0x30] sm:$0xff]
    %v2466 = vld [vmem:[%s2458 + $0x38] sm:$0xff]
    %s2467 = scalar_lea.vmem [#allocation4], 256
    %v2468 = vld [vmem:[%s2467] sm:$0xff]
    %v2469 = vld [vmem:[%s2467 + $0x8] sm:$0xff]
    %v2470 = vld [vmem:[%s2467 + $0x10] sm:$0xff]
    %v2471 = vld [vmem:[%s2467 + $0x18] sm:$0xff]
    %v2472 = vld [vmem:[%s2467 + $0x20] sm:$0xff]
    %v2473 = vld [vmem:[%s2467 + $0x28] sm:$0xff]
    %v2474 = vld [vmem:[%s2467 + $0x30] sm:$0xff]
    %v2475 = vld [vmem:[%s2467 + $0x38] sm:$0xff]
    %s2476 = scalar_lea.vmem [#allocation4], 320
    %v2477 = vld [vmem:[%s2476] sm:$0xff]
    %v2478 = vld [vmem:[%s2476 + $0x8] sm:$0xff]
    %v2479 = vld [vmem:[%s2476 + $0x10] sm:$0xff]
    %v2480 = vld [vmem:[%s2476 + $0x18] sm:$0xff]
    %v2481 = vld [vmem:[%s2476 + $0x20] sm:$0xff]
    %v2482 = vld [vmem:[%s2476 + $0x28] sm:$0xff]
    %v2483 = vld [vmem:[%s2476 + $0x30] sm:$0xff]
    %v2484 = vld [vmem:[%s2476 + $0x38] sm:$0xff]
    %s2485 = scalar_lea.vmem [#allocation2], 128
    %v2486 = vld [vmem:[%s2485] sm:$0xff]
    %v2487 = vld [vmem:[%s2485 + $0x8] sm:$0xff]
    %v2488 = vld [vmem:[%s2485 + $0x10] sm:$0xff]
    %v2489 = vld [vmem:[%s2485 + $0x18] sm:$0xff]
    %v2490 = vld [vmem:[%s2485 + $0x20] sm:$0xff]
    %v2491 = vld [vmem:[%s2485 + $0x28] sm:$0xff]
    %v2492 = vld [vmem:[%s2485 + $0x30] sm:$0xff]
    %v2493 = vld [vmem:[%s2485 + $0x38] sm:$0xff]
    %v2494 = vld [vmem:[%s2485 + $0x40] sm:$0xff]
    %v2495 = vld [vmem:[%s2485 + $0x48] sm:$0xff]
    %v2496 = vld [vmem:[%s2485 + $0x50] sm:$0xff]
    %v2497 = vld [vmem:[%s2485 + $0x58] sm:$0xff]
    %v2498 = vld [vmem:[%s2485 + $0x60] sm:$0xff]
    %v2499 = vld [vmem:[%s2485 + $0x68] sm:$0xff]
    %v2500 = vld [vmem:[%s2485 + $0x70] sm:$0xff]
    %v2501 = vld [vmem:[%s2485 + $0x78] sm:$0xff]
    %s2502 = scalar_lea.vmem %s3, 1
    %v2503 = vld [vmem:[%s2502] ss:$2 sm:$0x3]
    %v2505 = vlaneseq
    %v2506 = vshrl.u32 %v2505, 7
    %v2507 = vsub.s32 0, %v2506
    %v2508 = vrot.slane %v2503, %v2507
    %v2509 = vlaneseq
    %v2510 = vshrl.u32 %v2509, 7
    %v2511 = vsub.s32 1, %v2510
    %v2512 = vrot.slane %v2503, %v2511
    %v2516 = vsel %vm201, %v2456, 0
    %v2519 = vsel %vm201, %v2457, 0
    %2521 = vmatprep.subr.mxu0 %v2487
    %2522 = vmatpush1.msra.mxu0 %v2486
    %2523 = vmatprep.subr.mxu0 %v2489
    %2524 = vmatpush1.msra.mxu0 %v2488
    %2525 = vmatprep.subr.mxu0 %v2491
    %2526 = vmatpush1.msra.mxu0 %v2490
    %2527 = vmatprep.subr.mxu0 %v2493
    %2528 = vmatpush1.msra.mxu0 %v2492
    %2529 = vmatprep.subr.mxu0 %v2495
    %2530 = vmatpush1.msra.mxu0 %v2494
    %2531 = vmatprep.subr.mxu0 %v2497
    %2532 = vmatpush1.msra.mxu0 %v2496
    %2533 = vmatprep.subr.mxu0 %v2499
    %2534 = vmatpush1.msra.mxu0 %v2498
    %2535 = vmatprep.subr.mxu0 %v2501
    %2536 = vmatpush1.msra.mxu0 %v2500
    %2537 = vmatprep.subr.mxu0 0.0
    %2538 = vmatpush1.msra.mxu0 0.0
    %2539 = vmatprep.subr.mxu0 0.0
    %2540 = vmatpush1.msra.mxu0 0.0
    %2541 = vmatprep.subr.mxu0 0.0
    %2542 = vmatpush1.msra.mxu0 0.0
    %2543 = vmatprep.subr.mxu0 0.0
    %2544 = vmatpush1.msra.mxu0 0.0
    %2545 = vmatprep.subr.mxu0 0.0
    %2546 = vmatpush1.msra.mxu0 0.0
    %2547 = vmatprep.subr.mxu0 0.0
    %2548 = vmatpush1.msra.mxu0 0.0
    %2549 = vmatprep.subr.mxu0 0.0
    %2550 = vmatpush1.msra.mxu0 0.0
    %2551 = vmatprep.subr.mxu0 0.0
    %2552 = vmatpush1.msra.mxu0 0.0
    %2553 = vmatprep.subr.mxu0 0.0
    %2554 = vmatpush1.msra.mxu0 0.0
    %2555 = vmatprep.subr.mxu0 0.0
    %2556 = vmatpush1.msra.mxu0 0.0
    %2557 = vmatprep.subr.mxu0 0.0
    %2558 = vmatpush1.msra.mxu0 0.0
    %2559 = vmatprep.subr.mxu0 0.0
    %2560 = vmatpush1.msra.mxu0 0.0
    %2561 = vmatprep.subr.mxu0 0.0
    %2562 = vmatpush1.msra.mxu0 0.0
    %2563 = vmatprep.subr.mxu0 0.0
    %2564 = vmatpush1.msra.mxu0 0.0
    %2565 = vmatprep.subr.mxu0 0.0
    %2566 = vmatpush1.msra.mxu0 0.0
    %2567 = vmatprep.subr.mxu0 0.0
    %2568 = vmatpush1.msra.mxu0 0.0
    %2569 = vmatprep.subr.mxu0 0.0
    %2570 = vmatpush1.msra.mxu0 0.0
    %2571 = vmatprep.subr.mxu0 0.0
    %2572 = vmatpush1.msra.mxu0 0.0
    %2573 = vmatprep.subr.mxu0 0.0
    %2574 = vmatpush1.msra.mxu0 0.0
    %2575 = vmatprep.subr.mxu0 0.0
    %2576 = vmatpush1.msra.mxu0 0.0
    %2577 = vmatprep.subr.mxu0 0.0
    %2578 = vmatpush1.msra.mxu0 0.0
    %2579 = vmatprep.subr.mxu0 0.0
    %2580 = vmatpush1.msra.mxu0 0.0
    %2581 = vmatprep.subr.mxu0 0.0
    %2582 = vmatpush1.msra.mxu0 0.0
    %2583 = vmatprep.subr.mxu0 0.0
    %2584 = vmatpush1.msra.mxu0 0.0
    %2585 = vmatprep.mubr.f32.mxu0 0.0
    %2586 = vmatmul.mubr.f32.gmra.mrb[0].mxu0 %v2516
    %v2587 = vpop.f32.mrb[0].mxu0
    %v2588 = vadd.f32 %v2508, %v2587
    %v2589 = vpop.f32.mrb[0].mxu0
    %v2590 = vadd.f32 %v2512, %v2589
    %2591 = vmatprep.mubr.f32.mxu0 0.0
    %2592 = vmatmul.mubr.f32.gmra.mrb[0].mxu0 %v2519
    %v2593 = vpop.f32.mrb[0].mxu0
    %v2594 = vadd.f32 %v2508, %v2593
    %v2595 = vpop.f32.mrb[0].mxu0
    %v2596 = vadd.f32 %v2512, %v2595
    %2597 = vdwg.mxu0
    %v2598 = vmul.f32 %v2588, 0.25
    %v2599 = vmul.f32 %v2594, 0.25
    %2601 = vrot.lane.b32.xlu0 %v2588, 64
    %v2602 = vpop.permute.xlu0 %2601
    %v2604 = vsel %vm59, %v2598, 0
    %v2606 = vsel %vm59, %v2602, 0
    %2608 = vmatprep.subr.mxu0 0.0
    %2609 = vmatpush1.xpose.msra.mxu0 %v2606
    %2610 = vmatprep.subr.mxu0 0.0
    %2611 = vmatpush1.xpose.msra.mxu0 0.0
    %2612 = vmatprep.subr.mxu0 0.0
    %2613 = vmatpush1.xpose.msra.mxu0 0.0
    %2614 = vmatprep.subr.mxu0 0.0
    %2615 = vmatpush1.xpose.msra.mxu0 0.0
    %2616 = vmatprep.subr.mxu0 0.0
    %2617 = vmatpush1.xpose.msra.mxu0 0.0
    %2618 = vmatprep.subr.mxu0 0.0
    %2619 = vmatpush1.xpose.msra.mxu0 0.0
    %2620 = vmatprep.subr.mxu0 0.0
    %2621 = vmatpush1.xpose.msra.mxu0 0.0
    %2622 = vmatprep.subr.mxu0 0.0
    %2623 = vmatpush1.xpose.msra.mxu0 0.0
    %2624 = vmatprep.subr.mxu0 0.0
    %2625 = vmatpush1.xpose.msra.mxu0 0.0
    %2626 = vmatprep.subr.mxu0 0.0
    %2627 = vmatpush1.xpose.msra.mxu0 0.0
    %2628 = vmatprep.subr.mxu0 0.0
    %2629 = vmatpush1.xpose.msra.mxu0 0.0
    %2630 = vmatprep.subr.mxu0 0.0
    %2631 = vmatpush1.xpose.msra.mxu0 0.0
    %2632 = vmatprep.subr.mxu0 0.0
    %2633 = vmatpush1.xpose.msra.mxu0 0.0
    %2634 = vmatprep.subr.mxu0 0.0
    %2635 = vmatpush1.xpose.msra.mxu0 0.0
    %2636 = vmatprep.subr.mxu0 0.0
    %2637 = vmatpush1.xpose.msra.mxu0 0.0
    %2638 = vmatprep.subr.mxu0 0.0
    %2639 = vmatpush1.xpose.msra.mxu0 0.0
    %2640 = vmatprep.subr.mxu0 0.0
    %2641 = vmatpush1.xpose.msra.mxu0 0.0
    %2642 = vmatprep.subr.mxu0 0.0
    %2643 = vmatpush1.xpose.msra.mxu0 0.0
    %2644 = vmatprep.subr.mxu0 0.0
    %2645 = vmatpush1.xpose.msra.mxu0 0.0
    %2646 = vmatprep.subr.mxu0 0.0
    %2647 = vmatpush1.xpose.msra.mxu0 0.0
    %2648 = vmatprep.subr.mxu0 0.0
    %2649 = vmatpush1.xpose.msra.mxu0 0.0
    %2650 = vmatprep.subr.mxu0 0.0
    %2651 = vmatpush1.xpose.msra.mxu0 0.0
    %2652 = vmatprep.subr.mxu0 0.0
    %2653 = vmatpush1.xpose.msra.mxu0 0.0
    %2654 = vmatprep.subr.mxu0 0.0
    %2655 = vmatpush1.xpose.msra.mxu0 0.0
    %2656 = vmatprep.subr.mxu0 0.0
    %2657 = vmatpush1.xpose.msra.mxu0 0.0
    %2658 = vmatprep.subr.mxu0 0.0
    %2659 = vmatpush1.xpose.msra.mxu0 0.0
    %2660 = vmatprep.subr.mxu0 0.0
    %2661 = vmatpush1.xpose.msra.mxu0 0.0
    %2662 = vmatprep.subr.mxu0 0.0
    %2663 = vmatpush1.xpose.msra.mxu0 0.0
    %2664 = vmatprep.subr.mxu0 0.0
    %2665 = vmatpush1.xpose.msra.mxu0 0.0
    %2666 = vmatprep.subr.mxu0 0.0
    %2667 = vmatpush1.xpose.msra.mxu0 0.0
    %2668 = vmatprep.subr.mxu0 0.0
    %2669 = vmatpush1.xpose.msra.mxu0 0.0
    %2670 = vmatprep.subr.mxu0 0.0
    %2671 = vmatpush1.xpose.msra.mxu0 0.0
    %2672 = vmatprep.mubr.f32.mxu0 0.0
    %2673 = vmatmul.mubr.f32.gmra.mrb[0].mxu0 %v2604
    %v2674 = vpop.f32.mrb[0].mxu0
    %v2675 = vadd.f32 %v146, %v2674
    %v2676 = vpop.f32.mrb[0].mxu0
    %2677 = vdwg.mxu0
    %v2678 = vsel %vm365, %v2675, -inf
    %2679 = vmax.xlane.f32.xlu0 %v2678
    %v2680 = vpop.xlane.xlu0 %2679
    %v2681 = vsub.f32 %v2675, %v2680
    %v2682 = vmul.f32 %v2681, 1.442695
    %v2683 = vpow.pop %v2682
    %v2684 = vsel %vm365, %v2683, 0.0
    %2685 = vadd.xlane.f32.xlu0 %v2684
    %v2686 = vpop.xlane.xlu0 %2685
    %v2687 = vrcp.pop %v2686
    %v2688 = vmul.f32 %v2683, %v2687
    %v2690 = vsel %vm365, %v2688, 0
    %2692 = vmatprep.subr.mxu0 0.0
    %2693 = vmatpush1.msra.mxu0 %v2590
    %2694 = vmatprep.subr.mxu0 0.0
    %2695 = vmatpush1.msra.mxu0 0.0
    %2696 = vmatprep.subr.mxu0 0.0
    %2697 = vmatpush1.msra.mxu0 0.0
    %2698 = vmatprep.subr.mxu0 0.0
    %2699 = vmatpush1.msra.mxu0 0.0
    %2700 = vmatprep.subr.mxu0 0.0
    %2701 = vmatpush1.msra.mxu0 0.0
    %2702 = vmatprep.subr.mxu0 0.0
    %2703 = vmatpush1.msra.mxu0 0.0
    %2704 = vmatprep.subr.mxu0 0.0
    %2705 = vmatpush1.msra.mxu0 0.0
    %2706 = vmatprep.subr.mxu0 0.0
    %2707 = vmatpush1.msra.mxu0 0.0
    %2708 = vmatprep.subr.mxu0 0.0
    %2709 = vmatpush1.msra.mxu0 0.0
    %2710 = vmatprep.subr.mxu0 0.0
    %2711 = vmatpush1.msra.mxu0 0.0
    %2712 = vmatprep.subr.mxu0 0.0
    %2713 = vmatpush1.msra.mxu0 0.0
    %2714 = vmatprep.subr.mxu0 0.0
    %2715 = vmatpush1.msra.mxu0 0.0
    %2716 = vmatprep.subr.mxu0 0.0
    %2717 = vmatpush1.msra.mxu0 0.0
    %2718 = vmatprep.subr.mxu0 0.0
    %2719 = vmatpush1.msra.mxu0 0.0
    %2720 = vmatprep.subr.mxu0 0.0
    %2721 = vmatpush1.msra.mxu0 0.0
    %2722 = vmatprep.subr.mxu0 0.0
    %2723 = vmatpush1.msra.mxu0 0.0
    %2724 = vmatprep.subr.mxu0 0.0
    %2725 = vmatpush1.msra.mxu0 0.0
    %2726 = vmatprep.subr.mxu0 0.0
    %2727 = vmatpush1.msra.mxu0 0.0
    %2728 = vmatprep.subr.mxu0 0.0
    %2729 = vmatpush1.msra.mxu0 0.0
    %2730 = vmatprep.subr.mxu0 0.0
    %2731 = vmatpush1.msra.mxu0 0.0
    %2732 = vmatprep.subr.mxu0 0.0
    %2733 = vmatpush1.msra.mxu0 0.0
    %2734 = vmatprep.subr.mxu0 0.0
    %2735 = vmatpush1.msra.mxu0 0.0
    %2736 = vmatprep.subr.mxu0 0.0
    %2737 = vmatpush1.msra.mxu0 0.0
    %2738 = vmatprep.subr.mxu0 0.0
    %2739 = vmatpush1.msra.mxu0 0.0
    %2740 = vmatprep.subr.mxu0 0.0
    %2741 = vmatpush1.msra.mxu0 0.0
    %2742 = vmatprep.subr.mxu0 0.0
    %2743 = vmatpush1.msra.mxu0 0.0
    %2744 = vmatprep.subr.mxu0 0.0
    %2745 = vmatpush1.msra.mxu0 0.0
    %2746 = vmatprep.subr.mxu0 0.0
    %2747 = vmatpush1.msra.mxu0 0.0
    %2748 = vmatprep.subr.mxu0 0.0
    %2749 = vmatpush1.msra.mxu0 0.0
    %2750 = vmatprep.subr.mxu0 0.0
    %2751 = vmatpush1.msra.mxu0 0.0
    %2752 = vmatprep.subr.mxu0 0.0
    %2753 = vmatpush1.msra.mxu0 0.0
    %2754 = vmatprep.subr.mxu0 0.0
    %2755 = vmatpush1.msra.mxu0 0.0
    %2756 = vmatprep.mubr.f32.mxu0 0.0
    %2757 = vmatmul.mubr.f32.gmra.mrb[0].mxu0 %v2690
    %v2758 = vpop.f32.mrb[0].mxu0
    %v2759 = vadd.f32 0.0, %v2758
    %v2760 = vpop.f32.mrb[0].mxu0
    %2761 = vdwg.mxu0
    %2762 = vrot.lane.b32.xlu0 %v2598, 112
    %v2763 = vpop.permute.xlu0 %2762
    %2764 = vrot.lane.b32.xlu0 %v2588, 48
    %v2765 = vpop.permute.xlu0 %2764
    %v2766 = vsel %vm59, %v2763, 0
    %v2768 = vsel %vm59, %v2765, 0
    %2770 = vmatprep.subr.mxu0 0.0
    %2771 = vmatpush1.xpose.msra.mxu0 %v2768
    %2772 = vmatprep.subr.mxu0 0.0
    %2773 = vmatpush1.xpose.msra.mxu0 0.0
    %2774 = vmatprep.subr.mxu0 0.0
    %2775 = vmatpush1.xpose.msra.mxu0 0.0
    %2776 = vmatprep.subr.mxu0 0.0
    %2777 = vmatpush1.xpose.msra.mxu0 0.0
    %2778 = vmatprep.subr.mxu0 0.0
    %2779 = vmatpush1.xpose.msra.mxu0 0.0
    %2780 = vmatprep.subr.mxu0 0.0
    %2781 = vmatpush1.xpose.msra.mxu0 0.0
    %2782 = vmatprep.subr.mxu0 0.0
    %2783 = vmatpush1.xpose.msra.mxu0 0.0
    %2784 = vmatprep.subr.mxu0 0.0
    %2785 = vmatpush1.xpose.msra.mxu0 0.0
    %2786 = vmatprep.subr.mxu0 0.0
    %2787 = vmatpush1.xpose.msra.mxu0 0.0
    %2788 = vmatprep.subr.mxu0 0.0
    %2789 = vmatpush1.xpose.msra.mxu0 0.0
    %2790 = vmatprep.subr.mxu0 0.0
    %2791 = vmatpush1.xpose.msra.mxu0 0.0
    %2792 = vmatprep.subr.mxu0 0.0
    %2793 = vmatpush1.xpose.msra.mxu0 0.0
    %2794 = vmatprep.subr.mxu0 0.0
    %2795 = vmatpush1.xpose.msra.mxu0 0.0
    %2796 = vmatprep.subr.mxu0 0.0
    %2797 = vmatpush1.xpose.msra.mxu0 0.0
    %2798 = vmatprep.subr.mxu0 0.0
    %2799 = vmatpush1.xpose.msra.mxu0 0.0
    %2800 = vmatprep.subr.mxu0 0.0
    %2801 = vmatpush1.xpose.msra.mxu0 0.0
    %2802 = vmatprep.subr.mxu0 0.0
    %2803 = vmatpush1.xpose.msra.mxu0 0.0
    %2804 = vmatprep.subr.mxu0 0.0
    %2805 = vmatpush1.xpose.msra.mxu0 0.0
    %2806 = vmatprep.subr.mxu0 0.0
    %2807 = vmatpush1.xpose.msra.mxu0 0.0
    %2808 = vmatprep.subr.mxu0 0.0
    %2809 = vmatpush1.xpose.msra.mxu0 0.0
    %2810 = vmatprep.subr.mxu0 0.0
    %2811 = vmatpush1.xpose.msra.mxu0 0.0
    %2812 = vmatprep.subr.mxu0 0.0
    %2813 = vmatpush1.xpose.msra.mxu0 0.0
    %2814 = vmatprep.subr.mxu0 0.0
    %2815 = vmatpush1.xpose.msra.mxu0 0.0
    %2816 = vmatprep.subr.mxu0 0.0
    %2817 = vmatpush1.xpose.msra.mxu0 0.0
    %2818 = vmatprep.subr.mxu0 0.0
    %2819 = vmatpush1.xpose.msra.mxu0 0.0
    %2820 = vmatprep.subr.mxu0 0.0
    %2821 = vmatpush1.xpose.msra.mxu0 0.0
    %2822 = vmatprep.subr.mxu0 0.0
    %2823 = vmatpush1.xpose.msra.mxu0 0.0
    %2824 = vmatprep.subr.mxu0 0.0
    %2825 = vmatpush1.xpose.msra.mxu0 0.0
    %2826 = vmatprep.subr.mxu0 0.0
    %2827 = vmatpush1.xpose.msra.mxu0 0.0
    %2828 = vmatprep.subr.mxu0 0.0
    %2829 = vmatpush1.xpose.msra.mxu0 0.0
    %2830 = vmatprep.subr.mxu0 0.0
    %2831 = vmatpush1.xpose.msra.mxu0 0.0
    %2832 = vmatprep.subr.mxu0 0.0
    %2833 = vmatpush1.xpose.msra.mxu0 0.0
    %2834 = vmatprep.mubr.f32.mxu0 0.0
    %2835 = vmatmul.mubr.f32.gmra.mrb[0].mxu0 %v2766
    %v2836 = vpop.f32.mrb[0].mxu0
    %v2837 = vadd.f32 %v146, %v2836
    %v2838 = vpop.f32.mrb[0].mxu0
    %2839 = vdwg.mxu0
    %v2840 = vsel %vm365, %v2837, -inf
    %2841 = vmax.xlane.f32.xlu0 %v2840
    %v2842 = vpop.xlane.xlu0 %2841
    %v2843 = vsub.f32 %v2837, %v2842
    %v2844 = vmul.f32 %v2843, 1.442695
    %v2845 = vpow.pop %v2844
    %v2846 = vsel %vm365, %v2845, 0.0
    %2847 = vadd.xlane.f32.xlu0 %v2846
    %v2848 = vpop.xlane.xlu0 %2847
    %v2849 = vrcp.pop %v2848
    %v2850 = vmul.f32 %v2845, %v2849
    %2852 = vrot.lane.b32.xlu0 %v2590, 112
    %v2853 = vpop.permute.xlu0 %2852
    %v2856 = vsel %vm365, %v2850, 0
    %2858 = vmatprep.subr.mxu0 0.0
    %2859 = vmatpush1.msra.mxu0 %v2853
    %2860 = vmatprep.subr.mxu0 0.0
    %2861 = vmatpush1.msra.mxu0 0.0
    %2862 = vmatprep.subr.mxu0 0.0
    %2863 = vmatpush1.msra.mxu0 0.0
    %2864 = vmatprep.subr.mxu0 0.0
    %2865 = vmatpush1.msra.mxu0 0.0
    %2866 = vmatprep.subr.mxu0 0.0
    %2867 = vmatpush1.msra.mxu0 0.0
    %2868 = vmatprep.subr.mxu0 0.0
    %2869 = vmatpush1.msra.mxu0 0.0
    %2870 = vmatprep.subr.mxu0 0.0
    %2871 = vmatpush1.msra.mxu0 0.0
    %2872 = vmatprep.subr.mxu0 0.0
    %2873 = vmatpush1.msra.mxu0 0.0
    %2874 = vmatprep.subr.mxu0 0.0
    %2875 = vmatpush1.msra.mxu0 0.0
    %2876 = vmatprep.subr.mxu0 0.0
    %2877 = vmatpush1.msra.mxu0 0.0
    %2878 = vmatprep.subr.mxu0 0.0
    %2879 = vmatpush1.msra.mxu0 0.0
    %2880 = vmatprep.subr.mxu0 0.0
    %2881 = vmatpush1.msra.mxu0 0.0
    %2882 = vmatprep.subr.mxu0 0.0
    %2883 = vmatpush1.msra.mxu0 0.0
    %2884 = vmatprep.subr.mxu0 0.0
    %2885 = vmatpush1.msra.mxu0 0.0
    %2886 = vmatprep.subr.mxu0 0.0
    %2887 = vmatpush1.msra.mxu0 0.0
    %2888 = vmatprep.subr.mxu0 0.0
    %2889 = vmatpush1.msra.mxu0 0.0
    %2890 = vmatprep.subr.mxu0 0.0
    %2891 = vmatpush1.msra.mxu0 0.0
    %2892 = vmatprep.subr.mxu0 0.0
    %2893 = vmatpush1.msra.mxu0 0.0
    %2894 = vmatprep.subr.mxu0 0.0
    %2895 = vmatpush1.msra.mxu0 0.0
    %2896 = vmatprep.subr.mxu0 0.0
    %2897 = vmatpush1.msra.mxu0 0.0
    %2898 = vmatprep.subr.mxu0 0.0
    %2899 = vmatpush1.msra.mxu0 0.0
    %2900 = vmatprep.subr.mxu0 0.0
    %2901 = vmatpush1.msra.mxu0 0.0
    %2902 = vmatprep.subr.mxu0 0.0
    %2903 = vmatpush1.msra.mxu0 0.0
    %2904 = vmatprep.subr.mxu0 0.0
    %2905 = vmatpush1.msra.mxu0 0.0
    %2906 = vmatprep.subr.mxu0 0.0
    %2907 = vmatpush1.msra.mxu0 0.0
    %2908 = vmatprep.subr.mxu0 0.0
    %2909 = vmatpush1.msra.mxu0 0.0
    %2910 = vmatprep.subr.mxu0 0.0
    %2911 = vmatpush1.msra.mxu0 0.0
    %2912 = vmatprep.subr.mxu0 0.0
    %2913 = vmatpush1.msra.mxu0 0.0
    %2914 = vmatprep.subr.mxu0 0.0
    %2915 = vmatpush1.msra.mxu0 0.0
    %2916 = vmatprep.subr.mxu0 0.0
    %2917 = vmatpush1.msra.mxu0 0.0
    %2918 = vmatprep.subr.mxu0 0.0
    %2919 = vmatpush1.msra.mxu0 0.0
    %2920 = vmatprep.subr.mxu0 0.0
    %2921 = vmatpush1.msra.mxu0 0.0
    %2922 = vmatprep.mubr.f32.mxu0 0.0
    %2923 = vmatmul.mubr.f32.gmra.mrb[0].mxu0 %v2856
    %v2924 = vpop.f32.mrb[0].mxu0
    %v2925 = vadd.f32 0.0, %v2924
    %v2926 = vpop.f32.mrb[0].mxu0
    %2927 = vdwg.mxu0
    %v2929 = vsel %vm59, %v2925, 0
    %2931 = vmatprep.subr.mxu0 0.0
    %2932 = vmatpush1.msra.mxu0 %v2461
    %2933 = vmatprep.subr.mxu0 0.0
    %2934 = vmatpush1.msra.mxu0 %v2462
    %2935 = vmatprep.subr.mxu0 0.0
    %2936 = vmatpush1.msra.mxu0 0.0
    %2937 = vmatprep.subr.mxu0 0.0
    %2938 = vmatpush1.msra.mxu0 0.0
    %2939 = vmatprep.subr.mxu0 0.0
    %2940 = vmatpush1.msra.mxu0 0.0
    %2941 = vmatprep.subr.mxu0 0.0
    %2942 = vmatpush1.msra.mxu0 0.0
    %2943 = vmatprep.subr.mxu0 0.0
    %2944 = vmatpush1.msra.mxu0 0.0
    %2945 = vmatprep.subr.mxu0 0.0
    %2946 = vmatpush1.msra.mxu0 0.0
    %2947 = vmatprep.subr.mxu0 0.0
    %2948 = vmatpush1.msra.mxu0 0.0
    %2949 = vmatprep.subr.mxu0 0.0
    %2950 = vmatpush1.msra.mxu0 0.0
    %2951 = vmatprep.subr.mxu0 0.0
    %2952 = vmatpush1.msra.mxu0 0.0
    %2953 = vmatprep.subr.mxu0 0.0
    %2954 = vmatpush1.msra.mxu0 0.0
    %2955 = vmatprep.subr.mxu0 0.0
    %2956 = vmatpush1.msra.mxu0 0.0
    %2957 = vmatprep.subr.mxu0 0.0
    %2958 = vmatpush1.msra.mxu0 0.0
    %2959 = vmatprep.subr.mxu0 0.0
    %2960 = vmatpush1.msra.mxu0 0.0
    %2961 = vmatprep.subr.mxu0 0.0
    %2962 = vmatpush1.msra.mxu0 0.0
    %2963 = vmatprep.subr.mxu0 0.0
    %2964 = vmatpush1.msra.mxu0 0.0
    %2965 = vmatprep.subr.mxu0 0.0
    %2966 = vmatpush1.msra.mxu0 0.0
    %2967 = vmatprep.subr.mxu0 0.0
    %2968 = vmatpush1.msra.mxu0 0.0
    %2969 = vmatprep.subr.mxu0 0.0
    %2970 = vmatpush1.msra.mxu0 0.0
    %2971 = vmatprep.subr.mxu0 0.0
    %2972 = vmatpush1.msra.mxu0 0.0
    %2973 = vmatprep.subr.mxu0 0.0
    %2974 = vmatpush1.msra.mxu0 0.0
    %2975 = vmatprep.subr.mxu0 0.0
    %2976 = vmatpush1.msra.mxu0 0.0
    %2977 = vmatprep.subr.mxu0 0.0
    %2978 = vmatpush1.msra.mxu0 0.0
    %2979 = vmatprep.subr.mxu0 0.0
    %2980 = vmatpush1.msra.mxu0 0.0
    %2981 = vmatprep.subr.mxu0 0.0
    %2982 = vmatpush1.msra.mxu0 0.0
    %2983 = vmatprep.subr.mxu0 0.0
    %2984 = vmatpush1.msra.mxu0 0.0
    %2985 = vmatprep.subr.mxu0 0.0
    %2986 = vmatpush1.msra.mxu0 0.0
    %2987 = vmatprep.subr.mxu0 0.0
    %2988 = vmatpush1.msra.mxu0 0.0
    %2989 = vmatprep.subr.mxu0 0.0
    %2990 = vmatpush1.msra.mxu0 0.0
    %2991 = vmatprep.subr.mxu0 0.0
    %2992 = vmatpush1.msra.mxu0 0.0
    %2993 = vmatprep.subr.mxu0 0.0
    %2994 = vmatpush1.msra.mxu0 0.0
    %2995 = vmatprep.mubr.f32.mxu0 0.0
    %2996 = vmatmul.mubr.f32.gmra.mrb[0].mxu0 %v2929
    %v2997 = vpop.f32.mrb[0].mxu0
    %v2998 = vadd.f32 0.0, %v2997
    %v2999 = vpop.f32.mrb[0].mxu0
    %3000 = vdwg.mxu0
    %v3002 = vsel %vm59, %v2759, 0
    %3004 = vmatprep.subr.mxu0 0.0
    %3005 = vmatpush1.msra.mxu0 %v2459
    %3006 = vmatprep.subr.mxu0 0.0
    %3007 = vmatpush1.msra.mxu0 %v2460
    %3008 = vmatprep.subr.mxu0 0.0
    %3009 = vmatpush1.msra.mxu0 0.0
    %3010 = vmatprep.subr.mxu0 0.0
    %3011 = vmatpush1.msra.mxu0 0.0
    %3012 = vmatprep.subr.mxu0 0.0
    %3013 = vmatpush1.msra.mxu0 0.0
    %3014 = vmatprep.subr.mxu0 0.0
    %3015 = vmatpush1.msra.mxu0 0.0
    %3016 = vmatprep.subr.mxu0 0.0
    %3017 = vmatpush1.msra.mxu0 0.0
    %3018 = vmatprep.subr.mxu0 0.0
    %3019 = vmatpush1.msra.mxu0 0.0
    %3020 = vmatprep.subr.mxu0 0.0
    %3021 = vmatpush1.msra.mxu0 0.0
    %3022 = vmatprep.subr.mxu0 0.0
    %3023 = vmatpush1.msra.mxu0 0.0
    %3024 = vmatprep.subr.mxu0 0.0
    %3025 = vmatpush1.msra.mxu0 0.0
    %3026 = vmatprep.subr.mxu0 0.0
    %3027 = vmatpush1.msra.mxu0 0.0
    %3028 = vmatprep.subr.mxu0 0.0
    %3029 = vmatpush1.msra.mxu0 0.0
    %3030 = vmatprep.subr.mxu0 0.0
    %3031 = vmatpush1.msra.mxu0 0.0
    %3032 = vmatprep.subr.mxu0 0.0
    %3033 = vmatpush1.msra.mxu0 0.0
    %3034 = vmatprep.subr.mxu0 0.0
    %3035 = vmatpush1.msra.mxu0 0.0
    %3036 = vmatprep.subr.mxu0 0.0
    %3037 = vmatpush1.msra.mxu0 0.0
    %3038 = vmatprep.subr.mxu0 0.0
    %3039 = vmatpush1.msra.mxu0 0.0
    %3040 = vmatprep.subr.mxu0 0.0
    %3041 = vmatpush1.msra.mxu0 0.0
    %3042 = vmatprep.subr.mxu0 0.0
    %3043 = vmatpush1.msra.mxu0 0.0
    %3044 = vmatprep.subr.mxu0 0.0
    %3045 = vmatpush1.msra.mxu0 0.0
    %3046 = vmatprep.subr.mxu0 0.0
    %3047 = vmatpush1.msra.mxu0 0.0
    %3048 = vmatprep.subr.mxu0 0.0
    %3049 = vmatpush1.msra.mxu0 0.0
    %3050 = vmatprep.subr.mxu0 0.0
    %3051 = vmatpush1.msra.mxu0 0.0
    %3052 = vmatprep.subr.mxu0 0.0
    %3053 = vmatpush1.msra.mxu0 0.0
    %3054 = vmatprep.subr.mxu0 0.0
    %3055 = vmatpush1.msra.mxu0 0.0
    %3056 = vmatprep.subr.mxu0 0.0
    %3057 = vmatpush1.msra.mxu0 0.0
    %3058 = vmatprep.subr.mxu0 0.0
    %3059 = vmatpush1.msra.mxu0 0.0
    %3060 = vmatprep.subr.mxu0 0.0
    %3061 = vmatpush1.msra.mxu0 0.0
    %3062 = vmatprep.subr.mxu0 0.0
    %3063 = vmatpush1.msra.mxu0 0.0
    %3064 = vmatprep.subr.mxu0 0.0
    %3065 = vmatpush1.msra.mxu0 0.0
    %3066 = vmatprep.subr.mxu0 0.0
    %3067 = vmatpush1.msra.mxu0 0.0
    %3068 = vmatprep.mubr.f32.mxu0 0.0
    %3069 = vmatmul.mubr.f32.gmra.mrb[0].mxu0 %v3002
    %v3070 = vpop.f32.mrb[0].mxu0
    %v3071 = vadd.f32 %v2998, %v3070
    %v3072 = vpop.f32.mrb[0].mxu0
    %3073 = vdwg.mxu0
    %3074 = vrot.lane.b32.xlu0 %v2598, 96
    %v3075 = vpop.permute.xlu0 %3074
    %3076 = vrot.lane.b32.xlu0 %v2588, 32
    %v3077 = vpop.permute.xlu0 %3076
    %v3078 = vsel %vm59, %v3075, 0
    %v3080 = vsel %vm59, %v3077, 0
    %3082 = vmatprep.subr.mxu0 0.0
    %3083 = vmatpush1.xpose.msra.mxu0 %v3080
    %3084 = vmatprep.subr.mxu0 0.0
    %3085 = vmatpush1.xpose.msra.mxu0 0.0
    %3086 = vmatprep.subr.mxu0 0.0
    %3087 = vmatpush1.xpose.msra.mxu0 0.0
    %3088 = vmatprep.subr.mxu0 0.0
    %3089 = vmatpush1.xpose.msra.mxu0 0.0
    %3090 = vmatprep.subr.mxu0 0.0
    %3091 = vmatpush1.xpose.msra.mxu0 0.0
    %3092 = vmatprep.subr.mxu0 0.0
    %3093 = vmatpush1.xpose.msra.mxu0 0.0
    %3094 = vmatprep.subr.mxu0 0.0
    %3095 = vmatpush1.xpose.msra.mxu0 0.0
    %3096 = vmatprep.subr.mxu0 0.0
    %3097 = vmatpush1.xpose.msra.mxu0 0.0
    %3098 = vmatprep.subr.mxu0 0.0
    %3099 = vmatpush1.xpose.msra.mxu0 0.0
    %3100 = vmatprep.subr.mxu0 0.0
    %3101 = vmatpush1.xpose.msra.mxu0 0.0
    %3102 = vmatprep.subr.mxu0 0.0
    %3103 = vmatpush1.xpose.msra.mxu0 0.0
    %3104 = vmatprep.subr.mxu0 0.0
    %3105 = vmatpush1.xpose.msra.mxu0 0.0
    %3106 = vmatprep.subr.mxu0 0.0
    %3107 = vmatpush1.xpose.msra.mxu0 0.0
    %3108 = vmatprep.subr.mxu0 0.0
    %3109 = vmatpush1.xpose.msra.mxu0 0.0
    %3110 = vmatprep.subr.mxu0 0.0
    %3111 = vmatpush1.xpose.msra.mxu0 0.0
    %3112 = vmatprep.subr.mxu0 0.0
    %3113 = vmatpush1.xpose.msra.mxu0 0.0
    %3114 = vmatprep.subr.mxu0 0.0
    %3115 = vmatpush1.xpose.msra.mxu0 0.0
    %3116 = vmatprep.subr.mxu0 0.0
    %3117 = vmatpush1.xpose.msra.mxu0 0.0
    %3118 = vmatprep.subr.mxu0 0.0
    %3119 = vmatpush1.xpose.msra.mxu0 0.0
    %3120 = vmatprep.subr.mxu0 0.0
    %3121 = vmatpush1.xpose.msra.mxu0 0.0
    %3122 = vmatprep.subr.mxu0 0.0
    %3123 = vmatpush1.xpose.msra.mxu0 0.0
    %3124 = vmatprep.subr.mxu0 0.0
    %3125 = vmatpush1.xpose.msra.mxu0 0.0
    %3126 = vmatprep.subr.mxu0 0.0
    %3127 = vmatpush1.xpose.msra.mxu0 0.0
    %3128 = vmatprep.subr.mxu0 0.0
    %3129 = vmatpush1.xpose.msra.mxu0 0.0
    %3130 = vmatprep.subr.mxu0 0.0
    %3131 = vmatpush1.xpose.msra.mxu0 0.0
    %3132 = vmatprep.subr.mxu0 0.0
    %3133 = vmatpush1.xpose.msra.mxu0 0.0
    %3134 = vmatprep.subr.mxu0 0.0
    %3135 = vmatpush1.xpose.msra.mxu0 0.0
    %3136 = vmatprep.subr.mxu0 0.0
    %3137 = vmatpush1.xpose.msra.mxu0 0.0
    %3138 = vmatprep.subr.mxu0 0.0
    %3139 = vmatpush1.xpose.msra.mxu0 0.0
    %3140 = vmatprep.subr.mxu0 0.0
    %3141 = vmatpush1.xpose.msra.mxu0 0.0
    %3142 = vmatprep.subr.mxu0 0.0
    %3143 = vmatpush1.xpose.msra.mxu0 0.0
    %3144 = vmatprep.subr.mxu0 0.0
    %3145 = vmatpush1.xpose.msra.mxu0 0.0
    %3146 = vmatprep.mubr.f32.mxu0 0.0
    %3147 = vmatmul.mubr.f32.gmra.mrb[0].mxu0 %v3078
    %v3148 = vpop.f32.mrb[0].mxu0
    %v3149 = vadd.f32 %v146, %v3148
    %v3150 = vpop.f32.mrb[0].mxu0
    %3151 = vdwg.mxu0
    %v3152 = vsel %vm365, %v3149, -inf
    %3153 = vmax.xlane.f32.xlu0 %v3152
    %v3154 = vpop.xlane.xlu0 %3153
    %v3155 = vsub.f32 %v3149, %v3154
    %v3156 = vmul.f32 %v3155, 1.442695
    %v3157 = vpow.pop %v3156
    %v3158 = vsel %vm365, %v3157, 0.0
    %3159 = vadd.xlane.f32.xlu0 %v3158
    %v3160 = vpop.xlane.xlu0 %3159
    %v3161 = vrcp.pop %v3160
    %v3162 = vmul.f32 %v3157, %v3161
    %3163 = vrot.lane.b32.xlu0 %v2590, 96
    %v3164 = vpop.permute.xlu0 %3163
    %v3167 = vsel %vm365, %v3162, 0
    %3169 = vmatprep.subr.mxu0 0.0
    %3170 = vmatpush1.msra.mxu0 %v3164
    %3171 = vmatprep.subr.mxu0 0.0
    %3172 = vmatpush1.msra.mxu0 0.0
    %3173 = vmatprep.subr.mxu0 0.0
    %3174 = vmatpush1.msra.mxu0 0.0
    %3175 = vmatprep.subr.mxu0 0.0
    %3176 = vmatpush1.msra.mxu0 0.0
    %3177 = vmatprep.subr.mxu0 0.0
    %3178 = vmatpush1.msra.mxu0 0.0
    %3179 = vmatprep.subr.mxu0 0.0
    %3180 = vmatpush1.msra.mxu0 0.0
    %3181 = vmatprep.subr.mxu0 0.0
    %3182 = vmatpush1.msra.mxu0 0.0
    %3183 = vmatprep.subr.mxu0 0.0
    %3184 = vmatpush1.msra.mxu0 0.0
    %3185 = vmatprep.subr.mxu0 0.0
    %3186 = vmatpush1.msra.mxu0 0.0
    %3187 = vmatprep.subr.mxu0 0.0
    %3188 = vmatpush1.msra.mxu0 0.0
    %3189 = vmatprep.subr.mxu0 0.0
    %3190 = vmatpush1.msra.mxu0 0.0
    %3191 = vmatprep.subr.mxu0 0.0
    %3192 = vmatpush1.msra.mxu0 0.0
    %3193 = vmatprep.subr.mxu0 0.0
    %3194 = vmatpush1.msra.mxu0 0.0
    %3195 = vmatprep.subr.mxu0 0.0
    %3196 = vmatpush1.msra.mxu0 0.0
    %3197 = vmatprep.subr.mxu0 0.0
    %3198 = vmatpush1.msra.mxu0 0.0
    %3199 = vmatprep.subr.mxu0 0.0
    %3200 = vmatpush1.msra.mxu0 0.0
    %3201 = vmatprep.subr.mxu0 0.0
    %3202 = vmatpush1.msra.mxu0 0.0
    %3203 = vmatprep.subr.mxu0 0.0
    %3204 = vmatpush1.msra.mxu0 0.0
    %3205 = vmatprep.subr.mxu0 0.0
    %3206 = vmatpush1.msra.mxu0 0.0
    %3207 = vmatprep.subr.mxu0 0.0
    %3208 = vmatpush1.msra.mxu0 0.0
    %3209 = vmatprep.subr.mxu0 0.0
    %3210 = vmatpush1.msra.mxu0 0.0
    %3211 = vmatprep.subr.mxu0 0.0
    %3212 = vmatpush1.msra.mxu0 0.0
    %3213 = vmatprep.subr.mxu0 0.0
    %3214 = vmatpush1.msra.mxu0 0.0
    %3215 = vmatprep.subr.mxu0 0.0
    %3216 = vmatpush1.msra.mxu0 0.0
    %3217 = vmatprep.subr.mxu0 0.0
    %3218 = vmatpush1.msra.mxu0 0.0
    %3219 = vmatprep.subr.mxu0 0.0
    %3220 = vmatpush1.msra.mxu0 0.0
    %3221 = vmatprep.subr.mxu0 0.0
    %3222 = vmatpush1.msra.mxu0 0.0
    %3223 = vmatprep.subr.mxu0 0.0
    %3224 = vmatpush1.msra.mxu0 0.0
    %3225 = vmatprep.subr.mxu0 0.0
    %3226 = vmatpush1.msra.mxu0 0.0
    %3227 = vmatprep.subr.mxu0 0.0
    %3228 = vmatpush1.msra.mxu0 0.0
    %3229 = vmatprep.subr.mxu0 0.0
    %3230 = vmatpush1.msra.mxu0 0.0
    %3231 = vmatprep.subr.mxu0 0.0
    %3232 = vmatpush1.msra.mxu0 0.0
    %3233 = vmatprep.mubr.f32.mxu0 0.0
    %3234 = vmatmul.mubr.f32.gmra.mrb[0].mxu0 %v3167
    %v3235 = vpop.f32.mrb[0].mxu0
    %v3236 = vadd.f32 0.0, %v3235
    %v3237 = vpop.f32.mrb[0].mxu0
    %3238 = vdwg.mxu0
    %v3240 = vsel %vm59, %v3236, 0
    %3242 = vmatprep.subr.mxu0 0.0
    %3243 = vmatpush1.msra.mxu0 %v2463
    %3244 = vmatprep.subr.mxu0 0.0
    %3245 = vmatpush1.msra.mxu0 %v2464
    %3246 = vmatprep.subr.mxu0 0.0
    %3247 = vmatpush1.msra.mxu0 0.0
    %3248 = vmatprep.subr.mxu0 0.0
    %3249 = vmatpush1.msra.mxu0 0.0
    %3250 = vmatprep.subr.mxu0 0.0
    %3251 = vmatpush1.msra.mxu0 0.0
    %3252 = vmatprep.subr.mxu0 0.0
    %3253 = vmatpush1.msra.mxu0 0.0
    %3254 = vmatprep.subr.mxu0 0.0
    %3255 = vmatpush1.msra.mxu0 0.0
    %3256 = vmatprep.subr.mxu0 0.0
    %3257 = vmatpush1.msra.mxu0 0.0
    %3258 = vmatprep.subr.mxu0 0.0
    %3259 = vmatpush1.msra.mxu0 0.0
    %3260 = vmatprep.subr.mxu0 0.0
    %3261 = vmatpush1.msra.mxu0 0.0
    %3262 = vmatprep.subr.mxu0 0.0
    %3263 = vmatpush1.msra.mxu0 0.0
    %3264 = vmatprep.subr.mxu0 0.0
    %3265 = vmatpush1.msra.mxu0 0.0
    %3266 = vmatprep.subr.mxu0 0.0
    %3267 = vmatpush1.msra.mxu0 0.0
    %3268 = vmatprep.subr.mxu0 0.0
    %3269 = vmatpush1.msra.mxu0 0.0
    %3270 = vmatprep.subr.mxu0 0.0
    %3271 = vmatpush1.msra.mxu0 0.0
    %3272 = vmatprep.subr.mxu0 0.0
    %3273 = vmatpush1.msra.mxu0 0.0
    %3274 = vmatprep.subr.mxu0 0.0
    %3275 = vmatpush1.msra.mxu0 0.0
    %3276 = vmatprep.subr.mxu0 0.0
    %3277 = vmatpush1.msra.mxu0 0.0
    %3278 = vmatprep.subr.mxu0 0.0
    %3279 = vmatpush1.msra.mxu0 0.0
    %3280 = vmatprep.subr.mxu0 0.0
    %3281 = vmatpush1.msra.mxu0 0.0
    %3282 = vmatprep.subr.mxu0 0.0
    %3283 = vmatpush1.msra.mxu0 0.0
    %3284 = vmatprep.subr.mxu0 0.0
    %3285 = vmatpush1.msra.mxu0 0.0
    %3286 = vmatprep.subr.mxu0 0.0
    %3287 = vmatpush1.msra.mxu0 0.0
    %3288 = vmatprep.subr.mxu0 0.0
    %3289 = vmatpush1.msra.mxu0 0.0
    %3290 = vmatprep.subr.mxu0 0.0
    %3291 = vmatpush1.msra.mxu0 0.0
    %3292 = vmatprep.subr.mxu0 0.0
    %3293 = vmatpush1.msra.mxu0 0.0
    %3294 = vmatprep.subr.mxu0 0.0
    %3295 = vmatpush1.msra.mxu0 0.0
    %3296 = vmatprep.subr.mxu0 0.0
    %3297 = vmatpush1.msra.mxu0 0.0
    %3298 = vmatprep.subr.mxu0 0.0
    %3299 = vmatpush1.msra.mxu0 0.0
    %3300 = vmatprep.subr.mxu0 0.0
    %3301 = vmatpush1.msra.mxu0 0.0
    %3302 = vmatprep.subr.mxu0 0.0
    %3303 = vmatpush1.msra.mxu0 0.0
    %3304 = vmatprep.subr.mxu0 0.0
    %3305 = vmatpush1.msra.mxu0 0.0
    %3306 = vmatprep.mubr.f32.mxu0 0.0
    %3307 = vmatmul.mubr.f32.gmra.mrb[0].mxu0 %v3240
    %v3308 = vpop.f32.mrb[0].mxu0
    %v3309 = vadd.f32 0.0, %v3308
    %v3310 = vpop.f32.mrb[0].mxu0
    %3311 = vdwg.mxu0
    %v3312 = vadd.f32 %v3071, %v3309
    %3313 = vrot.lane.b32.xlu0 %v2598, 80
    %v3314 = vpop.permute.xlu0 %3313
    %3315 = vrot.lane.b32.xlu0 %v2588, 16
    %v3316 = vpop.permute.xlu0 %3315
    %v3317 = vsel %vm59, %v3314, 0
    %v3319 = vsel %vm59, %v3316, 0
    %3321 = vmatprep.subr.mxu0 0.0
    %3322 = vmatpush1.xpose.msra.mxu0 %v3319
    %3323 = vmatprep.subr.mxu0 0.0
    %3324 = vmatpush1.xpose.msra.mxu0 0.0
    %3325 = vmatprep.subr.mxu0 0.0
    %3326 = vmatpush1.xpose.msra.mxu0 0.0
    %3327 = vmatprep.subr.mxu0 0.0
    %3328 = vmatpush1.xpose.msra.mxu0 0.0
    %3329 = vmatprep.subr.mxu0 0.0
    %3330 = vmatpush1.xpose.msra.mxu0 0.0
    %3331 = vmatprep.subr.mxu0 0.0
    %3332 = vmatpush1.xpose.msra.mxu0 0.0
    %3333 = vmatprep.subr.mxu0 0.0
    %3334 = vmatpush1.xpose.msra.mxu0 0.0
    %3335 = vmatprep.subr.mxu0 0.0
    %3336 = vmatpush1.xpose.msra.mxu0 0.0
    %3337 = vmatprep.subr.mxu0 0.0
    %3338 = vmatpush1.xpose.msra.mxu0 0.0
    %3339 = vmatprep.subr.mxu0 0.0
    %3340 = vmatpush1.xpose.msra.mxu0 0.0
    %3341 = vmatprep.subr.mxu0 0.0
    %3342 = vmatpush1.xpose.msra.mxu0 0.0
    %3343 = vmatprep.subr.mxu0 0.0
    %3344 = vmatpush1.xpose.msra.mxu0 0.0
    %3345 = vmatprep.subr.mxu0 0.0
    %3346 = vmatpush1.xpose.msra.mxu0 0.0
    %3347 = vmatprep.subr.mxu0 0.0
    %3348 = vmatpush1.xpose.msra.mxu0 0.0
    %3349 = vmatprep.subr.mxu0 0.0
    %3350 = vmatpush1.xpose.msra.mxu0 0.0
    %3351 = vmatprep.subr.mxu0 0.0
    %3352 = vmatpush1.xpose.msra.mxu0 0.0
    %3353 = vmatprep.subr.mxu0 0.0
    %3354 = vmatpush1.xpose.msra.mxu0 0.0
    %3355 = vmatprep.subr.mxu0 0.0
    %3356 = vmatpush1.xpose.msra.mxu0 0.0
    %3357 = vmatprep.subr.mxu0 0.0
    %3358 = vmatpush1.xpose.msra.mxu0 0.0
    %3359 = vmatprep.subr.mxu0 0.0
    %3360 = vmatpush1.xpose.msra.mxu0 0.0
    %3361 = vmatprep.subr.mxu0 0.0
    %3362 = vmatpush1.xpose.msra.mxu0 0.0
    %3363 = vmatprep.subr.mxu0 0.0
    %3364 = vmatpush1.xpose.msra.mxu0 0.0
    %3365 = vmatprep.subr.mxu0 0.0
    %3366 = vmatpush1.xpose.msra.mxu0 0.0
    %3367 = vmatprep.subr.mxu0 0.0
    %3368 = vmatpush1.xpose.msra.mxu0 0.0
    %3369 = vmatprep.subr.mxu0 0.0
    %3370 = vmatpush1.xpose.msra.mxu0 0.0
    %3371 = vmatprep.subr.mxu0 0.0
    %3372 = vmatpush1.xpose.msra.mxu0 0.0
    %3373 = vmatprep.subr.mxu0 0.0
    %3374 = vmatpush1.xpose.msra.mxu0 0.0
    %3375 = vmatprep.subr.mxu0 0.0
    %3376 = vmatpush1.xpose.msra.mxu0 0.0
    %3377 = vmatprep.subr.mxu0 0.0
    %3378 = vmatpush1.xpose.msra.mxu0 0.0
    %3379 = vmatprep.subr.mxu0 0.0
    %3380 = vmatpush1.xpose.msra.mxu0 0.0
    %3381 = vmatprep.subr.mxu0 0.0
    %3382 = vmatpush1.xpose.msra.mxu0 0.0
    %3383 = vmatprep.subr.mxu0 0.0
    %3384 = vmatpush1.xpose.msra.mxu0 0.0
    %3385 = vmatprep.mubr.f32.mxu0 0.0
    %3386 = vmatmul.mubr.f32.gmra.mrb[0].mxu0 %v3317
    %v3387 = vpop.f32.mrb[0].mxu0
    %v3388 = vadd.f32 %v146, %v3387
    %v3389 = vpop.f32.mrb[0].mxu0
    %3390 = vdwg.mxu0
    %v3391 = vsel %vm365, %v3388, -inf
    %3392 = vmax.xlane.f32.xlu0 %v3391
    %v3393 = vpop.xlane.xlu0 %3392
    %v3394 = vsub.f32 %v3388, %v3393
    %v3395 = vmul.f32 %v3394, 1.442695
    %v3396 = vpow.pop %v3395
    %v3397 = vsel %vm365, %v3396, 0.0
    %3398 = vadd.xlane.f32.xlu0 %v3397
    %v3399 = vpop.xlane.xlu0 %3398
    %v3400 = vrcp.pop %v3399
    %v3401 = vmul.f32 %v3396, %v3400
    %3402 = vrot.lane.b32.xlu0 %v2590, 80
    %v3403 = vpop.permute.xlu0 %3402
    %v3406 = vsel %vm365, %v3401, 0
    %3408 = vmatprep.subr.mxu0 0.0
    %3409 = vmatpush1.msra.mxu0 %v3403
    %3410 = vmatprep.subr.mxu0 0.0
    %3411 = vmatpush1.msra.mxu0 0.0
    %3412 = vmatprep.subr.mxu0 0.0
    %3413 = vmatpush1.msra.mxu0 0.0
    %3414 = vmatprep.subr.mxu0 0.0
    %3415 = vmatpush1.msra.mxu0 0.0
    %3416 = vmatprep.subr.mxu0 0.0
    %3417 = vmatpush1.msra.mxu0 0.0
    %3418 = vmatprep.subr.mxu0 0.0
    %3419 = vmatpush1.msra.mxu0 0.0
    %3420 = vmatprep.subr.mxu0 0.0
    %3421 = vmatpush1.msra.mxu0 0.0
    %3422 = vmatprep.subr.mxu0 0.0
    %3423 = vmatpush1.msra.mxu0 0.0
    %3424 = vmatprep.subr.mxu0 0.0
    %3425 = vmatpush1.msra.mxu0 0.0
    %3426 = vmatprep.subr.mxu0 0.0
    %3427 = vmatpush1.msra.mxu0 0.0
    %3428 = vmatprep.subr.mxu0 0.0
    %3429 = vmatpush1.msra.mxu0 0.0
    %3430 = vmatprep.subr.mxu0 0.0
    %3431 = vmatpush1.msra.mxu0 0.0
    %3432 = vmatprep.subr.mxu0 0.0
    %3433 = vmatpush1.msra.mxu0 0.0
    %3434 = vmatprep.subr.mxu0 0.0
    %3435 = vmatpush1.msra.mxu0 0.0
    %3436 = vmatprep.subr.mxu0 0.0
    %3437 = vmatpush1.msra.mxu0 0.0
    %3438 = vmatprep.subr.mxu0 0.0
    %3439 = vmatpush1.msra.mxu0 0.0
    %3440 = vmatprep.subr.mxu0 0.0
    %3441 = vmatpush1.msra.mxu0 0.0
    %3442 = vmatprep.subr.mxu0 0.0
    %3443 = vmatpush1.msra.mxu0 0.0
    %3444 = vmatprep.subr.mxu0 0.0
    %3445 = vmatpush1.msra.mxu0 0.0
    %3446 = vmatprep.subr.mxu0 0.0
    %3447 = vmatpush1.msra.mxu0 0.0
    %3448 = vmatprep.subr.mxu0 0.0
    %3449 = vmatpush1.msra.mxu0 0.0
    %3450 = vmatprep.subr.mxu0 0.0
    %3451 = vmatpush1.msra.mxu0 0.0
    %3452 = vmatprep.subr.mxu0 0.0
    %3453 = vmatpush1.msra.mxu0 0.0
    %3454 = vmatprep.subr.mxu0 0.0
    %3455 = vmatpush1.msra.mxu0 0.0
    %3456 = vmatprep.subr.mxu0 0.0
    %3457 = vmatpush1.msra.mxu0 0.0
    %3458 = vmatprep.subr.mxu0 0.0
    %3459 = vmatpush1.msra.mxu0 0.0
    %3460 = vmatprep.subr.mxu0 0.0
    %3461 = vmatpush1.msra.mxu0 0.0
    %3462 = vmatprep.subr.mxu0 0.0
    %3463 = vmatpush1.msra.mxu0 0.0
    %3464 = vmatprep.subr.mxu0 0.0
    %3465 = vmatpush1.msra.mxu0 0.0
    %3466 = vmatprep.subr.mxu0 0.0
    %3467 = vmatpush1.msra.mxu0 0.0
    %3468 = vmatprep.subr.mxu0 0.0
    %3469 = vmatpush1.msra.mxu0 0.0
    %3470 = vmatprep.subr.mxu0 0.0
    %3471 = vmatpush1.msra.mxu0 0.0
    %3472 = vmatprep.mubr.f32.mxu0 0.0
    %3473 = vmatmul.mubr.f32.gmra.mrb[0].mxu0 %v3406
    %v3474 = vpop.f32.mrb[0].mxu0
    %v3475 = vadd.f32 0.0, %v3474
    %v3476 = vpop.f32.mrb[0].mxu0
    %3477 = vdwg.mxu0
    %v3479 = vsel %vm59, %v3475, 0
    %3481 = vmatprep.subr.mxu0 0.0
    %3482 = vmatpush1.msra.mxu0 %v2465
    %3483 = vmatprep.subr.mxu0 0.0
    %3484 = vmatpush1.msra.mxu0 %v2466
    %3485 = vmatprep.subr.mxu0 0.0
    %3486 = vmatpush1.msra.mxu0 0.0
    %3487 = vmatprep.subr.mxu0 0.0
    %3488 = vmatpush1.msra.mxu0 0.0
    %3489 = vmatprep.subr.mxu0 0.0
    %3490 = vmatpush1.msra.mxu0 0.0
    %3491 = vmatprep.subr.mxu0 0.0
    %3492 = vmatpush1.msra.mxu0 0.0
    %3493 = vmatprep.subr.mxu0 0.0
    %3494 = vmatpush1.msra.mxu0 0.0
    %3495 = vmatprep.subr.mxu0 0.0
    %3496 = vmatpush1.msra.mxu0 0.0
    %3497 = vmatprep.subr.mxu0 0.0
    %3498 = vmatpush1.msra.mxu0 0.0
    %3499 = vmatprep.subr.mxu0 0.0
    %3500 = vmatpush1.msra.mxu0 0.0
    %3501 = vmatprep.subr.mxu0 0.0
    %3502 = vmatpush1.msra.mxu0 0.0
    %3503 = vmatprep.subr.mxu0 0.0
    %3504 = vmatpush1.msra.mxu0 0.0
    %3505 = vmatprep.subr.mxu0 0.0
    %3506 = vmatpush1.msra.mxu0 0.0
    %3507 = vmatprep.subr.mxu0 0.0
    %3508 = vmatpush1.msra.mxu0 0.0
    %3509 = vmatprep.subr.mxu0 0.0
    %3510 = vmatpush1.msra.mxu0 0.0
    %3511 = vmatprep.subr.mxu0 0.0
    %3512 = vmatpush1.msra.mxu0 0.0
    %3513 = vmatprep.subr.mxu0 0.0
    %3514 = vmatpush1.msra.mxu0 0.0
    %3515 = vmatprep.subr.mxu0 0.0
    %3516 = vmatpush1.msra.mxu0 0.0
    %3517 = vmatprep.subr.mxu0 0.0
    %3518 = vmatpush1.msra.mxu0 0.0
    %3519 = vmatprep.subr.mxu0 0.0
    %3520 = vmatpush1.msra.mxu0 0.0
    %3521 = vmatprep.subr.mxu0 0.0
    %3522 = vmatpush1.msra.mxu0 0.0
    %3523 = vmatprep.subr.mxu0 0.0
    %3524 = vmatpush1.msra.mxu0 0.0
    %3525 = vmatprep.subr.mxu0 0.0
    %3526 = vmatpush1.msra.mxu0 0.0
    %3527 = vmatprep.subr.mxu0 0.0
    %3528 = vmatpush1.msra.mxu0 0.0
    %3529 = vmatprep.subr.mxu0 0.0
    %3530 = vmatpush1.msra.mxu0 0.0
    %3531 = vmatprep.subr.mxu0 0.0
    %3532 = vmatpush1.msra.mxu0 0.0
    %3533 = vmatprep.subr.mxu0 0.0
    %3534 = vmatpush1.msra.mxu0 0.0
    %3535 = vmatprep.subr.mxu0 0.0
    %3536 = vmatpush1.msra.mxu0 0.0
    %3537 = vmatprep.subr.mxu0 0.0
    %3538 = vmatpush1.msra.mxu0 0.0
    %3539 = vmatprep.subr.mxu0 0.0
    %3540 = vmatpush1.msra.mxu0 0.0
    %3541 = vmatprep.subr.mxu0 0.0
    %3542 = vmatpush1.msra.mxu0 0.0
    %3543 = vmatprep.subr.mxu0 0.0
    %3544 = vmatpush1.msra.mxu0 0.0
    %3545 = vmatprep.mubr.f32.mxu0 0.0
    %3546 = vmatmul.mubr.f32.gmra.mrb[0].mxu0 %v3479
    %v3547 = vpop.f32.mrb[0].mxu0
    %v3548 = vadd.f32 0.0, %v3547
    %v3549 = vpop.f32.mrb[0].mxu0
    %3550 = vdwg.mxu0
    %v3551 = vadd.f32 %v3312, %v3548
    %3553 = vrot.lane.b32.xlu0 %v2594, 64
    %v3554 = vpop.permute.xlu0 %3553
    %v3556 = vsel %vm59, %v2599, 0
    %v3558 = vsel %vm59, %v3554, 0
    %3560 = vmatprep.subr.mxu0 0.0
    %3561 = vmatpush1.xpose.msra.mxu0 %v3558
    %3562 = vmatprep.subr.mxu0 0.0
    %3563 = vmatpush1.xpose.msra.mxu0 0.0
    %3564 = vmatprep.subr.mxu0 0.0
    %3565 = vmatpush1.xpose.msra.mxu0 0.0
    %3566 = vmatprep.subr.mxu0 0.0
    %3567 = vmatpush1.xpose.msra.mxu0 0.0
    %3568 = vmatprep.subr.mxu0 0.0
    %3569 = vmatpush1.xpose.msra.mxu0 0.0
    %3570 = vmatprep.subr.mxu0 0.0
    %3571 = vmatpush1.xpose.msra.mxu0 0.0
    %3572 = vmatprep.subr.mxu0 0.0
    %3573 = vmatpush1.xpose.msra.mxu0 0.0
    %3574 = vmatprep.subr.mxu0 0.0
    %3575 = vmatpush1.xpose.msra.mxu0 0.0
    %3576 = vmatprep.subr.mxu0 0.0
    %3577 = vmatpush1.xpose.msra.mxu0 0.0
    %3578 = vmatprep.subr.mxu0 0.0
    %3579 = vmatpush1.xpose.msra.mxu0 0.0
    %3580 = vmatprep.subr.mxu0 0.0
    %3581 = vmatpush1.xpose.msra.mxu0 0.0
    %3582 = vmatprep.subr.mxu0 0.0
    %3583 = vmatpush1.xpose.msra.mxu0 0.0
    %3584 = vmatprep.subr.mxu0 0.0
    %3585 = vmatpush1.xpose.msra.mxu0 0.0
    %3586 = vmatprep.subr.mxu0 0.0
    %3587 = vmatpush1.xpose.msra.mxu0 0.0
    %3588 = vmatprep.subr.mxu0 0.0
    %3589 = vmatpush1.xpose.msra.mxu0 0.0
    %3590 = vmatprep.subr.mxu0 0.0
    %3591 = vmatpush1.xpose.msra.mxu0 0.0
    %3592 = vmatprep.subr.mxu0 0.0
    %3593 = vmatpush1.xpose.msra.mxu0 0.0
    %3594 = vmatprep.subr.mxu0 0.0
    %3595 = vmatpush1.xpose.msra.mxu0 0.0
    %3596 = vmatprep.subr.mxu0 0.0
    %3597 = vmatpush1.xpose.msra.mxu0 0.0
    %3598 = vmatprep.subr.mxu0 0.0
    %3599 = vmatpush1.xpose.msra.mxu0 0.0
    %3600 = vmatprep.subr.mxu0 0.0
    %3601 = vmatpush1.xpose.msra.mxu0 0.0
    %3602 = vmatprep.subr.mxu0 0.0
    %3603 = vmatpush1.xpose.msra.mxu0 0.0
    %3604 = vmatprep.subr.mxu0 0.0
    %3605 = vmatpush1.xpose.msra.mxu0 0.0
    %3606 = vmatprep.subr.mxu0 0.0
    %3607 = vmatpush1.xpose.msra.mxu0 0.0
    %3608 = vmatprep.subr.mxu0 0.0
    %3609 = vmatpush1.xpose.msra.mxu0 0.0
    %3610 = vmatprep.subr.mxu0 0.0
    %3611 = vmatpush1.xpose.msra.mxu0 0.0
    %3612 = vmatprep.subr.mxu0 0.0
    %3613 = vmatpush1.xpose.msra.mxu0 0.0
    %3614 = vmatprep.subr.mxu0 0.0
    %3615 = vmatpush1.xpose.msra.mxu0 0.0
    %3616 = vmatprep.subr.mxu0 0.0
    %3617 = vmatpush1.xpose.msra.mxu0 0.0
    %3618 = vmatprep.subr.mxu0 0.0
    %3619 = vmatpush1.xpose.msra.mxu0 0.0
    %3620 = vmatprep.subr.mxu0 0.0
    %3621 = vmatpush1.xpose.msra.mxu0 0.0
    %3622 = vmatprep.subr.mxu0 0.0
    %3623 = vmatpush1.xpose.msra.mxu0 0.0
    %3624 = vmatprep.mubr.f32.mxu0 0.0
    %3625 = vmatmul.mubr.f32.gmra.mrb[0].mxu0 %v3556
    %v3626 = vpop.f32.mrb[0].mxu0
    %v3627 = vadd.f32 %v146, %v3626
    %v3628 = vpop.f32.mrb[0].mxu0
    %3629 = vdwg.mxu0
    %v3630 = vsel %vm365, %v3627, -inf
    %3631 = vmax.xlane.f32.xlu0 %v3630
    %v3632 = vpop.xlane.xlu0 %3631
    %v3633 = vsub.f32 %v3627, %v3632
    %v3634 = vmul.f32 %v3633, 1.442695
    %v3635 = vpow.pop %v3634
    %v3636 = vsel %vm365, %v3635, 0.0
    %3637 = vadd.xlane.f32.xlu0 %v3636
    %v3638 = vpop.xlane.xlu0 %3637
    %v3639 = vrcp.pop %v3638
    %v3640 = vmul.f32 %v3635, %v3639
    %v3642 = vsel %vm365, %v3640, 0
    %3644 = vmatprep.subr.mxu0 0.0
    %3645 = vmatpush1.msra.mxu0 %v2596
    %3646 = vmatprep.subr.mxu0 0.0
    %3647 = vmatpush1.msra.mxu0 0.0
    %3648 = vmatprep.subr.mxu0 0.0
    %3649 = vmatpush1.msra.mxu0 0.0
    %3650 = vmatprep.subr.mxu0 0.0
    %3651 = vmatpush1.msra.mxu0 0.0
    %3652 = vmatprep.subr.mxu0 0.0
    %3653 = vmatpush1.msra.mxu0 0.0
    %3654 = vmatprep.subr.mxu0 0.0
    %3655 = vmatpush1.msra.mxu0 0.0
    %3656 = vmatprep.subr.mxu0 0.0
    %3657 = vmatpush1.msra.mxu0 0.0
    %3658 = vmatprep.subr.mxu0 0.0
    %3659 = vmatpush1.msra.mxu0 0.0
    %3660 = vmatprep.subr.mxu0 0.0
    %3661 = vmatpush1.msra.mxu0 0.0
    %3662 = vmatprep.subr.mxu0 0.0
    %3663 = vmatpush1.msra.mxu0 0.0
    %3664 = vmatprep.subr.mxu0 0.0
    %3665 = vmatpush1.msra.mxu0 0.0
    %3666 = vmatprep.subr.mxu0 0.0
    %3667 = vmatpush1.msra.mxu0 0.0
    %3668 = vmatprep.subr.mxu0 0.0
    %3669 = vmatpush1.msra.mxu0 0.0
    %3670 = vmatprep.subr.mxu0 0.0
    %3671 = vmatpush1.msra.mxu0 0.0
    %3672 = vmatprep.subr.mxu0 0.0
    %3673 = vmatpush1.msra.mxu0 0.0
    %3674 = vmatprep.subr.mxu0 0.0
    %3675 = vmatpush1.msra.mxu0 0.0
    %3676 = vmatprep.subr.mxu0 0.0
    %3677 = vmatpush1.msra.mxu0 0.0
    %3678 = vmatprep.subr.mxu0 0.0
    %3679 = vmatpush1.msra.mxu0 0.0
    %3680 = vmatprep.subr.mxu0 0.0
    %3681 = vmatpush1.msra.mxu0 0.0
    %3682 = vmatprep.subr.mxu0 0.0
    %3683 = vmatpush1.msra.mxu0 0.0
    %3684 = vmatprep.subr.mxu0 0.0
    %3685 = vmatpush1.msra.mxu0 0.0
    %3686 = vmatprep.subr.mxu0 0.0
    %3687 = vmatpush1.msra.mxu0 0.0
    %3688 = vmatprep.subr.mxu0 0.0
    %3689 = vmatpush1.msra.mxu0 0.0
    %3690 = vmatprep.subr.mxu0 0.0
    %3691 = vmatpush1.msra.mxu0 0.0
    %3692 = vmatprep.subr.mxu0 0.0
    %3693 = vmatpush1.msra.mxu0 0.0
    %3694 = vmatprep.subr.mxu0 0.0
    %3695 = vmatpush1.msra.mxu0 0.0
    %3696 = vmatprep.subr.mxu0 0.0
    %3697 = vmatpush1.msra.mxu0 0.0
    %3698 = vmatprep.subr.mxu0 0.0
    %3699 = vmatpush1.msra.mxu0 0.0
    %3700 = vmatprep.subr.mxu0 0.0
    %3701 = vmatpush1.msra.mxu0 0.0
    %3702 = vmatprep.subr.mxu0 0.0
    %3703 = vmatpush1.msra.mxu0 0.0
    %3704 = vmatprep.subr.mxu0 0.0
    %3705 = vmatpush1.msra.mxu0 0.0
    %3706 = vmatprep.subr.mxu0 0.0
    %3707 = vmatpush1.msra.mxu0 0.0
    %3708 = vmatprep.mubr.f32.mxu0 0.0
    %3709 = vmatmul.mubr.f32.gmra.mrb[0].mxu0 %v3642
    %v3710 = vpop.f32.mrb[0].mxu0
    %v3711 = vadd.f32 0.0, %v3710
    %v3712 = vpop.f32.mrb[0].mxu0
    %3713 = vdwg.mxu0
    %3714 = vrot.lane.b32.xlu0 %v2599, 112
    %v3715 = vpop.permute.xlu0 %3714
    %3716 = vrot.lane.b32.xlu0 %v2594, 48
    %v3717 = vpop.permute.xlu0 %3716
    %v3718 = vsel %vm59, %v3715, 0
    %v3720 = vsel %vm59, %v3717, 0
    %3722 = vmatprep.subr.mxu0 0.0
    %3723 = vmatpush1.xpose.msra.mxu0 %v3720
    %3724 = vmatprep.subr.mxu0 0.0
    %3725 = vmatpush1.xpose.msra.mxu0 0.0
    %3726 = vmatprep.subr.mxu0 0.0
    %3727 = vmatpush1.xpose.msra.mxu0 0.0
    %3728 = vmatprep.subr.mxu0 0.0
    %3729 = vmatpush1.xpose.msra.mxu0 0.0
    %3730 = vmatprep.subr.mxu0 0.0
    %3731 = vmatpush1.xpose.msra.mxu0 0.0
    %3732 = vmatprep.subr.mxu0 0.0
    %3733 = vmatpush1.xpose.msra.mxu0 0.0
    %3734 = vmatprep.subr.mxu0 0.0
    %3735 = vmatpush1.xpose.msra.mxu0 0.0
    %3736 = vmatprep.subr.mxu0 0.0
    %3737 = vmatpush1.xpose.msra.mxu0 0.0
    %3738 = vmatprep.subr.mxu0 0.0
    %3739 = vmatpush1.xpose.msra.mxu0 0.0
    %3740 = vmatprep.subr.mxu0 0.0
    %3741 = vmatpush1.xpose.msra.mxu0 0.0
    %3742 = vmatprep.subr.mxu0 0.0
    %3743 = vmatpush1.xpose.msra.mxu0 0.0
    %3744 = vmatprep.subr.mxu0 0.0
    %3745 = vmatpush1.xpose.msra.mxu0 0.0
    %3746 = vmatprep.subr.mxu0 0.0
    %3747 = vmatpush1.xpose.msra.mxu0 0.0
    %3748 = vmatprep.subr.mxu0 0.0
    %3749 = vmatpush1.xpose.msra.mxu0 0.0
    %3750 = vmatprep.subr.mxu0 0.0
    %3751 = vmatpush1.xpose.msra.mxu0 0.0
    %3752 = vmatprep.subr.mxu0 0.0
    %3753 = vmatpush1.xpose.msra.mxu0 0.0
    %3754 = vmatprep.subr.mxu0 0.0
    %3755 = vmatpush1.xpose.msra.mxu0 0.0
    %3756 = vmatprep.subr.mxu0 0.0
    %3757 = vmatpush1.xpose.msra.mxu0 0.0
    %3758 = vmatprep.subr.mxu0 0.0
    %3759 = vmatpush1.xpose.msra.mxu0 0.0
    %3760 = vmatprep.subr.mxu0 0.0
    %3761 = vmatpush1.xpose.msra.mxu0 0.0
    %3762 = vmatprep.subr.mxu0 0.0
    %3763 = vmatpush1.xpose.msra.mxu0 0.0
    %3764 = vmatprep.subr.mxu0 0.0
    %3765 = vmatpush1.xpose.msra.mxu0 0.0
    %3766 = vmatprep.subr.mxu0 0.0
    %3767 = vmatpush1.xpose.msra.mxu0 0.0
    %3768 = vmatprep.subr.mxu0 0.0
    %3769 = vmatpush1.xpose.msra.mxu0 0.0
    %3770 = vmatprep.subr.mxu0 0.0
    %3771 = vmatpush1.xpose.msra.mxu0 0.0
    %3772 = vmatprep.subr.mxu0 0.0
    %3773 = vmatpush1.xpose.msra.mxu0 0.0
    %3774 = vmatprep.subr.mxu0 0.0
    %3775 = vmatpush1.xpose.msra.mxu0 0.0
    %3776 = vmatprep.subr.mxu0 0.0
    %3777 = vmatpush1.xpose.msra.mxu0 0.0
    %3778 = vmatprep.subr.mxu0 0.0
    %3779 = vmatpush1.xpose.msra.mxu0 0.0
    %3780 = vmatprep.subr.mxu0 0.0
    %3781 = vmatpush1.xpose.msra.mxu0 0.0
    %3782 = vmatprep.subr.mxu0 0.0
    %3783 = vmatpush1.xpose.msra.mxu0 0.0
    %3784 = vmatprep.subr.mxu0 0.0
    %3785 = vmatpush1.xpose.msra.mxu0 0.0
    %3786 = vmatprep.mubr.f32.mxu0 0.0
    %3787 = vmatmul.mubr.f32.gmra.mrb[0].mxu0 %v3718
    %v3788 = vpop.f32.mrb[0].mxu0
    %v3789 = vadd.f32 %v146, %v3788
    %v3790 = vpop.f32.mrb[0].mxu0
    %3791 = vdwg.mxu0
    %v3792 = vsel %vm365, %v3789, -inf
    %3793 = vmax.xlane.f32.xlu0 %v3792
    %v3794 = vpop.xlane.xlu0 %3793
    %v3795 = vsub.f32 %v3789, %v3794
    %v3796 = vmul.f32 %v3795, 1.442695
    %v3797 = vpow.pop %v3796
    %v3798 = vsel %vm365, %v3797, 0.0
    %3799 = vadd.xlane.f32.xlu0 %v3798
    %v3800 = vpop.xlane.xlu0 %3799
    %v3801 = vrcp.pop %v3800
    %v3802 = vmul.f32 %v3797, %v3801
    %3804 = vrot.lane.b32.xlu0 %v2596, 112
    %v3805 = vpop.permute.xlu0 %3804
    %v3808 = vsel %vm365, %v3802, 0
    %3810 = vmatprep.subr.mxu0 0.0
    %3811 = vmatpush1.msra.mxu0 %v3805
    %3812 = vmatprep.subr.mxu0 0.0
    %3813 = vmatpush1.msra.mxu0 0.0
    %3814 = vmatprep.subr.mxu0 0.0
    %3815 = vmatpush1.msra.mxu0 0.0
    %3816 = vmatprep.subr.mxu0 0.0
    %3817 = vmatpush1.msra.mxu0 0.0
    %3818 = vmatprep.subr.mxu0 0.0
    %3819 = vmatpush1.msra.mxu0 0.0
    %3820 = vmatprep.subr.mxu0 0.0
    %3821 = vmatpush1.msra.mxu0 0.0
    %3822 = vmatprep.subr.mxu0 0.0
    %3823 = vmatpush1.msra.mxu0 0.0
    %3824 = vmatprep.subr.mxu0 0.0
    %3825 = vmatpush1.msra.mxu0 0.0
    %3826 = vmatprep.subr.mxu0 0.0
    %3827 = vmatpush1.msra.mxu0 0.0
    %3828 = vmatprep.subr.mxu0 0.0
    %3829 = vmatpush1.msra.mxu0 0.0
    %3830 = vmatprep.subr.mxu0 0.0
    %3831 = vmatpush1.msra.mxu0 0.0
    %3832 = vmatprep.subr.mxu0 0.0
    %3833 = vmatpush1.msra.mxu0 0.0
    %3834 = vmatprep.subr.mxu0 0.0
    %3835 = vmatpush1.msra.mxu0 0.0
    %3836 = vmatprep.subr.mxu0 0.0
    %3837 = vmatpush1.msra.mxu0 0.0
    %3838 = vmatprep.subr.mxu0 0.0
    %3839 = vmatpush1.msra.mxu0 0.0
    %3840 = vmatprep.subr.mxu0 0.0
    %3841 = vmatpush1.msra.mxu0 0.0
    %3842 = vmatprep.subr.mxu0 0.0
    %3843 = vmatpush1.msra.mxu0 0.0
    %3844 = vmatprep.subr.mxu0 0.0
    %3845 = vmatpush1.msra.mxu0 0.0
    %3846 = vmatprep.subr.mxu0 0.0
    %3847 = vmatpush1.msra.mxu0 0.0
    %3848 = vmatprep.subr.mxu0 0.0
    %3849 = vmatpush1.msra.mxu0 0.0
    %3850 = vmatprep.subr.mxu0 0.0
    %3851 = vmatpush1.msra.mxu0 0.0
    %3852 = vmatprep.subr.mxu0 0.0
    %3853 = vmatpush1.msra.mxu0 0.0
    %3854 = vmatprep.subr.mxu0 0.0
    %3855 = vmatpush1.msra.mxu0 0.0
    %3856 = vmatprep.subr.mxu0 0.0
    %3857 = vmatpush1.msra.mxu0 0.0
    %3858 = vmatprep.subr.mxu0 0.0
    %3859 = vmatpush1.msra.mxu0 0.0
    %3860 = vmatprep.subr.mxu0 0.0
    %3861 = vmatpush1.msra.mxu0 0.0
    %3862 = vmatprep.subr.mxu0 0.0
    %3863 = vmatpush1.msra.mxu0 0.0
    %3864 = vmatprep.subr.mxu0 0.0
    %3865 = vmatpush1.msra.mxu0 0.0
    %3866 = vmatprep.subr.mxu0 0.0
    %3867 = vmatpush1.msra.mxu0 0.0
    %3868 = vmatprep.subr.mxu0 0.0
    %3869 = vmatpush1.msra.mxu0 0.0
    %3870 = vmatprep.subr.mxu0 0.0
    %3871 = vmatpush1.msra.mxu0 0.0
    %3872 = vmatprep.subr.mxu0 0.0
    %3873 = vmatpush1.msra.mxu0 0.0
    %3874 = vmatprep.mubr.f32.mxu0 0.0
    %3875 = vmatmul.mubr.f32.gmra.mrb[0].mxu0 %v3808
    %v3876 = vpop.f32.mrb[0].mxu0
    %v3877 = vadd.f32 0.0, %v3876
    %v3878 = vpop.f32.mrb[0].mxu0
    %3879 = vdwg.mxu0
    %v3881 = vsel %vm59, %v3877, 0
    %3883 = vmatprep.subr.mxu0 0.0
    %3884 = vmatpush1.msra.mxu0 %v2461
    %3885 = vmatprep.subr.mxu0 0.0
    %3886 = vmatpush1.msra.mxu0 %v2462
    %3887 = vmatprep.subr.mxu0 0.0
    %3888 = vmatpush1.msra.mxu0 0.0
    %3889 = vmatprep.subr.mxu0 0.0
    %3890 = vmatpush1.msra.mxu0 0.0
    %3891 = vmatprep.subr.mxu0 0.0
    %3892 = vmatpush1.msra.mxu0 0.0
    %3893 = vmatprep.subr.mxu0 0.0
    %3894 = vmatpush1.msra.mxu0 0.0
    %3895 = vmatprep.subr.mxu0 0.0
    %3896 = vmatpush1.msra.mxu0 0.0
    %3897 = vmatprep.subr.mxu0 0.0
    %3898 = vmatpush1.msra.mxu0 0.0
    %3899 = vmatprep.subr.mxu0 0.0
    %3900 = vmatpush1.msra.mxu0 0.0
    %3901 = vmatprep.subr.mxu0 0.0
    %3902 = vmatpush1.msra.mxu0 0.0
    %3903 = vmatprep.subr.mxu0 0.0
    %3904 = vmatpush1.msra.mxu0 0.0
    %3905 = vmatprep.subr.mxu0 0.0
    %3906 = vmatpush1.msra.mxu0 0.0
    %3907 = vmatprep.subr.mxu0 0.0
    %3908 = vmatpush1.msra.mxu0 0.0
    %3909 = vmatprep.subr.mxu0 0.0
    %3910 = vmatpush1.msra.mxu0 0.0
    %3911 = vmatprep.subr.mxu0 0.0
    %3912 = vmatpush1.msra.mxu0 0.0
    %3913 = vmatprep.subr.mxu0 0.0
    %3914 = vmatpush1.msra.mxu0 0.0
    %3915 = vmatprep.subr.mxu0 0.0
    %3916 = vmatpush1.msra.mxu0 0.0
    %3917 = vmatprep.subr.mxu0 0.0
    %3918 = vmatpush1.msra.mxu0 0.0
    %3919 = vmatprep.subr.mxu0 0.0
    %3920 = vmatpush1.msra.mxu0 0.0
    %3921 = vmatprep.subr.mxu0 0.0
    %3922 = vmatpush1.msra.mxu0 0.0
    %3923 = vmatprep.subr.mxu0 0.0
    %3924 = vmatpush1.msra.mxu0 0.0
    %3925 = vmatprep.subr.mxu0 0.0
    %3926 = vmatpush1.msra.mxu0 0.0
    %3927 = vmatprep.subr.mxu0 0.0
    %3928 = vmatpush1.msra.mxu0 0.0
    %3929 = vmatprep.subr.mxu0 0.0
    %3930 = vmatpush1.msra.mxu0 0.0
    %3931 = vmatprep.subr.mxu0 0.0
    %3932 = vmatpush1.msra.mxu0 0.0
    %3933 = vmatprep.subr.mxu0 0.0
    %3934 = vmatpush1.msra.mxu0 0.0
    %3935 = vmatprep.subr.mxu0 0.0
    %3936 = vmatpush1.msra.mxu0 0.0
    %3937 = vmatprep.subr.mxu0 0.0
    %3938 = vmatpush1.msra.mxu0 0.0
    %3939 = vmatprep.subr.mxu0 0.0
    %3940 = vmatpush1.msra.mxu0 0.0
    %3941 = vmatprep.subr.mxu0 0.0
    %3942 = vmatpush1.msra.mxu0 0.0
    %3943 = vmatprep.subr.mxu0 0.0
    %3944 = vmatpush1.msra.mxu0 0.0
    %3945 = vmatprep.subr.mxu0 0.0
    %3946 = vmatpush1.msra.mxu0 0.0
    %3947 = vmatprep.mubr.f32.mxu0 0.0
    %3948 = vmatmul.mubr.f32.gmra.mrb[0].mxu0 %v3881
    %v3949 = vpop.f32.mrb[0].mxu0
    %v3950 = vadd.f32 0.0, %v3949
    %v3951 = vpop.f32.mrb[0].mxu0
    %3952 = vdwg.mxu0
    %v3954 = vsel %vm59, %v3711, 0
    %3956 = vmatprep.subr.mxu0 0.0
    %3957 = vmatpush1.msra.mxu0 %v2459
    %3958 = vmatprep.subr.mxu0 0.0
    %3959 = vmatpush1.msra.mxu0 %v2460
    %3960 = vmatprep.subr.mxu0 0.0
    %3961 = vmatpush1.msra.mxu0 0.0
    %3962 = vmatprep.subr.mxu0 0.0
    %3963 = vmatpush1.msra.mxu0 0.0
    %3964 = vmatprep.subr.mxu0 0.0
    %3965 = vmatpush1.msra.mxu0 0.0
    %3966 = vmatprep.subr.mxu0 0.0
    %3967 = vmatpush1.msra.mxu0 0.0
    %3968 = vmatprep.subr.mxu0 0.0
    %3969 = vmatpush1.msra.mxu0 0.0
    %3970 = vmatprep.subr.mxu0 0.0
    %3971 = vmatpush1.msra.mxu0 0.0
    %3972 = vmatprep.subr.mxu0 0.0
    %3973 = vmatpush1.msra.mxu0 0.0
    %3974 = vmatprep.subr.mxu0 0.0
    %3975 = vmatpush1.msra.mxu0 0.0
    %3976 = vmatprep.subr.mxu0 0.0
    %3977 = vmatpush1.msra.mxu0 0.0
    %3978 = vmatprep.subr.mxu0 0.0
    %3979 = vmatpush1.msra.mxu0 0.0
    %3980 = vmatprep.subr.mxu0 0.0
    %3981 = vmatpush1.msra.mxu0 0.0
    %3982 = vmatprep.subr.mxu0 0.0
    %3983 = vmatpush1.msra.mxu0 0.0
    %3984 = vmatprep.subr.mxu0 0.0
    %3985 = vmatpush1.msra.mxu0 0.0
    %3986 = vmatprep.subr.mxu0 0.0
    %3987 = vmatpush1.msra.mxu0 0.0
    %3988 = vmatprep.subr.mxu0 0.0
    %3989 = vmatpush1.msra.mxu0 0.0
    %3990 = vmatprep.subr.mxu0 0.0
    %3991 = vmatpush1.msra.mxu0 0.0
    %3992 = vmatprep.subr.mxu0 0.0
    %3993 = vmatpush1.msra.mxu0 0.0
    %3994 = vmatprep.subr.mxu0 0.0
    %3995 = vmatpush1.msra.mxu0 0.0
    %3996 = vmatprep.subr.mxu0 0.0
    %3997 = vmatpush1.msra.mxu0 0.0
    %3998 = vmatprep.subr.mxu0 0.0
    %3999 = vmatpush1.msra.mxu0 0.0
    %4000 = vmatprep.subr.mxu0 0.0
    %4001 = vmatpush1.msra.mxu0 0.0
    %4002 = vmatprep.subr.mxu0 0.0
    %4003 = vmatpush1.msra.mxu0 0.0
    %4004 = vmatprep.subr.mxu0 0.0
    %4005 = vmatpush1.msra.mxu0 0.0
    %4006 = vmatprep.subr.mxu0 0.0
    %4007 = vmatpush1.msra.mxu0 0.0
    %4008 = vmatprep.subr.mxu0 0.0
    %4009 = vmatpush1.msra.mxu0 0.0
    %4010 = vmatprep.subr.mxu0 0.0
    %4011 = vmatpush1.msra.mxu0 0.0
    %4012 = vmatprep.subr.mxu0 0.0
    %4013 = vmatpush1.msra.mxu0 0.0
    %4014 = vmatprep.subr.mxu0 0.0
    %4015 = vmatpush1.msra.mxu0 0.0
    %4016 = vmatprep.subr.mxu0 0.0
    %4017 = vmatpush1.msra.mxu0 0.0
    %4018 = vmatprep.subr.mxu0 0.0
    %4019 = vmatpush1.msra.mxu0 0.0
    %4020 = vmatprep.mubr.f32.mxu0 0.0
    %4021 = vmatmul.mubr.f32.gmra.mrb[0].mxu0 %v3954
    %v4022 = vpop.f32.mrb[0].mxu0
    %v4023 = vadd.f32 %v3950, %v4022
    %v4024 = vpop.f32.mrb[0].mxu0
    %4025 = vdwg.mxu0
    %4026 = vrot.lane.b32.xlu0 %v2599, 96
    %v4027 = vpop.permute.xlu0 %4026
    %4028 = vrot.lane.b32.xlu0 %v2594, 32
    %v4029 = vpop.permute.xlu0 %4028
    %v4030 = vsel %vm59, %v4027, 0
    %v4032 = vsel %vm59, %v4029, 0
    %4034 = vmatprep.subr.mxu0 0.0
    %4035 = vmatpush1.xpose.msra.mxu0 %v4032
    %4036 = vmatprep.subr.mxu0 0.0
    %4037 = vmatpush1.xpose.msra.mxu0 0.0
    %4038 = vmatprep.subr.mxu0 0.0
    %4039 = vmatpush1.xpose.msra.mxu0 0.0
    %4040 = vmatprep.subr.mxu0 0.0
    %4041 = vmatpush1.xpose.msra.mxu0 0.0
    %4042 = vmatprep.subr.mxu0 0.0
    %4043 = vmatpush1.xpose.msra.mxu0 0.0
    %4044 = vmatprep.subr.mxu0 0.0
    %4045 = vmatpush1.xpose.msra.mxu0 0.0
    %4046 = vmatprep.subr.mxu0 0.0
    %4047 = vmatpush1.xpose.msra.mxu0 0.0
    %4048 = vmatprep.subr.mxu0 0.0
    %4049 = vmatpush1.xpose.msra.mxu0 0.0
    %4050 = vmatprep.subr.mxu0 0.0
    %4051 = vmatpush1.xpose.msra.mxu0 0.0
    %4052 = vmatprep.subr.mxu0 0.0
    %4053 = vmatpush1.xpose.msra.mxu0 0.0
    %4054 = vmatprep.subr.mxu0 0.0
    %4055 = vmatpush1.xpose.msra.mxu0 0.0
    %4056 = vmatprep.subr.mxu0 0.0
    %4057 = vmatpush1.xpose.msra.mxu0 0.0
    %4058 = vmatprep.subr.mxu0 0.0
    %4059 = vmatpush1.xpose.msra.mxu0 0.0
    %4060 = vmatprep.subr.mxu0 0.0
    %4061 = vmatpush1.xpose.msra.mxu0 0.0
    %4062 = vmatprep.subr.mxu0 0.0
    %4063 = vmatpush1.xpose.msra.mxu0 0.0
    %4064 = vmatprep.subr.mxu0 0.0
    %4065 = vmatpush1.xpose.msra.mxu0 0.0
    %4066 = vmatprep.subr.mxu0 0.0
    %4067 = vmatpush1.xpose.msra.mxu0 0.0
    %4068 = vmatprep.subr.mxu0 0.0
    %4069 = vmatpush1.xpose.msra.mxu0 0.0
    %4070 = vmatprep.subr.mxu0 0.0
    %4071 = vmatpush1.xpose.msra.mxu0 0.0
    %4072 = vmatprep.subr.mxu0 0.0
    %4073 = vmatpush1.xpose.msra.mxu0 0.0
    %4074 = vmatprep.subr.mxu0 0.0
    %4075 = vmatpush1.xpose.msra.mxu0 0.0
    %4076 = vmatprep.subr.mxu0 0.0
    %4077 = vmatpush1.xpose.msra.mxu0 0.0
    %4078 = vmatprep.subr.mxu0 0.0
    %4079 = vmatpush1.xpose.msra.mxu0 0.0
    %4080 = vmatprep.subr.mxu0 0.0
    %4081 = vmatpush1.xpose.msra.mxu0 0.0
    %4082 = vmatprep.subr.mxu0 0.0
    %4083 = vmatpush1.xpose.msra.mxu0 0.0
    %4084 = vmatprep.subr.mxu0 0.0
    %4085 = vmatpush1.xpose.msra.mxu0 0.0
    %4086 = vmatprep.subr.mxu0 0.0
    %4087 = vmatpush1.xpose.msra.mxu0 0.0
    %4088 = vmatprep.subr.mxu0 0.0
    %4089 = vmatpush1.xpose.msra.mxu0 0.0
    %4090 = vmatprep.subr.mxu0 0.0
    %4091 = vmatpush1.xpose.msra.mxu0 0.0
    %4092 = vmatprep.subr.mxu0 0.0
    %4093 = vmatpush1.xpose.msra.mxu0 0.0
    %4094 = vmatprep.subr.mxu0 0.0
    %4095 = vmatpush1.xpose.msra.mxu0 0.0
    %4096 = vmatprep.subr.mxu0 0.0
    %4097 = vmatpush1.xpose.msra.mxu0 0.0
    %4098 = vmatprep.mubr.f32.mxu0 0.0
    %4099 = vmatmul.mubr.f32.gmra.mrb[0].mxu0 %v4030
    %v4100 = vpop.f32.mrb[0].mxu0
    %v4101 = vadd.f32 %v146, %v4100
    %v4102 = vpop.f32.mrb[0].mxu0
    %4103 = vdwg.mxu0
    %v4104 = vsel %vm365, %v4101, -inf
    %4105 = vmax.xlane.f32.xlu0 %v4104
    %v4106 = vpop.xlane.xlu0 %4105
    %v4107 = vsub.f32 %v4101, %v4106
    %v4108 = vmul.f32 %v4107, 1.442695
    %v4109 = vpow.pop %v4108
    %v4110 = vsel %vm365, %v4109, 0.0
    %4111 = vadd.xlane.f32.xlu0 %v4110
    %v4112 = vpop.xlane.xlu0 %4111
    %v4113 = vrcp.pop %v4112
    %v4114 = vmul.f32 %v4109, %v4113
    %4115 = vrot.lane.b32.xlu0 %v2596, 96
    %v4116 = vpop.permute.xlu0 %4115
    %v4119 = vsel %vm365, %v4114, 0
    %4121 = vmatprep.subr.mxu0 0.0
    %4122 = vmatpush1.msra.mxu0 %v4116
    %4123 = vmatprep.subr.mxu0 0.0
    %4124 = vmatpush1.msra.mxu0 0.0
    %4125 = vmatprep.subr.mxu0 0.0
    %4126 = vmatpush1.msra.mxu0 0.0
    %4127 = vmatprep.subr.mxu0 0.0
    %4128 = vmatpush1.msra.mxu0 0.0
    %4129 = vmatprep.subr.mxu0 0.0
    %4130 = vmatpush1.msra.mxu0 0.0
    %4131 = vmatprep.subr.mxu0 0.0
    %4132 = vmatpush1.msra.mxu0 0.0
    %4133 = vmatprep.subr.mxu0 0.0
    %4134 = vmatpush1.msra.mxu0 0.0
    %4135 = vmatprep.subr.mxu0 0.0
    %4136 = vmatpush1.msra.mxu0 0.0
    %4137 = vmatprep.subr.mxu0 0.0
    %4138 = vmatpush1.msra.mxu0 0.0
    %4139 = vmatprep.subr.mxu0 0.0
    %4140 = vmatpush1.msra.mxu0 0.0
    %4141 = vmatprep.subr.mxu0 0.0
    %4142 = vmatpush1.msra.mxu0 0.0
    %4143 = vmatprep.subr.mxu0 0.0
    %4144 = vmatpush1.msra.mxu0 0.0
    %4145 = vmatprep.subr.mxu0 0.0
    %4146 = vmatpush1.msra.mxu0 0.0
    %4147 = vmatprep.subr.mxu0 0.0
    %4148 = vmatpush1.msra.mxu0 0.0
    %4149 = vmatprep.subr.mxu0 0.0
    %4150 = vmatpush1.msra.mxu0 0.0
    %4151 = vmatprep.subr.mxu0 0.0
    %4152 = vmatpush1.msra.mxu0 0.0
    %4153 = vmatprep.subr.mxu0 0.0
    %4154 = vmatpush1.msra.mxu0 0.0
    %4155 = vmatprep.subr.mxu0 0.0
    %4156 = vmatpush1.msra.mxu0 0.0
    %4157 = vmatprep.subr.mxu0 0.0
    %4158 = vmatpush1.msra.mxu0 0.0
    %4159 = vmatprep.subr.mxu0 0.0
    %4160 = vmatpush1.msra.mxu0 0.0
    %4161 = vmatprep.subr.mxu0 0.0
    %4162 = vmatpush1.msra.mxu0 0.0
    %4163 = vmatprep.subr.mxu0 0.0
    %4164 = vmatpush1.msra.mxu0 0.0
    %4165 = vmatprep.subr.mxu0 0.0
    %4166 = vmatpush1.msra.mxu0 0.0
    %4167 = vmatprep.subr.mxu0 0.0
    %4168 = vmatpush1.msra.mxu0 0.0
    %4169 = vmatprep.subr.mxu0 0.0
    %4170 = vmatpush1.msra.mxu0 0.0
    %4171 = vmatprep.subr.mxu0 0.0
    %4172 = vmatpush1.msra.mxu0 0.0
    %4173 = vmatprep.subr.mxu0 0.0
    %4174 = vmatpush1.msra.mxu0 0.0
    %4175 = vmatprep.subr.mxu0 0.0
    %4176 = vmatpush1.msra.mxu0 0.0
    %4177 = vmatprep.subr.mxu0 0.0
    %4178 = vmatpush1.msra.mxu0 0.0
    %4179 = vmatprep.subr.mxu0 0.0
    %4180 = vmatpush1.msra.mxu0 0.0
    %4181 = vmatprep.subr.mxu0 0.0
    %4182 = vmatpush1.msra.mxu0 0.0
    %4183 = vmatprep.subr.mxu0 0.0
    %4184 = vmatpush1.msra.mxu0 0.0
    %4185 = vmatprep.mubr.f32.mxu0 0.0
    %4186 = vmatmul.mubr.f32.gmra.mrb[0].mxu0 %v4119
    %v4187 = vpop.f32.mrb[0].mxu0
    %v4188 = vadd.f32 0.0, %v4187
    %v4189 = vpop.f32.mrb[0].mxu0
    %4190 = vdwg.mxu0
    %v4192 = vsel %vm59, %v4188, 0
    %4194 = vmatprep.subr.mxu0 0.0
    %4195 = vmatpush1.msra.mxu0 %v2463
    %4196 = vmatprep.subr.mxu0 0.0
    %4197 = vmatpush1.msra.mxu0 %v2464
    %4198 = vmatprep.subr.mxu0 0.0
    %4199 = vmatpush1.msra.mxu0 0.0
    %4200 = vmatprep.subr.mxu0 0.0
    %4201 = vmatpush1.msra.mxu0 0.0
    %4202 = vmatprep.subr.mxu0 0.0
    %4203 = vmatpush1.msra.mxu0 0.0
    %4204 = vmatprep.subr.mxu0 0.0
    %4205 = vmatpush1.msra.mxu0 0.0
    %4206 = vmatprep.subr.mxu0 0.0
    %4207 = vmatpush1.msra.mxu0 0.0
    %4208 = vmatprep.subr.mxu0 0.0
    %4209 = vmatpush1.msra.mxu0 0.0
    %4210 = vmatprep.subr.mxu0 0.0
    %4211 = vmatpush1.msra.mxu0 0.0
    %4212 = vmatprep.subr.mxu0 0.0
    %4213 = vmatpush1.msra.mxu0 0.0
    %4214 = vmatprep.subr.mxu0 0.0
    %4215 = vmatpush1.msra.mxu0 0.0
    %4216 = vmatprep.subr.mxu0 0.0
    %4217 = vmatpush1.msra.mxu0 0.0
    %4218 = vmatprep.subr.mxu0 0.0
    %4219 = vmatpush1.msra.mxu0 0.0
    %4220 = vmatprep.subr.mxu0 0.0
    %4221 = vmatpush1.msra.mxu0 0.0
    %4222 = vmatprep.subr.mxu0 0.0
    %4223 = vmatpush1.msra.mxu0 0.0
    %4224 = vmatprep.subr.mxu0 0.0
    %4225 = vmatpush1.msra.mxu0 0.0
    %4226 = vmatprep.subr.mxu0 0.0
    %4227 = vmatpush1.msra.mxu0 0.0
    %4228 = vmatprep.subr.mxu0 0.0
    %4229 = vmatpush1.msra.mxu0 0.0
    %4230 = vmatprep.subr.mxu0 0.0
    %4231 = vmatpush1.msra.mxu0 0.0
    %4232 = vmatprep.subr.mxu0 0.0
    %4233 = vmatpush1.msra.mxu0 0.0
    %4234 = vmatprep.subr.mxu0 0.0
    %4235 = vmatpush1.msra.mxu0 0.0
    %4236 = vmatprep.subr.mxu0 0.0
    %4237 = vmatpush1.msra.mxu0 0.0
    %4238 = vmatprep.subr.mxu0 0.0
    %4239 = vmatpush1.msra.mxu0 0.0
    %4240 = vmatprep.subr.mxu0 0.0
    %4241 = vmatpush1.msra.mxu0 0.0
    %4242 = vmatprep.subr.mxu0 0.0
    %4243 = vmatpush1.msra.mxu0 0.0
    %4244 = vmatprep.subr.mxu0 0.0
    %4245 = vmatpush1.msra.mxu0 0.0
    %4246 = vmatprep.subr.mxu0 0.0
    %4247 = vmatpush1.msra.mxu0 0.0
    %4248 = vmatprep.subr.mxu0 0.0
    %4249 = vmatpush1.msra.mxu0 0.0
    %4250 = vmatprep.subr.mxu0 0.0
    %4251 = vmatpush1.msra.mxu0 0.0
    %4252 = vmatprep.subr.mxu0 0.0
    %4253 = vmatpush1.msra.mxu0 0.0
    %4254 = vmatprep.subr.mxu0 0.0
    %4255 = vmatpush1.msra.mxu0 0.0
    %4256 = vmatprep.subr.mxu0 0.0
    %4257 = vmatpush1.msra.mxu0 0.0
    %4258 = vmatprep.mubr.f32.mxu0 0.0
    %4259 = vmatmul.mubr.f32.gmra.mrb[0].mxu0 %v4192
    %v4260 = vpop.f32.mrb[0].mxu0
    %v4261 = vadd.f32 0.0, %v4260
    %v4262 = vpop.f32.mrb[0].mxu0
    %4263 = vdwg.mxu0
    %v4264 = vadd.f32 %v4023, %v4261
    %4265 = vrot.lane.b32.xlu0 %v2599, 80
    %v4266 = vpop.permute.xlu0 %4265
    %4267 = vrot.lane.b32.xlu0 %v2594, 16
    %v4268 = vpop.permute.xlu0 %4267
    %v4269 = vsel %vm59, %v4266, 0
    %v4271 = vsel %vm59, %v4268, 0
    %4273 = vmatprep.subr.mxu0 0.0
    %4274 = vmatpush1.xpose.msra.mxu0 %v4271
    %4275 = vmatprep.subr.mxu0 0.0
    %4276 = vmatpush1.xpose.msra.mxu0 0.0
    %4277 = vmatprep.subr.mxu0 0.0
    %4278 = vmatpush1.xpose.msra.mxu0 0.0
    %4279 = vmatprep.subr.mxu0 0.0
    %4280 = vmatpush1.xpose.msra.mxu0 0.0
    %4281 = vmatprep.subr.mxu0 0.0
    %4282 = vmatpush1.xpose.msra.mxu0 0.0
    %4283 = vmatprep.subr.mxu0 0.0
    %4284 = vmatpush1.xpose.msra.mxu0 0.0
    %4285 = vmatprep.subr.mxu0 0.0
    %4286 = vmatpush1.xpose.msra.mxu0 0.0
    %4287 = vmatprep.subr.mxu0 0.0
    %4288 = vmatpush1.xpose.msra.mxu0 0.0
    %4289 = vmatprep.subr.mxu0 0.0
    %4290 = vmatpush1.xpose.msra.mxu0 0.0
    %4291 = vmatprep.subr.mxu0 0.0
    %4292 = vmatpush1.xpose.msra.mxu0 0.0
    %4293 = vmatprep.subr.mxu0 0.0
    %4294 = vmatpush1.xpose.msra.mxu0 0.0
    %4295 = vmatprep.subr.mxu0 0.0
    %4296 = vmatpush1.xpose.msra.mxu0 0.0
    %4297 = vmatprep.subr.mxu0 0.0
    %4298 = vmatpush1.xpose.msra.mxu0 0.0
    %4299 = vmatprep.subr.mxu0 0.0
    %4300 = vmatpush1.xpose.msra.mxu0 0.0
    %4301 = vmatprep.subr.mxu0 0.0
    %4302 = vmatpush1.xpose.msra.mxu0 0.0
    %4303 = vmatprep.subr.mxu0 0.0
    %4304 = vmatpush1.xpose.msra.mxu0 0.0
    %4305 = vmatprep.subr.mxu0 0.0
    %4306 = vmatpush1.xpose.msra.mxu0 0.0
    %4307 = vmatprep.subr.mxu0 0.0
    %4308 = vmatpush1.xpose.msra.mxu0 0.0
    %4309 = vmatprep.subr.mxu0 0.0
    %4310 = vmatpush1.xpose.msra.mxu0 0.0
    %4311 = vmatprep.subr.mxu0 0.0
    %4312 = vmatpush1.xpose.msra.mxu0 0.0
    %4313 = vmatprep.subr.mxu0 0.0
    %4314 = vmatpush1.xpose.msra.mxu0 0.0
    %4315 = vmatprep.subr.mxu0 0.0
    %4316 = vmatpush1.xpose.msra.mxu0 0.0
    %4317 = vmatprep.subr.mxu0 0.0
    %4318 = vmatpush1.xpose.msra.mxu0 0.0
    %4319 = vmatprep.subr.mxu0 0.0
    %4320 = vmatpush1.xpose.msra.mxu0 0.0
    %4321 = vmatprep.subr.mxu0 0.0
    %4322 = vmatpush1.xpose.msra.mxu0 0.0
    %4323 = vmatprep.subr.mxu0 0.0
    %4324 = vmatpush1.xpose.msra.mxu0 0.0
    %4325 = vmatprep.subr.mxu0 0.0
    %4326 = vmatpush1.xpose.msra.mxu0 0.0
    %4327 = vmatprep.subr.mxu0 0.0
    %4328 = vmatpush1.xpose.msra.mxu0 0.0
    %4329 = vmatprep.subr.mxu0 0.0
    %4330 = vmatpush1.xpose.msra.mxu0 0.0
    %4331 = vmatprep.subr.mxu0 0.0
    %4332 = vmatpush1.xpose.msra.mxu0 0.0
    %4333 = vmatprep.subr.mxu0 0.0
    %4334 = vmatpush1.xpose.msra.mxu0 0.0
    %4335 = vmatprep.subr.mxu0 0.0
    %4336 = vmatpush1.xpose.msra.mxu0 0.0
    %4337 = vmatprep.mubr.f32.mxu0 0.0
    %4338 = vmatmul.mubr.f32.gmra.mrb[0].mxu0 %v4269
    %v4339 = vpop.f32.mrb[0].mxu0
    %v4340 = vadd.f32 %v146, %v4339
    %v4341 = vpop.f32.mrb[0].mxu0
    %4342 = vdwg.mxu0
    %v4343 = vsel %vm365, %v4340, -inf
    %4344 = vmax.xlane.f32.xlu0 %v4343
    %v4345 = vpop.xlane.xlu0 %4344
    %v4346 = vsub.f32 %v4340, %v4345
    %v4347 = vmul.f32 %v4346, 1.442695
    %v4348 = vpow.pop %v4347
    %v4349 = vsel %vm365, %v4348, 0.0
    %4350 = vadd.xlane.f32.xlu0 %v4349
    %v4351 = vpop.xlane.xlu0 %4350
    %v4352 = vrcp.pop %v4351
    %v4353 = vmul.f32 %v4348, %v4352
    %4354 = vrot.lane.b32.xlu0 %v2596, 80
    %v4355 = vpop.permute.xlu0 %4354
    %v4358 = vsel %vm365, %v4353, 0
    %4360 = vmatprep.subr.mxu0 0.0
    %4361 = vmatpush1.msra.mxu0 %v4355
    %4362 = vmatprep.subr.mxu0 0.0
    %4363 = vmatpush1.msra.mxu0 0.0
    %4364 = vmatprep.subr.mxu0 0.0
    %4365 = vmatpush1.msra.mxu0 0.0
    %4366 = vmatprep.subr.mxu0 0.0
    %4367 = vmatpush1.msra.mxu0 0.0
    %4368 = vmatprep.subr.mxu0 0.0
    %4369 = vmatpush1.msra.mxu0 0.0
    %4370 = vmatprep.subr.mxu0 0.0
    %4371 = vmatpush1.msra.mxu0 0.0
    %4372 = vmatprep.subr.mxu0 0.0
    %4373 = vmatpush1.msra.mxu0 0.0
    %4374 = vmatprep.subr.mxu0 0.0
    %4375 = vmatpush1.msra.mxu0 0.0
    %4376 = vmatprep.subr.mxu0 0.0
    %4377 = vmatpush1.msra.mxu0 0.0
    %4378 = vmatprep.subr.mxu0 0.0
    %4379 = vmatpush1.msra.mxu0 0.0
    %4380 = vmatprep.subr.mxu0 0.0
    %4381 = vmatpush1.msra.mxu0 0.0
    %4382 = vmatprep.subr.mxu0 0.0
    %4383 = vmatpush1.msra.mxu0 0.0
    %4384 = vmatprep.subr.mxu0 0.0
    %4385 = vmatpush1.msra.mxu0 0.0
    %4386 = vmatprep.subr.mxu0 0.0
    %4387 = vmatpush1.msra.mxu0 0.0
    %4388 = vmatprep.subr.mxu0 0.0
    %4389 = vmatpush1.msra.mxu0 0.0
    %4390 = vmatprep.subr.mxu0 0.0
    %4391 = vmatpush1.msra.mxu0 0.0
    %4392 = vmatprep.subr.mxu0 0.0
    %4393 = vmatpush1.msra.mxu0 0.0
    %4394 = vmatprep.subr.mxu0 0.0
    %4395 = vmatpush1.msra.mxu0 0.0
    %4396 = vmatprep.subr.mxu0 0.0
    %4397 = vmatpush1.msra.mxu0 0.0
    %4398 = vmatprep.subr.mxu0 0.0
    %4399 = vmatpush1.msra.mxu0 0.0
    %4400 = vmatprep.subr.mxu0 0.0
    %4401 = vmatpush1.msra.mxu0 0.0
    %4402 = vmatprep.subr.mxu0 0.0
    %4403 = vmatpush1.msra.mxu0 0.0
    %4404 = vmatprep.subr.mxu0 0.0
    %4405 = vmatpush1.msra.mxu0 0.0
    %4406 = vmatprep.subr.mxu0 0.0
    %4407 = vmatpush1.msra.mxu0 0.0
    %4408 = vmatprep.subr.mxu0 0.0
    %4409 = vmatpush1.msra.mxu0 0.0
    %4410 = vmatprep.subr.mxu0 0.0
    %4411 = vmatpush1.msra.mxu0 0.0
    %4412 = vmatprep.subr.mxu0 0.0
    %4413 = vmatpush1.msra.mxu0 0.0
    %4414 = vmatprep.subr.mxu0 0.0
    %4415 = vmatpush1.msra.mxu0 0.0
    %4416 = vmatprep.subr.mxu0 0.0
    %4417 = vmatpush1.msra.mxu0 0.0
    %4418 = vmatprep.subr.mxu0 0.0
    %4419 = vmatpush1.msra.mxu0 0.0
    %4420 = vmatprep.subr.mxu0 0.0
    %4421 = vmatpush1.msra.mxu0 0.0
    %4422 = vmatprep.subr.mxu0 0.0
    %4423 = vmatpush1.msra.mxu0 0.0
    %4424 = vmatprep.mubr.f32.mxu0 0.0
    %4425 = vmatmul.mubr.f32.gmra.mrb[0].mxu0 %v4358
    %v4426 = vpop.f32.mrb[0].mxu0
    %v4427 = vadd.f32 0.0, %v4426
    %v4428 = vpop.f32.mrb[0].mxu0
    %4429 = vdwg.mxu0
    %v4431 = vsel %vm59, %v4427, 0
    %4433 = vmatprep.subr.mxu0 0.0
    %4434 = vmatpush1.msra.mxu0 %v2465
    %4435 = vmatprep.subr.mxu0 0.0
    %4436 = vmatpush1.msra.mxu0 %v2466
    %4437 = vmatprep.subr.mxu0 0.0
    %4438 = vmatpush1.msra.mxu0 0.0
    %4439 = vmatprep.subr.mxu0 0.0
    %4440 = vmatpush1.msra.mxu0 0.0
    %4441 = vmatprep.subr.mxu0 0.0
    %4442 = vmatpush1.msra.mxu0 0.0
    %4443 = vmatprep.subr.mxu0 0.0
    %4444 = vmatpush1.msra.mxu0 0.0
    %4445 = vmatprep.subr.mxu0 0.0
    %4446 = vmatpush1.msra.mxu0 0.0
    %4447 = vmatprep.subr.mxu0 0.0
    %4448 = vmatpush1.msra.mxu0 0.0
    %4449 = vmatprep.subr.mxu0 0.0
    %4450 = vmatpush1.msra.mxu0 0.0
    %4451 = vmatprep.subr.mxu0 0.0
    %4452 = vmatpush1.msra.mxu0 0.0
    %4453 = vmatprep.subr.mxu0 0.0
    %4454 = vmatpush1.msra.mxu0 0.0
    %4455 = vmatprep.subr.mxu0 0.0
    %4456 = vmatpush1.msra.mxu0 0.0
    %4457 = vmatprep.subr.mxu0 0.0
    %4458 = vmatpush1.msra.mxu0 0.0
    %4459 = vmatprep.subr.mxu0 0.0
    %4460 = vmatpush1.msra.mxu0 0.0
    %4461 = vmatprep.subr.mxu0 0.0
    %4462 = vmatpush1.msra.mxu0 0.0
    %4463 = vmatprep.subr.mxu0 0.0
    %4464 = vmatpush1.msra.mxu0 0.0
    %4465 = vmatprep.subr.mxu0 0.0
    %4466 = vmatpush1.msra.mxu0 0.0
    %4467 = vmatprep.subr.mxu0 0.0
    %4468 = vmatpush1.msra.mxu0 0.0
    %4469 = vmatprep.subr.mxu0 0.0
    %4470 = vmatpush1.msra.mxu0 0.0
    %4471 = vmatprep.subr.mxu0 0.0
    %4472 = vmatpush1.msra.mxu0 0.0
    %4473 = vmatprep.subr.mxu0 0.0
    %4474 = vmatpush1.msra.mxu0 0.0
    %4475 = vmatprep.subr.mxu0 0.0
    %4476 = vmatpush1.msra.mxu0 0.0
    %4477 = vmatprep.subr.mxu0 0.0
    %4478 = vmatpush1.msra.mxu0 0.0
    %4479 = vmatprep.subr.mxu0 0.0
    %4480 = vmatpush1.msra.mxu0 0.0
    %4481 = vmatprep.subr.mxu0 0.0
    %4482 = vmatpush1.msra.mxu0 0.0
    %4483 = vmatprep.subr.mxu0 0.0
    %4484 = vmatpush1.msra.mxu0 0.0
    %4485 = vmatprep.subr.mxu0 0.0
    %4486 = vmatpush1.msra.mxu0 0.0
    %4487 = vmatprep.subr.mxu0 0.0
    %4488 = vmatpush1.msra.mxu0 0.0
    %4489 = vmatprep.subr.mxu0 0.0
    %4490 = vmatpush1.msra.mxu0 0.0
    %4491 = vmatprep.subr.mxu0 0.0
    %4492 = vmatpush1.msra.mxu0 0.0
    %4493 = vmatprep.subr.mxu0 0.0
    %4494 = vmatpush1.msra.mxu0 0.0
    %4495 = vmatprep.subr.mxu0 0.0
    %4496 = vmatpush1.msra.mxu0 0.0
    %4497 = vmatprep.mubr.f32.mxu0 0.0
    %4498 = vmatmul.mubr.f32.gmra.mrb[0].mxu0 %v4431
    %v4499 = vpop.f32.mrb[0].mxu0
    %v4500 = vadd.f32 0.0, %v4499
    %v4501 = vpop.f32.mrb[0].mxu0
    %4502 = vdwg.mxu0
    %v4503 = vadd.f32 %v4264, %v4500
    %v4504 = vld [vmem:[%s6 + $0xf] sm:$0x1]
    %v4505 = vlaneseq
    %v4506 = vshrl.u32 %v4505, 7
    %v4507 = vsub.s32 0, %v4506
    %v4508 = vrot.slane %v4504, %v4507
    %v4509 = vadd.f32 %v3551, %v4508
    %v4510 = vadd.f32 %v4503, %v4508
    %v4511 = vadd.f32 %v2456, %v4509
    %v4512 = vadd.f32 %v2457, %v4510
    %v4513 = vld [vmem:[%s6 + $0x10] sm:$0x1]
    %v4514 = vld [vmem:[%s6 + $0x11] sm:$0x1]
    %v4515 = vsel %vm201, %v4511, 0.0
    %4516 = vadd.xlane.f32.xlu0 %v4515
    %v4517 = vpop.xlane.xlu0 %4516
    %v4518 = vsel %vm201, %v4512, 0.0
    %4519 = vadd.xlane.f32.xlu0 %v4518
    %v4520 = vpop.xlane.xlu0 %4519
    %v4521 = vmul.f32 %v4517, %v2209
    %v4522 = vmul.f32 %v4520, %v2209
    %v4523 = vsub.f32 %v4511, %v4521
    %v4524 = vsub.f32 %v4512, %v4522
    %v4525 = vmul.f32 %v4523, %v4523
    %v4526 = vmul.f32 %v4524, %v4524
    %v4527 = vsel %vm201, %v4525, 0.0
    %4528 = vadd.xlane.f32.xlu0 %v4527
    %v4529 = vpop.xlane.xlu0 %4528
    %v4530 = vsel %vm201, %v4526, 0.0
    %4531 = vadd.xlane.f32.xlu0 %v4530
    %v4532 = vpop.xlane.xlu0 %4531
    %v4533 = vmul.f32 %v4529, %v2209
    %v4534 = vmul.f32 %v4532, %v2209
    %v4535 = vadd.f32 %v4533, 1e-05
    %v4536 = vadd.f32 %v4534, 1e-05
    %v4537 = vrsqrt.pop %v4535
    %v4538 = vrsqrt.pop %v4536
    %v4539 = vmul.f32 %v4523, %v4537
    %v4540 = vmul.f32 %v4524, %v4538
    %v4541 = vlaneseq
    %v4542 = vshrl.u32 %v4541, 7
    %v4543 = vsub.s32 0, %v4542
    %v4544 = vrot.slane %v4513, %v4543
    %v4545 = vmul.f32 %v4539, %v4544
    %v4546 = vmul.f32 %v4540, %v4544
    %v4547 = vlaneseq
    %v4548 = vshrl.u32 %v4547, 7
    %v4549 = vsub.s32 0, %v4548
    %v4550 = vrot.slane %v4514, %v4549
    %v4551 = vadd.f32 %v4545, %v4550
    %v4552 = vadd.f32 %v4546, %v4550
    %v4553 = vld [vmem:[%s6 + $0x14] sm:$0x1]
    %v4554 = vlaneseq
    %v4555 = vshrl.u32 %v4554, 7
    %v4556 = vsub.s32 0, %v4555
    %v4557 = vrot.slane %v4553, %v4556
    %v4559 = vsel %vm201, %v4551, 0
    %v4562 = vsel %vm201, %v4552, 0
    %4564 = vmatprep.subr.mxu0 0.0
    %4565 = vmatpush1.msra.mxu0 %v2468
    %4566 = vmatprep.subr.mxu0 0.0
    %4567 = vmatpush1.msra.mxu0 %v2469
    %4568 = vmatprep.subr.mxu0 0.0
    %4569 = vmatpush1.msra.mxu0 %v2470
    %4570 = vmatprep.subr.mxu0 0.0
    %4571 = vmatpush1.msra.mxu0 %v2471
    %4572 = vmatprep.subr.mxu0 0.0
    %4573 = vmatpush1.msra.mxu0 %v2472
    %4574 = vmatprep.subr.mxu0 0.0
    %4575 = vmatpush1.msra.mxu0 %v2473
    %4576 = vmatprep.subr.mxu0 0.0
    %4577 = vmatpush1.msra.mxu0 %v2474
    %4578 = vmatprep.subr.mxu0 0.0
    %4579 = vmatpush1.msra.mxu0 %v2475
    %4580 = vmatprep.subr.mxu0 0.0
    %4581 = vmatpush1.msra.mxu0 0.0
    %4582 = vmatprep.subr.mxu0 0.0
    %4583 = vmatpush1.msra.mxu0 0.0
    %4584 = vmatprep.subr.mxu0 0.0
    %4585 = vmatpush1.msra.mxu0 0.0
    %4586 = vmatprep.subr.mxu0 0.0
    %4587 = vmatpush1.msra.mxu0 0.0
    %4588 = vmatprep.subr.mxu0 0.0
    %4589 = vmatpush1.msra.mxu0 0.0
    %4590 = vmatprep.subr.mxu0 0.0
    %4591 = vmatpush1.msra.mxu0 0.0
    %4592 = vmatprep.subr.mxu0 0.0
    %4593 = vmatpush1.msra.mxu0 0.0
    %4594 = vmatprep.subr.mxu0 0.0
    %4595 = vmatpush1.msra.mxu0 0.0
    %4596 = vmatprep.subr.mxu0 0.0
    %4597 = vmatpush1.msra.mxu0 0.0
    %4598 = vmatprep.subr.mxu0 0.0
    %4599 = vmatpush1.msra.mxu0 0.0
    %4600 = vmatprep.subr.mxu0 0.0
    %4601 = vmatpush1.msra.mxu0 0.0
    %4602 = vmatprep.subr.mxu0 0.0
    %4603 = vmatpush1.msra.mxu0 0.0
    %4604 = vmatprep.subr.mxu0 0.0
    %4605 = vmatpush1.msra.mxu0 0.0
    %4606 = vmatprep.subr.mxu0 0.0
    %4607 = vmatpush1.msra.mxu0 0.0
    %4608 = vmatprep.subr.mxu0 0.0
    %4609 = vmatpush1.msra.mxu0 0.0
    %4610 = vmatprep.subr.mxu0 0.0
    %4611 = vmatpush1.msra.mxu0 0.0
    %4612 = vmatprep.subr.mxu0 0.0
    %4613 = vmatpush1.msra.mxu0 0.0
    %4614 = vmatprep.subr.mxu0 0.0
    %4615 = vmatpush1.msra.mxu0 0.0
    %4616 = vmatprep.subr.mxu0 0.0
    %4617 = vmatpush1.msra.mxu0 0.0
    %4618 = vmatprep.subr.mxu0 0.0
    %4619 = vmatpush1.msra.mxu0 0.0
    %4620 = vmatprep.subr.mxu0 0.0
    %4621 = vmatpush1.msra.mxu0 0.0
    %4622 = vmatprep.subr.mxu0 0.0
    %4623 = vmatpush1.msra.mxu0 0.0
    %4624 = vmatprep.subr.mxu0 0.0
    %4625 = vmatpush1.msra.mxu0 0.0
    %4626 = vmatprep.subr.mxu0 0.0
    %4627 = vmatpush1.msra.mxu0 0.0
    %4628 = vmatprep.mubr.f32.mxu0 0.0
    %4629 = vmatmul.mubr.f32.gmra.mrb[0].mxu0 %v4559
    %v4630 = vpop.f32.mrb[0].mxu0
    %v4631 = vadd.f32 %v4557, %v4630
    %v4632 = vpop.f32.mrb[0].mxu0
    %4633 = vmatprep.mubr.f32.mxu0 0.0
    %4634 = vmatmul.mubr.f32.gmra.mrb[0].mxu0 %v4562
    %v4635 = vpop.f32.mrb[0].mxu0
    %v4636 = vadd.f32 %v4557, %v4635
    %v4637 = vpop.f32.mrb[0].mxu0
    %4638 = vdwg.mxu0
    %v4639 = vmax.f32 %v4631, 0.0
    %v4640 = vmax.f32 %v4636, 0.0
    %v4641 = vld [vmem:[%s6 + $0x15] sm:$0x1]
    %v4642 = vlaneseq
    %v4643 = vshrl.u32 %v4642, 7
    %v4644 = vsub.s32 0, %v4643
    %v4645 = vrot.slane %v4641, %v4644
    %v4647 = vsel %vm201, %v4639, 0
    %v4650 = vsel %vm201, %v4640, 0
    %4652 = vmatprep.subr.mxu0 0.0
    %4653 = vmatpush1.msra.mxu0 %v2477
    %4654 = vmatprep.subr.mxu0 0.0
    %4655 = vmatpush1.msra.mxu0 %v2478
    %4656 = vmatprep.subr.mxu0 0.0
    %4657 = vmatpush1.msra.mxu0 %v2479
    %4658 = vmatprep.subr.mxu0 0.0
    %4659 = vmatpush1.msra.mxu0 %v2480
    %4660 = vmatprep.subr.mxu0 0.0
    %4661 = vmatpush1.msra.mxu0 %v2481
    %4662 = vmatprep.subr.mxu0 0.0
    %4663 = vmatpush1.msra.mxu0 %v2482
    %4664 = vmatprep.subr.mxu0 0.0
    %4665 = vmatpush1.msra.mxu0 %v2483
    %4666 = vmatprep.subr.mxu0 0.0
    %4667 = vmatpush1.msra.mxu0 %v2484
    %4668 = vmatprep.subr.mxu0 0.0
    %4669 = vmatpush1.msra.mxu0 0.0
    %4670 = vmatprep.subr.mxu0 0.0
    %4671 = vmatpush1.msra.mxu0 0.0
    %4672 = vmatprep.subr.mxu0 0.0
    %4673 = vmatpush1.msra.mxu0 0.0
    %4674 = vmatprep.subr.mxu0 0.0
    %4675 = vmatpush1.msra.mxu0 0.0
    %4676 = vmatprep.subr.mxu0 0.0
    %4677 = vmatpush1.msra.mxu0 0.0
    %4678 = vmatprep.subr.mxu0 0.0
    %4679 = vmatpush1.msra.mxu0 0.0
    %4680 = vmatprep.subr.mxu0 0.0
    %4681 = vmatpush1.msra.mxu0 0.0
    %4682 = vmatprep.subr.mxu0 0.0
    %4683 = vmatpush1.msra.mxu0 0.0
    %4684 = vmatprep.subr.mxu0 0.0
    %4685 = vmatpush1.msra.mxu0 0.0
    %4686 = vmatprep.subr.mxu0 0.0
    %4687 = vmatpush1.msra.mxu0 0.0
    %4688 = vmatprep.subr.mxu0 0.0
    %4689 = vmatpush1.msra.mxu0 0.0
    %4690 = vmatprep.subr.mxu0 0.0
    %4691 = vmatpush1.msra.mxu0 0.0
    %4692 = vmatprep.subr.mxu0 0.0
    %4693 = vmatpush1.msra.mxu0 0.0
    %4694 = vmatprep.subr.mxu0 0.0
    %4695 = vmatpush1.msra.mxu0 0.0
    %4696 = vmatprep.subr.mxu0 0.0
    %4697 = vmatpush1.msra.mxu0 0.0
    %4698 = vmatprep.subr.mxu0 0.0
    %4699 = vmatpush1.msra.mxu0 0.0
    %4700 = vmatprep.subr.mxu0 0.0
    %4701 = vmatpush1.msra.mxu0 0.0
    %4702 = vmatprep.subr.mxu0 0.0
    %4703 = vmatpush1.msra.mxu0 0.0
    %4704 = vmatprep.subr.mxu0 0.0
    %4705 = vmatpush1.msra.mxu0 0.0
    %4706 = vmatprep.subr.mxu0 0.0
    %4707 = vmatpush1.msra.mxu0 0.0
    %4708 = vmatprep.subr.mxu0 0.0
    %4709 = vmatpush1.msra.mxu0 0.0
    %4710 = vmatprep.subr.mxu0 0.0
    %4711 = vmatpush1.msra.mxu0 0.0
    %4712 = vmatprep.subr.mxu0 0.0
    %4713 = vmatpush1.msra.mxu0 0.0
    %4714 = vmatprep.subr.mxu0 0.0
    %4715 = vmatpush1.msra.mxu0 0.0
    %4716 = vmatprep.mubr.f32.mxu0 0.0
    %4717 = vmatmul.mubr.f32.gmra.mrb[0].mxu0 %v4647
    %v4718 = vpop.f32.mrb[0].mxu0
    %v4719 = vadd.f32 %v4645, %v4718
    %v4720 = vpop.f32.mrb[0].mxu0
    %4721 = vmatprep.mubr.f32.mxu0 0.0
    %4722 = vmatmul.mubr.f32.gmra.mrb[0].mxu0 %v4650
    %v4723 = vpop.f32.mrb[0].mxu0
    %v4724 = vadd.f32 %v4645, %v4723
    %v4725 = vpop.f32.mrb[0].mxu0
    %4726 = vdwg.mxu0
    %v4727 = vadd.f32 %v4551, %v4719
    %v4728 = vadd.f32 %v4552, %v4724
    %v4729 = vld [vmem:[%s6 + $0x12] sm:$0x1]
    %v4730 = vld [vmem:[%s6 + $0x13] sm:$0x1]
    %v4731 = vsel %vm201, %v4727, 0.0
    %4732 = vadd.xlane.f32.xlu0 %v4731
    %v4733 = vpop.xlane.xlu0 %4732
    %v4734 = vsel %vm201, %v4728, 0.0
    %4735 = vadd.xlane.f32.xlu0 %v4734
    %v4736 = vpop.xlane.xlu0 %4735
    %v4737 = vmul.f32 %v4733, %v2209
    %v4738 = vmul.f32 %v4736, %v2209
    %v4739 = vsub.f32 %v4727, %v4737
    %v4740 = vsub.f32 %v4728, %v4738
    %v4741 = vmul.f32 %v4739, %v4739
    %v4742 = vmul.f32 %v4740, %v4740
    %v4743 = vsel %vm201, %v4741, 0.0
    %4744 = vadd.xlane.f32.xlu0 %v4743
    %v4745 = vpop.xlane.xlu0 %4744
    %v4746 = vsel %vm201, %v4742, 0.0
    %4747 = vadd.xlane.f32.xlu0 %v4746
    %v4748 = vpop.xlane.xlu0 %4747
    %v4749 = vmul.f32 %v4745, %v2209
    %v4750 = vmul.f32 %v4748, %v2209
    %v4751 = vadd.f32 %v4749, 1e-05
    %v4752 = vadd.f32 %v4750, 1e-05
    %v4753 = vrsqrt.pop %v4751
    %v4754 = vrsqrt.pop %v4752
    %v4755 = vmul.f32 %v4739, %v4753
    %v4756 = vmul.f32 %v4740, %v4754
    %v4757 = vlaneseq
    %v4758 = vshrl.u32 %v4757, 7
    %v4759 = vsub.s32 0, %v4758
    %v4760 = vrot.slane %v4729, %v4759
    %v4761 = vmul.f32 %v4755, %v4760
    %v4762 = vmul.f32 %v4756, %v4760
    %v4763 = vlaneseq
    %v4764 = vshrl.u32 %v4763, 7
    %v4765 = vsub.s32 0, %v4764
    %v4766 = vrot.slane %v4730, %v4765
    %v4767 = vadd.f32 %v4761, %v4766
    %v4768 = vadd.f32 %v4762, %v4766
    %v4769 = vld [vmem:[%s5] sm:$0xff]
    %v4770 = vld [vmem:[%s5 + $0x8] sm:$0xff]
    %v4771 = vld [vmem:[%s5 + $0x10] sm:$0xff]
    %v4772 = vld [vmem:[%s5 + $0x18] sm:$0xff]
    %v4773 = vld [vmem:[%s5 + $0x20] sm:$0xff]
    %v4774 = vld [vmem:[%s5 + $0x28] sm:$0xff]
    %v4775 = vld [vmem:[%s5 + $0x30] sm:$0xff]
    %v4776 = vld [vmem:[%s5 + $0x38] sm:$0xff]
    %v4777 = vld [vmem:[%s5 + $0x40] sm:$0x1]
    %v4778 = vlaneseq
    %v4779 = vshrl.u32 %v4778, 7
    %v4780 = vsub.s32 0, %v4779
    %v4781 = vrot.slane %v4777, %v4780
    %v4783 = vsel %vm201, %v4767, 0
    %v4786 = vsel %vm201, %v4768, 0
    %4788 = vmatprep.subr.mxu0 0.0
    %4789 = vmatpush1.msra.mxu0 %v4769
    %4790 = vmatprep.subr.mxu0 0.0
    %4791 = vmatpush1.msra.mxu0 %v4770
    %4792 = vmatprep.subr.mxu0 0.0
    %4793 = vmatpush1.msra.mxu0 %v4771
    %4794 = vmatprep.subr.mxu0 0.0
    %4795 = vmatpush1.msra.mxu0 %v4772
    %4796 = vmatprep.subr.mxu0 0.0
    %4797 = vmatpush1.msra.mxu0 %v4773
    %4798 = vmatprep.subr.mxu0 0.0
    %4799 = vmatpush1.msra.mxu0 %v4774
    %4800 = vmatprep.subr.mxu0 0.0
    %4801 = vmatpush1.msra.mxu0 %v4775
    %4802 = vmatprep.subr.mxu0 0.0
    %4803 = vmatpush1.msra.mxu0 %v4776
    %4804 = vmatprep.subr.mxu0 0.0
    %4805 = vmatpush1.msra.mxu0 0.0
    %4806 = vmatprep.subr.mxu0 0.0
    %4807 = vmatpush1.msra.mxu0 0.0
    %4808 = vmatprep.subr.mxu0 0.0
    %4809 = vmatpush1.msra.mxu0 0.0
    %4810 = vmatprep.subr.mxu0 0.0
    %4811 = vmatpush1.msra.mxu0 0.0
    %4812 = vmatprep.subr.mxu0 0.0
    %4813 = vmatpush1.msra.mxu0 0.0
    %4814 = vmatprep.subr.mxu0 0.0
    %4815 = vmatpush1.msra.mxu0 0.0
    %4816 = vmatprep.subr.mxu0 0.0
    %4817 = vmatpush1.msra.mxu0 0.0
    %4818 = vmatprep.subr.mxu0 0.0
    %4819 = vmatpush1.msra.mxu0 0.0
    %4820 = vmatprep.subr.mxu0 0.0
    %4821 = vmatpush1.msra.mxu0 0.0
    %4822 = vmatprep.subr.mxu0 0.0
    %4823 = vmatpush1.msra.mxu0 0.0
    %4824 = vmatprep.subr.mxu0 0.0
    %4825 = vmatpush1.msra.mxu0 0.0
    %4826 = vmatprep.subr.mxu0 0.0
    %4827 = vmatpush1.msra.mxu0 0.0
    %4828 = vmatprep.subr.mxu0 0.0
    %4829 = vmatpush1.msra.mxu0 0.0
    %4830 = vmatprep.subr.mxu0 0.0
    %4831 = vmatpush1.msra.mxu0 0.0
    %4832 = vmatprep.subr.mxu0 0.0
    %4833 = vmatpush1.msra.mxu0 0.0
    %4834 = vmatprep.subr.mxu0 0.0
    %4835 = vmatpush1.msra.mxu0 0.0
    %4836 = vmatprep.subr.mxu0 0.0
    %4837 = vmatpush1.msra.mxu0 0.0
    %4838 = vmatprep.subr.mxu0 0.0
    %4839 = vmatpush1.msra.mxu0 0.0
    %4840 = vmatprep.subr.mxu0 0.0
    %4841 = vmatpush1.msra.mxu0 0.0
    %4842 = vmatprep.subr.mxu0 0.0
    %4843 = vmatpush1.msra.mxu0 0.0
    %4844 = vmatprep.subr.mxu0 0.0
    %4845 = vmatpush1.msra.mxu0 0.0
    %4846 = vmatprep.subr.mxu0 0.0
    %4847 = vmatpush1.msra.mxu0 0.0
    %4848 = vmatprep.subr.mxu0 0.0
    %4849 = vmatpush1.msra.mxu0 0.0
    %4850 = vmatprep.subr.mxu0 0.0
    %4851 = vmatpush1.msra.mxu0 0.0
    %4852 = vmatprep.mubr.f32.mxu0 0.0
    %4853 = vmatmul.mubr.f32.gmra.mrb[0].mxu0 %v4783
    %v4854 = vpop.f32.mrb[0].mxu0
    %v4855 = vadd.f32 %v4781, %v4854
    %v4856 = vpop.f32.mrb[0].mxu0
    %4857 = vmatprep.mubr.f32.mxu0 0.0
    %4858 = vmatmul.mubr.f32.gmra.mrb[0].mxu0 %v4786
    %v4859 = vpop.f32.mrb[0].mxu0
    %v4860 = vadd.f32 %v4781, %v4859
    %v4861 = vpop.f32.mrb[0].mxu0
    %4862 = vdwg.mxu0
    %vm4863 = vcmask 31744
    %4864 = vst.msk [vmem:[%s7] sm:$0xff] %vm4863, %v4855
    %4865 = vst.msk [vmem:[%s7 + $0x8] sm:$0xff] %vm4863, %v4860
    // Predicated region
    $region38: #{actor_transformer_forward.1} parent=1 // pred_check
      _
    $region39: #{actor_transformer_forward.1} parent=1 // pred_check_branch
      %4867 = sbr.rel (0) target = $region41
    $region40: #{actor_transformer_forward.1} parent=1 // pred_region
      _
    $region41: #{actor_transformer_forward.1} parent=1 // pred_fallthru
      _
    // Predicated region
    $region42: #{actor_transformer_forward.1} parent=1 // pred_check
      _
    $region43: #{actor_transformer_forward.1} parent=1 // pred_check_branch
      %4869 = sbr.rel (0) target = $region45
    $region44: #{actor_transformer_forward.1} parent=1 // pred_region
      _
    $region45: #{actor_transformer_forward.1} parent=1 // pred_fallthru
      _
    %4870 = vsyncpa [#allocation3], 1
    %4871 = vsyncpa [#allocation5], 1

</llo_original>
